<compile_context>
chip_gen: v7x
topology: tpu7x:2x2x1
jax: 0.10.0
libtpu: 0.0.40
codegen_flags: <defaults>
</compile_context>

<pallas_src>
import functools

import numpy as np
import jax
import jax.numpy as jnp
from jax import lax
from jax.experimental import pallas as pl
from jax.experimental.pallas import tpu as pltpu


def _round_up(x, m):
    return ((x + m - 1) // m) * m


def _pick_tile(dim_padded, cap):
    """Largest multiple of 128 that divides dim_padded (itself a multiple of
    128) and is <= cap -- avoids padding K/N up to a tile multiple."""
    t = max(128, (min(cap, dim_padded) // 128) * 128)
    while dim_padded % t:
        t -= 128
    return t


# ----------------------------------------------------------------------------
# Pallas kernel 1: tiled fused matmul  out = [ReLU](A) @ W + bias, [ReLU]
# ----------------------------------------------------------------------------
def _mm_kernel(a_ref, b_ref, bias_ref, o_ref, acc_ref, *, pre_relu, post_relu):
    k = pl.program_id(2)

    @pl.when(k == 0)
    def _():
        acc_ref[...] = jnp.zeros_like(acc_ref)

    a = a_ref[...]                       # bf16 tile
    if pre_relu:
        a = jnp.maximum(a, 0)            # exact on bf16: ReLU commutes with cast
    acc_ref[...] += jnp.dot(a, b_ref[...], preferred_element_type=jnp.float32)

    @pl.when(k == pl.num_programs(2) - 1)
    def _():
        out = acc_ref[...] + bias_ref[...]        # f32 epilogue
        if post_relu:
            out = jnp.maximum(out, 0.0)
        o_ref[...] = out.astype(o_ref.dtype)


def pallas_matmul(a, b, bias=None, pre_relu=False, post_relu=False,
                  out_dtype=jnp.bfloat16):
    """a: (M,K), b: (K,N). bf16 MXU inputs, f32 accumulate, out_dtype store.
    K/N padded only to 128; tk/tn chosen to divide the padded extents."""
    M, K = a.shape
    K2, N = b.shape
    assert K == K2
    Kp, Np = _round_up(K, 128), _round_up(N, 128)
    tk, tn = _pick_tile(Kp, 1024), _pick_tile(Np, 512)
    tm = min(512, _round_up(M, 16))
    Mp = _round_up(M, tm)

    a_p = jnp.pad(a.astype(jnp.bfloat16), ((0, Mp - M), (0, Kp - K)))
    b_p = jnp.pad(b.astype(jnp.bfloat16), ((0, Kp - K), (0, Np - N)))
    if bias is None:
        bias_p = jnp.zeros((1, Np), jnp.float32)
    else:
        bias_p = jnp.pad(bias.reshape(1, N).astype(jnp.float32),
                         ((0, 0), (0, Np - N)))

    grid = (Mp // tm, Np // tn, Kp // tk)
    kern = functools.partial(_mm_kernel, pre_relu=pre_relu, post_relu=post_relu)
    out = pl.pallas_call(
        kern,
        out_shape=jax.ShapeDtypeStruct((Mp, Np), out_dtype),
        grid=grid,
        in_specs=[pl.BlockSpec((tm, tk), lambda i, j, k: (i, k)),
                  pl.BlockSpec((tk, tn), lambda i, j, k: (k, j)),
                  pl.BlockSpec((1, tn), lambda i, j, k: (0, j))],
        out_specs=pl.BlockSpec((tm, tn), lambda i, j, k: (i, j)),
        scratch_shapes=[pltpu.VMEM((tm, tn), jnp.float32)],
        compiler_params=pltpu.CompilerParams(
            dimension_semantics=("parallel", "parallel", "arbitrary"),
            vmem_limit_bytes=64 * 1024 * 1024),
        cost_estimate=pl.CostEstimate(
            flops=2 * Mp * Np * Kp, transcendentals=0,
            bytes_accessed=2 * Mp * Kp + 2 * Kp * Np
            + Mp * Np * jnp.dtype(out_dtype).itemsize),
    )(a_p, b_p, bias_p)
    return out[:M, :N]


# ----------------------------------------------------------------------------
# Conv glue (NHWC everywhere; bf16 patch matrices)
# ----------------------------------------------------------------------------
def _im2col(xb, kh, kw, stride, Ho, Wo):
    """xb: padded NHWC bf16 input -> (B*Ho*Wo, kh*kw*C) patch matrix."""
    B, _, _, C = xb.shape
    if kh == 1 and kw == 1 and stride == 1:
        return xb.reshape(B * Ho * Wo, C)
    # TODO(synk): the patch matrix is materialized in HBM (kh*kw read
    # amplification); an in-kernel tap gather (Element-indexed taps or manual
    # row-band DMA) would remove this extra HBM pass.
    cols = []
    for di in range(kh):
        for dj in range(kw):
            cols.append(xb[:, di:di + stride * (Ho - 1) + 1:stride,
                              dj:dj + stride * (Wo - 1) + 1:stride, :])
    return jnp.stack(cols, axis=3).reshape(B * Ho * Wo, kh * kw * C)


def conv2d_nhwc(x, w, b, stride, pad, pre_relu=False, post_relu=False,
                out_dtype=jnp.bfloat16):
    """x: (B,H,W,Cin) NHWC.  w: (Cout,Cin,kh,kw) (PyTorch layout).
    pre_relu is safe to fuse: ReLU(0)==0 so it commutes with zero padding."""
    B, H, W, C = x.shape
    Cout, Cin, kh, kw = w.shape
    assert Cin == C
    xb = x.astype(jnp.bfloat16)
    if pad:
        xb = jnp.pad(xb, ((0, 0), (pad, pad), (pad, pad), (0, 0)))
    Hp, Wp = H + 2 * pad, W + 2 * pad
    Ho = (Hp - kh) // stride + 1
    Wo = (Wp - kw) // stride + 1
    a = _im2col(xb, kh, kw, stride, Ho, Wo)
    wmat = jnp.transpose(w, (2, 3, 1, 0)).reshape(kh * kw * Cin, Cout)
    out = pallas_matmul(a, wmat, b, pre_relu=pre_relu, post_relu=post_relu,
                        out_dtype=out_dtype)
    return out.reshape(B, Ho, Wo, Cout)


def conv_transpose2d_nhwc(x, w, b, stride, pad, pre_relu=False, post_relu=False,
                          out_dtype=jnp.bfloat16):
    """x: NHWC.  w: (Cin,Cout,kh,kw) (PyTorch ConvTranspose layout).
    stride==1 -> equivalent conv with flipped kernel.
    stride==2, k=4, p=1 -> stride-phase decomposition: one fused matmul over a
    3x3 input window producing all 4 output phases (no zero-dilated tensor)."""
    Cin, Cout, kh, kw = w.shape
    B, H, W, C = x.shape
    assert Cin == C
    if stride == 1:
        w_eq = jnp.transpose(jnp.flip(w, axis=(2, 3)), (1, 0, 2, 3))
        return conv2d_nhwc(x, w_eq, b, 1, kh - 1 - pad, pre_relu, post_relu,
                           out_dtype)

    assert stride == 2 and kh == 4 and kw == 4 and pad == 1, "unsupported convT"
    xpad = jnp.pad(x.astype(jnp.bfloat16), ((0, 0), (1, 1), (1, 1), (0, 0)))
    a = _im2col(xpad, 3, 3, 1, H, W)

    # phase->tap map for k=4, s=2, p=1 (o = 2*i - 1 + k):
    #   even output (phase 0): input offset -1 -> tap 3, offset 0 -> tap 1
    #   odd  output (phase 1): input offset  0 -> tap 2, offset +1 -> tap 0
    tapmap = {0: {0: 3, 1: 1}, 1: {1: 2, 2: 0}}
    wbig = jnp.zeros((3, 3, Cin, 4, Cout), jnp.float32)
    for ph in (0, 1):
        for pw in (0, 1):
            for di, ki in tapmap[ph].items():
                for dj, kj in tapmap[pw].items():
                    wbig = wbig.at[di, dj, :, ph * 2 + pw, :].set(w[:, :, ki, kj])
    wmat = wbig.reshape(9 * Cin, 4 * Cout)
    bias_big = None if b is None else jnp.tile(b, 4)

    out = pallas_matmul(a, wmat, bias_big, pre_relu=pre_relu,
                        post_relu=post_relu, out_dtype=out_dtype)
    # TODO(synk): the phase de-interleave below is an XLA transpose over the
    # upsampled activation; folding it into the next layer's tap gather (or a
    # phase-aware output index_map) would remove one HBM round trip.
    out = out.reshape(B, H, W, 2, 2, Cout)
    out = jnp.transpose(out, (0, 1, 3, 2, 4, 5)).reshape(B, 2 * H, 2 * W, Cout)
    return out


# ----------------------------------------------------------------------------
# Pallas kernel 2: fused residual layer  x + Conv1x1(ReLU(Conv3x3(ReLU(x))))
# (the (tm, res_h_dim) intermediate never leaves VMEM; residual add fused)
# ----------------------------------------------------------------------------
def _res_kernel(a_ref, w1_ref, w2_ref, x_ref, o_ref, acc_ref):
    k = pl.program_id(1)

    @pl.when(k == 0)
    def _():
        acc_ref[...] = jnp.zeros_like(acc_ref)

    # pre-ReLU on the im2col'd input: ReLU commutes with zero-pad + gather.
    acc_ref[...] += jnp.dot(jnp.maximum(a_ref[...], 0), w1_ref[...],
                            preferred_element_type=jnp.float32)

    @pl.when(k == pl.num_programs(1) - 1)
    def _():
        hid = jnp.maximum(acc_ref[...], 0.0).astype(jnp.bfloat16)   # mid ReLU
        y = jnp.dot(hid, w2_ref[...], preferred_element_type=jnp.float32)
        o_ref[...] = (x_ref[...].astype(jnp.float32) + y).astype(o_ref.dtype)


def _fused_residual_layer(x, w1m, w2m):
    B, H, W, C = x.shape
    Kp, Rp = w1m.shape
    Np = w2m.shape[1]
    M = B * H * W
    xb = x.astype(jnp.bfloat16)
    xpad = jnp.pad(xb, ((0, 0), (1, 1), (1, 1), (0, 0)))
    a = _im2col(xpad, 3, 3, 1, H, W)

    tm = min(512, _round_up(M, 16))
    Mp = _round_up(M, tm)
    tk = _pick_tile(Kp, 1024)
    a = jnp.pad(a, ((0, Mp - M), (0, Kp - a.shape[1])))
    xflat = jnp.pad(xb.reshape(M, C), ((0, Mp - M), (0, Np - C)))

    grid = (Mp // tm, Kp // tk)
    out = pl.pallas_call(
        _res_kernel,
        out_shape=jax.ShapeDtypeStruct((Mp, Np), jnp.bfloat16),
        grid=grid,
        in_specs=[pl.BlockSpec((tm, tk), lambda i, k: (i, k)),
                  pl.BlockSpec((tk, Rp), lambda i, k: (k, 0)),
                  pl.BlockSpec((Rp, Np), lambda i, k: (0, 0)),
                  pl.BlockSpec((tm, Np), lambda i, k: (i, 0))],
        out_specs=pl.BlockSpec((tm, Np), lambda i, k: (i, 0)),
        scratch_shapes=[pltpu.VMEM((tm, Rp), jnp.float32)],
        compiler_params=pltpu.CompilerParams(
            dimension_semantics=("parallel", "arbitrary"),
            vmem_limit_bytes=64 * 1024 * 1024),
    )(a, w1m, w2m, xflat)
    return out[:M, :C].reshape(B, H, W, C)


def residual_stack(x, res_params, n_res):
    w1, w2 = res_params          # (R, C, 3, 3) and (C, R, 1, 1), bias=False
    C = x.shape[-1]
    R = w1.shape[0]
    K = 9 * C
    Kp, Rp, Np = _round_up(K, 128), _round_up(R, 128), _round_up(C, 128)
    # pack + pad the shared weights ONCE (reused across all n_res iterations)
    w1m = jnp.pad(
        jnp.transpose(w1, (2, 3, 1, 0)).reshape(K, R).astype(jnp.bfloat16),
        ((0, Kp - K), (0, Rp - R)))
    w2m = jnp.pad(w2.reshape(C, R).T.astype(jnp.bfloat16),
                  ((0, Rp - R), (0, Np - C)))
    for _ in range(n_res):
        x = _fused_residual_layer(x, w1m, w2m)
    # the stack's trailing ReLU is fused (pre_relu=True) into the NEXT layer.
    return x


# ----------------------------------------------------------------------------
# Pallas kernel 3: vector quantizer (codebook resident, M axis parallel)
# ----------------------------------------------------------------------------
def _vq_kernel(z_ref, esq_ref, e_ref, zq_ref, idx_ref, cnt_ref, sq_ref, *,
               m_actual):
    i = pl.program_id(0)
    z = z_ref[...]                                  # (tm, D) f32
    e_bf = e_ref[...].astype(jnp.bfloat16)          # (K, D)  bf16 (native MXU)
    tm = z.shape[0]
    K = e_bf.shape[0]

    # d[m,k] = ||e_k||^2 - 2 z_m.e_k   (||z||^2 dropped: argmin-invariant).
    # cross term bf16 on the MXU, ||e||^2 and the compare stay f32.
    cross = lax.dot_general(z.astype(jnp.bfloat16), e_bf,
                            (((1,), (1,)), ((), ())),
                            preferred_element_type=jnp.float32)      # (tm, K)
    d = esq_ref[...] - 2.0 * cross
    kcol = lax.broadcasted_iota(jnp.int32, (tm, K), 1)
    dmin = jnp.min(d, axis=1, keepdims=True)                          # (tm, 1)
    idx = jnp.min(jnp.where(d <= dmin, kcol, K), axis=1, keepdims=True)
    idx_ref[...] = idx                               # streamed (tm, 1) block

    onehot = (kcol == idx)
    zq = lax.dot_general(onehot.astype(jnp.bfloat16), e_bf,
                         (((1,), (0,)), ((), ())),
                         preferred_element_type=jnp.float32)          # (tm, D)
    zq_ref[...] = zq.astype(zq_ref.dtype)

    # Per-tile partial stats (no cross-tile carry -> the M axis can be
    # megacore-"parallel"); reduced in the wrapper.
    rows = i * tm + lax.broadcasted_iota(jnp.int32, (tm, 1), 0)
    valid = rows < m_actual                                           # (tm, 1)
    cnt = jnp.sum(jnp.where(onehot & valid, 1.0, 0.0),
                  axis=0, keepdims=True)                              # (1, K)
    srow = lax.broadcasted_iota(jnp.int32, cnt_ref.shape, 0)
    cnt_ref[...] = jnp.where(srow == 0, cnt, 0.0)

    diff = (zq - z) * valid.astype(jnp.float32)
    tot = jnp.sum(diff * diff)
    smask = ((lax.broadcasted_iota(jnp.int32, sq_ref.shape, 0) == 0) &
             (lax.broadcasted_iota(jnp.int32, sq_ref.shape, 1) == 0))
    sq_ref[...] = jnp.where(smask, tot, 0.0)


def vector_quantize(z_flat, codebook, beta):
    M, D = z_flat.shape
    K = codebook.shape[0]
    tm = min(1024, _round_up(M, 16))
    Mp = _round_up(M, tm)
    n_tiles = Mp // tm

    z_p = jnp.pad(z_flat.astype(jnp.float32), ((0, Mp - M), (0, 0)))
    e = codebook.astype(jnp.float32)
    e_sq = jnp.sum(e * e, axis=1)[None, :]                     # (1, K) f32

    kern = functools.partial(_vq_kernel, m_actual=M)
    zq_p, idx_p, cnt_p, sq_p = pl.pallas_call(
        kern,
        out_shape=(jax.ShapeDtypeStruct((Mp, D), jnp.bfloat16),
                   jax.ShapeDtypeStruct((Mp, 1), jnp.int32),
                   jax.ShapeDtypeStruct((n_tiles * 8, K), jnp.float32),
                   jax.ShapeDtypeStruct((n_tiles * 8, 128), jnp.float32)),
        grid=(n_tiles,),
        in_specs=[pl.BlockSpec((tm, D), lambda i: (i, 0)),
                  pl.BlockSpec((1, K), lambda i: (0, 0)),
                  pl.BlockSpec((K, D), lambda i: (0, 0))],
        out_specs=(pl.BlockSpec((tm, D), lambda i: (i, 0)),
                   pl.BlockSpec((tm, 1), lambda i: (i, 0)),
                   pl.BlockSpec((8, K), lambda i: (i, 0)),
                   pl.BlockSpec((8, 128), lambda i: (i, 0))),
        compiler_params=pltpu.CompilerParams(
            dimension_semantics=("parallel",),
            vmem_limit_bytes=64 * 1024 * 1024),
    )(z_p, e_sq, e)

    z_q = zq_p[:M]                                 # bf16, feeds the decoder
    idx = idx_p[:M]
    counts = jnp.sum(cnt_p, axis=0)                # tiny reductions in XLA
    sq = jnp.sum(sq_p)
    # embedding loss: (1 + beta) * mean((z_q - z)^2)  (detach is identity fwd)
    loss = (1.0 + beta) * sq / (M * D)
    e_mean = counts / M
    perplexity = jnp.exp(-jnp.sum(e_mean * jnp.log(e_mean + 1e-10)))
    return z_q, idx, loss, perplexity


# ----------------------------------------------------------------------------
# Parameter construction (deterministic, synthetic)
# ----------------------------------------------------------------------------
def _conv_w(key, cout, cin, k):
    return jax.random.normal(key, (cout, cin, k, k), jnp.float32) / np.sqrt(cin * k * k)


def _convT_w(key, cin, cout, k):
    return jax.random.normal(key, (cin, cout, k, k), jnp.float32) / np.sqrt(cin * k * k)


def _bias(key, c):
    return jax.random.normal(key, (c,), jnp.float32) * 0.01


def init_params(key, h_dim, res_h_dim, n_half, n_res, n_emb, e_dim):
    keys = iter(jax.random.split(key, 64))
    p = {}
    enc_half = []
    cin = 3
    for i in range(n_half):
        cout = h_dim // 2 if i < n_half - 1 else h_dim
        enc_half.append((_conv_w(next(keys), cout, cin, 4), _bias(next(keys), cout)))
        cin = cout
    p['enc_half'] = enc_half
    p['enc_final'] = (_conv_w(next(keys), h_dim, h_dim, 3), _bias(next(keys), h_dim))
    p['enc_res'] = (_conv_w(next(keys), res_h_dim, h_dim, 3),   # 3x3, bias=False
                    _conv_w(next(keys), h_dim, res_h_dim, 1))   # 1x1, bias=False
    p['pre_quant'] = (_conv_w(next(keys), e_dim, h_dim, 1), _bias(next(keys), e_dim))
    p['codebook'] = jax.random.uniform(next(keys), (n_emb, e_dim), jnp.float32,
                                       minval=-1.0 / n_emb, maxval=1.0 / n_emb)
    p['dec_first'] = (_convT_w(next(keys), e_dim, h_dim, 3), _bias(next(keys), h_dim))
    p['dec_res'] = (_conv_w(next(keys), res_h_dim, h_dim, 3),
                    _conv_w(next(keys), h_dim, res_h_dim, 1))
    dec_half = []
    cin = h_dim
    for i in range(n_half):
        cout = h_dim // 2 if i < n_half - 1 else 3
        dec_half.append((_convT_w(next(keys), cin, cout, 4), _bias(next(keys), cout)))
        cin = cout
    p['dec_half'] = dec_half
    return p


# ----------------------------------------------------------------------------
# Forward pass (NHWC internally; bf16 activations between convs)
# ----------------------------------------------------------------------------
def vqvae_forward(params, x_nchw, beta, n_res):
    h = jnp.transpose(x_nchw, (0, 2, 3, 1))                       # NHWC once
    # ---- encoder ----
    for (w, b) in params['enc_half']:
        h = conv2d_nhwc(h, w, b, 2, 1, post_relu=True)
    w, b = params['enc_final']
    h = conv2d_nhwc(h, w, b, 1, 1)
    h = residual_stack(h, params['enc_res'], n_res)
    # ---- pre-quantization 1x1 conv (fuses the residual stack's final ReLU);
    #      f32 output: the quantizer's loss term wants full-precision z_e ----
    w, b = params['pre_quant']
    z_e = conv2d_nhwc(h, w, b, 1, 0, pre_relu=True, out_dtype=jnp.float32)
    # ---- vector quantizer ----
    B, Hl, Wl, D = z_e.shape
    z_flat = z_e.reshape(-1, D)
    z_q_flat, idx, loss, ppl = vector_quantize(z_flat, params['codebook'], beta)
    z_q = z_q_flat.reshape(B, Hl, Wl, D)
    # ---- decoder ----
    w, b = params['dec_first']
    h = conv_transpose2d_nhwc(z_q, w, b, 1, 1)
    h = residual_stack(h, params['dec_res'], n_res)
    n = len(params['dec_half'])
    for li, (w, b) in enumerate(params['dec_half']):
        h = conv_transpose2d_nhwc(
            h, w, b, 2, 1,
            pre_relu=(li == 0),                           # fused stack ReLU
            post_relu=(li < n - 1),
            out_dtype=jnp.float32 if li == n - 1 else jnp.bfloat16)
    x_hat = jnp.transpose(h, (0, 3, 1, 2))                        # back to NCHW once
    return loss, x_hat, idx, ppl
    # TODO(synk): save_img_embedding_map / verbose printing are host-side
    # bookkeeping with no kernel equivalent; omitted. Forward-only: the
    # straight-through / detach gradient structure is not reproduced.


if __name__ == "__main__":
    h_dim, res_h_dim = 32, 16
    n_half_conv_layers, n_res_layers = 2, 2
    n_embeddings, embedding_dim = 16, 8
    beta = 0.25

    key = jax.random.PRNGKey(0)
    kp, kx = jax.random.split(key)
    params = init_params(kp, h_dim, res_h_dim, n_half_conv_layers,
                         n_res_layers, n_embeddings, embedding_dim)
    x = jax.random.normal(kx, (2, 3, 16, 16), jnp.float32)        # NCHW like PyTorch

    forward = jax.jit(vqvae_forward, static_argnums=(2, 3))
    loss, x_hat, idx, ppl = forward(params, x, beta, n_res_layers)
    jax.block_until_ready((loss, x_hat, idx, ppl))

    assert x_hat.shape == x.shape, x_hat.shape
    assert x_hat.dtype == jnp.float32
    assert idx.shape == (2 * 4 * 4, 1), idx.shape
    assert np.isfinite(float(loss)) and np.isfinite(float(ppl))
    assert bool(jnp.all(jnp.isfinite(x_hat)))
    print("KERNEL_OK")
</pallas_src>

<mosaic_0001>
module attributes {stable_mosaic.version = 11 : i64} {
  func.func @_mm_kernel(%arg0: i32, %arg1: i32, %arg2: i32, %arg3: memref<128x128xbf16, #tpu.memory_space<vmem>>, %arg4: memref<128x128xbf16, #tpu.memory_space<vmem>>, %arg5: memref<1x128xf32, #tpu.memory_space<vmem>>, %arg6: memref<128x128xbf16, #tpu.memory_space<vmem>>, %arg7: memref<128x128xf32, #tpu.memory_space<vmem>>) attributes {dimension_semantics = [#tpu.dimension_semantics<parallel>, #tpu.dimension_semantics<parallel>, #tpu.dimension_semantics<arbitrary>], iteration_bounds = array<i64: 1, 1, 1>, scalar_prefetch = 0 : i64, scratch_operands = 1 : i64, tpu.core_type = #tpu.core_type<tc>, window_params = [{transform_indices = @transform_0, window_bounds = array<i64: 128, 128>}, {transform_indices = @transform_1, window_bounds = array<i64: 128, 128>}, {transform_indices = @transform_2, window_bounds = array<i64: 1, 128>}, {transform_indices = @transform_3, window_bounds = array<i64: 128, 128>}]} {
    %c0_i32 = arith.constant 0 : i32
    %0 = arith.cmpi eq, %arg2, %c0_i32 : i32
    %1 = arith.extui %0 : i1 to i32
    %c0_i32_0 = arith.constant 0 : i32
    %2 = arith.cmpi ne, %1, %c0_i32_0 : i32
    scf.if %2 {
      %cst_10 = arith.constant 0.000000e+00 : f32
      %12 = vector.broadcast %cst_10 : f32 to vector<128x128xf32>
      %c0_11 = arith.constant 0 : index
      %c0_12 = arith.constant 0 : index
      %13 = vector.load %arg7[%c0_11, %c0_12] : memref<128x128xf32, #tpu.memory_space<vmem>>, vector<128x128xf32>
      tpu.vector_store %arg7[%c0_11, %c0_12], %12 {strides = array<i32>} : memref<128x128xf32, #tpu.memory_space<vmem>>, vector<128x128xf32>,
    } else {
    }
    %c0 = arith.constant 0 : index
    %c0_1 = arith.constant 0 : index
    %3 = vector.load %arg3[%c0, %c0_1] : memref<128x128xbf16, #tpu.memory_space<vmem>>, vector<128x128xbf16>
    %c0_2 = arith.constant 0 : index
    %c0_3 = arith.constant 0 : index
    %4 = vector.load %arg7[%c0_2, %c0_3] : memref<128x128xf32, #tpu.memory_space<vmem>>, vector<128x128xf32>
    %c0_4 = arith.constant 0 : index
    %c0_5 = arith.constant 0 : index
    %5 = vector.load %arg4[%c0_4, %c0_5] : memref<128x128xbf16, #tpu.memory_space<vmem>>, vector<128x128xbf16>
    %cst = arith.constant dense<0.000000e+00> : vector<128x128xf32>
    %6 = tpu.matmul %3, %5, %cst {dimension_numbers = #tpu.dot_dimension_numbers<[1], [0], [0], [1], [0, 0, 1, 1], [], []>} : vector<128x128xbf16>, vector<128x128xbf16>, vector<128x128xf32> -> vector<128x128xf32>
    %7 = arith.addf %4, %6 : vector<128x128xf32>
    %c0_6 = arith.constant 0 : index
    %c0_7 = arith.constant 0 : index
    %8 = vector.load %arg7[%c0_6, %c0_7] : memref<128x128xf32, #tpu.memory_space<vmem>>, vector<128x128xf32>
    tpu.vector_store %arg7[%c0_6, %c0_7], %7 {strides = array<i32>} : memref<128x128xf32, #tpu.memory_space<vmem>>, vector<128x128xf32>,
    %c0_i32_8 = arith.constant 0 : i32
    %9 = arith.cmpi eq, %arg2, %c0_i32_8 : i32
    %10 = arith.extui %9 : i1 to i32
    %c0_i32_9 = arith.constant 0 : i32
    %11 = arith.cmpi ne, %10, %c0_i32_9 : i32
    scf.if %11 {
      %c0_10 = arith.constant 0 : index
      %c0_11 = arith.constant 0 : index
      %12 = vector.load %arg7[%c0_10, %c0_11] : memref<128x128xf32, #tpu.memory_space<vmem>>, vector<128x128xf32>
      %c0_12 = arith.constant 0 : index
      %c0_13 = arith.constant 0 : index
      %13 = vector.load %arg5[%c0_12, %c0_13] : memref<1x128xf32, #tpu.memory_space<vmem>>, vector<1x128xf32>
      %14 = vector.broadcast %13 : vector<1x128xf32> to vector<128x128xf32>
      %15 = arith.addf %12, %14 : vector<128x128xf32>
      %cst_14 = arith.constant 0.000000e+00 : f32
      %16 = vector.broadcast %cst_14 : f32 to vector<128x128xf32>
      %17 = arith.maximumf %15, %16 : vector<128x128xf32>
      %18 = arith.truncf %17 : vector<128x128xf32> to vector<128x128xbf16>
      %c0_15 = arith.constant 0 : index
      %c0_16 = arith.constant 0 : index
      %19 = vector.load %arg6[%c0_15, %c0_16] : memref<128x128xbf16, #tpu.memory_space<vmem>>, vector<128x128xbf16>
      tpu.vector_store %arg6[%c0_15, %c0_16], %18 {strides = array<i32>} : memref<128x128xbf16, #tpu.memory_space<vmem>>, vector<128x128xbf16>,
    } else {
    }
    return
  }
  func.func @transform_0(%arg0: i32, %arg1: i32, %arg2: i32) -> (i32, i32) {
    %c0_i32 = arith.constant 0 : i32
    return %arg0, %arg2 : i32, i32
  }
  func.func @transform_1(%arg0: i32, %arg1: i32, %arg2: i32) -> (i32, i32) {
    %c0_i32 = arith.constant 0 : i32
    return %arg2, %arg1 : i32, i32
  }
  func.func @transform_2(%arg0: i32, %arg1: i32, %arg2: i32) -> (i32, i32) {
    %c0_i32 = arith.constant 0 : i32
    %c0_i32_0 = arith.constant 0 : i32
    return %c0_i32, %arg1 : i32, i32
  }
  func.func @transform_3(%arg0: i32, %arg1: i32, %arg2: i32) -> (i32, i32) {
    %c0_i32 = arith.constant 0 : i32
    return %arg0, %arg1 : i32, i32
  }
}

module attributes {stable_mosaic.version = 11 : i64} {
  func.func @_mm_kernel(%arg0: i32, %arg1: i32, %arg2: i32, %arg3: memref<32x256xbf16, #tpu.memory_space<vmem>>, %arg4: memref<256x128xbf16, #tpu.memory_space<vmem>>, %arg5: memref<1x128xf32, #tpu.memory_space<vmem>>, %arg6: memref<32x128xbf16, #tpu.memory_space<vmem>>, %arg7: memref<32x128xf32, #tpu.memory_space<vmem>>) attributes {dimension_semantics = [#tpu.dimension_semantics<parallel>, #tpu.dimension_semantics<parallel>, #tpu.dimension_semantics<arbitrary>], iteration_bounds = array<i64: 1, 1, 1>, scalar_prefetch = 0 : i64, scratch_operands = 1 : i64, tpu.core_type = #tpu.core_type<tc>, window_params = [{transform_indices = @transform_0, window_bounds = array<i64: 32, 256>}, {transform_indices = @transform_1, window_bounds = array<i64: 256, 128>}, {transform_indices = @transform_2, window_bounds = array<i64: 1, 128>}, {transform_indices = @transform_3, window_bounds = array<i64: 32, 128>}]} {
    %c0_i32 = arith.constant 0 : i32
    %0 = arith.cmpi eq, %arg2, %c0_i32 : i32
    %1 = arith.extui %0 : i1 to i32
    %c0_i32_0 = arith.constant 0 : i32
    %2 = arith.cmpi ne, %1, %c0_i32_0 : i32
    scf.if %2 {
      %cst_10 = arith.constant 0.000000e+00 : f32
      %12 = vector.broadcast %cst_10 : f32 to vector<32x128xf32>
      %c0_11 = arith.constant 0 : index
      %c0_12 = arith.constant 0 : index
      %13 = vector.load %arg7[%c0_11, %c0_12] : memref<32x128xf32, #tpu.memory_space<vmem>>, vector<32x128xf32>
      tpu.vector_store %arg7[%c0_11, %c0_12], %12 {strides = array<i32>} : memref<32x128xf32, #tpu.memory_space<vmem>>, vector<32x128xf32>,
    } else {
    }
    %c0 = arith.constant 0 : index
    %c0_1 = arith.constant 0 : index
    %3 = vector.load %arg3[%c0, %c0_1] : memref<32x256xbf16, #tpu.memory_space<vmem>>, vector<32x256xbf16>
    %c0_2 = arith.constant 0 : index
    %c0_3 = arith.constant 0 : index
    %4 = vector.load %arg7[%c0_2, %c0_3] : memref<32x128xf32, #tpu.memory_space<vmem>>, vector<32x128xf32>
    %c0_4 = arith.constant 0 : index
    %c0_5 = arith.constant 0 : index
    %5 = vector.load %arg4[%c0_4, %c0_5] : memref<256x128xbf16, #tpu.memory_space<vmem>>, vector<256x128xbf16>
    %cst = arith.constant dense<0.000000e+00> : vector<32x128xf32>
    %6 = tpu.matmul %3, %5, %cst {dimension_numbers = #tpu.dot_dimension_numbers<[1], [0], [0], [1], [0, 0, 1, 1], [], []>} : vector<32x256xbf16>, vector<256x128xbf16>, vector<32x128xf32> -> vector<32x128xf32>
    %7 = arith.addf %4, %6 : vector<32x128xf32>
    %c0_6 = arith.constant 0 : index
    %c0_7 = arith.constant 0 : index
    %8 = vector.load %arg7[%c0_6, %c0_7] : memref<32x128xf32, #tpu.memory_space<vmem>>, vector<32x128xf32>
    tpu.vector_store %arg7[%c0_6, %c0_7], %7 {strides = array<i32>} : memref<32x128xf32, #tpu.memory_space<vmem>>, vector<32x128xf32>,
    %c0_i32_8 = arith.constant 0 : i32
    %9 = arith.cmpi eq, %arg2, %c0_i32_8 : i32
    %10 = arith.extui %9 : i1 to i32
    %c0_i32_9 = arith.constant 0 : i32
    %11 = arith.cmpi ne, %10, %c0_i32_9 : i32
    scf.if %11 {
      %c0_10 = arith.constant 0 : index
      %c0_11 = arith.constant 0 : index
      %12 = vector.load %arg7[%c0_10, %c0_11] : memref<32x128xf32, #tpu.memory_space<vmem>>, vector<32x128xf32>
      %c0_12 = arith.constant 0 : index
      %c0_13 = arith.constant 0 : index
      %13 = vector.load %arg5[%c0_12, %c0_13] : memref<1x128xf32, #tpu.memory_space<vmem>>, vector<1x128xf32>
      %14 = vector.broadcast %13 : vector<1x128xf32> to vector<32x128xf32>
      %15 = arith.addf %12, %14 : vector<32x128xf32>
      %cst_14 = arith.constant 0.000000e+00 : f32
      %16 = vector.broadcast %cst_14 : f32 to vector<32x128xf32>
      %17 = arith.maximumf %15, %16 : vector<32x128xf32>
      %18 = arith.truncf %17 : vector<32x128xf32> to vector<32x128xbf16>
      %c0_15 = arith.constant 0 : index
      %c0_16 = arith.constant 0 : index
      %19 = vector.load %arg6[%c0_15, %c0_16] : memref<32x128xbf16, #tpu.memory_space<vmem>>, vector<32x128xbf16>
      tpu.vector_store %arg6[%c0_15, %c0_16], %18 {strides = array<i32>} : memref<32x128xbf16, #tpu.memory_space<vmem>>, vector<32x128xbf16>,
    } else {
    }
    return
  }
  func.func @transform_0(%arg0: i32, %arg1: i32, %arg2: i32) -> (i32, i32) {
    %c0_i32 = arith.constant 0 : i32
    return %arg0, %arg2 : i32, i32
  }
  func.func @transform_1(%arg0: i32, %arg1: i32, %arg2: i32) -> (i32, i32) {
    %c0_i32 = arith.constant 0 : i32
    return %arg2, %arg1 : i32, i32
  }
  func.func @transform_2(%arg0: i32, %arg1: i32, %arg2: i32) -> (i32, i32) {
    %c0_i32 = arith.constant 0 : i32
    %c0_i32_0 = arith.constant 0 : i32
    return %c0_i32, %arg1 : i32, i32
  }
  func.func @transform_3(%arg0: i32, %arg1: i32, %arg2: i32) -> (i32, i32) {
    %c0_i32 = arith.constant 0 : i32
    return %arg0, %arg1 : i32, i32
  }
}

module attributes {stable_mosaic.version = 11 : i64} {
  func.func @_mm_kernel(%arg0: i32, %arg1: i32, %arg2: i32, %arg3: memref<32x384xbf16, #tpu.memory_space<vmem>>, %arg4: memref<384x128xbf16, #tpu.memory_space<vmem>>, %arg5: memref<1x128xf32, #tpu.memory_space<vmem>>, %arg6: memref<32x128xbf16, #tpu.memory_space<vmem>>, %arg7: memref<32x128xf32, #tpu.memory_space<vmem>>) attributes {dimension_semantics = [#tpu.dimension_semantics<parallel>, #tpu.dimension_semantics<parallel>, #tpu.dimension_semantics<arbitrary>], iteration_bounds = array<i64: 1, 1, 1>, scalar_prefetch = 0 : i64, scratch_operands = 1 : i64, tpu.core_type = #tpu.core_type<tc>, window_params = [{transform_indices = @transform_0, window_bounds = array<i64: 32, 384>}, {transform_indices = @transform_1, window_bounds = array<i64: 384, 128>}, {transform_indices = @transform_2, window_bounds = array<i64: 1, 128>}, {transform_indices = @transform_3, window_bounds = array<i64: 32, 128>}]} {
    %c0_i32 = arith.constant 0 : i32
    %0 = arith.cmpi eq, %arg2, %c0_i32 : i32
    %1 = arith.extui %0 : i1 to i32
    %c0_i32_0 = arith.constant 0 : i32
    %2 = arith.cmpi ne, %1, %c0_i32_0 : i32
    scf.if %2 {
      %cst_10 = arith.constant 0.000000e+00 : f32
      %12 = vector.broadcast %cst_10 : f32 to vector<32x128xf32>
      %c0_11 = arith.constant 0 : index
      %c0_12 = arith.constant 0 : index
      %13 = vector.load %arg7[%c0_11, %c0_12] : memref<32x128xf32, #tpu.memory_space<vmem>>, vector<32x128xf32>
      tpu.vector_store %arg7[%c0_11, %c0_12], %12 {strides = array<i32>} : memref<32x128xf32, #tpu.memory_space<vmem>>, vector<32x128xf32>,
    } else {
    }
    %c0 = arith.constant 0 : index
    %c0_1 = arith.constant 0 : index
    %3 = vector.load %arg3[%c0, %c0_1] : memref<32x384xbf16, #tpu.memory_space<vmem>>, vector<32x384xbf16>
    %c0_2 = arith.constant 0 : index
    %c0_3 = arith.constant 0 : index
    %4 = vector.load %arg7[%c0_2, %c0_3] : memref<32x128xf32, #tpu.memory_space<vmem>>, vector<32x128xf32>
    %c0_4 = arith.constant 0 : index
    %c0_5 = arith.constant 0 : index
    %5 = vector.load %arg4[%c0_4, %c0_5] : memref<384x128xbf16, #tpu.memory_space<vmem>>, vector<384x128xbf16>
    %cst = arith.constant dense<0.000000e+00> : vector<32x128xf32>
    %6 = tpu.matmul %3, %5, %cst {dimension_numbers = #tpu.dot_dimension_numbers<[1], [0], [0], [1], [0, 0, 1, 1], [], []>} : vector<32x384xbf16>, vector<384x128xbf16>, vector<32x128xf32> -> vector<32x128xf32>
    %7 = arith.addf %4, %6 : vector<32x128xf32>
    %c0_6 = arith.constant 0 : index
    %c0_7 = arith.constant 0 : index
    %8 = vector.load %arg7[%c0_6, %c0_7] : memref<32x128xf32, #tpu.memory_space<vmem>>, vector<32x128xf32>
    tpu.vector_store %arg7[%c0_6, %c0_7], %7 {strides = array<i32>} : memref<32x128xf32, #tpu.memory_space<vmem>>, vector<32x128xf32>,
    %c0_i32_8 = arith.constant 0 : i32
    %9 = arith.cmpi eq, %arg2, %c0_i32_8 : i32
    %10 = arith.extui %9 : i1 to i32
    %c0_i32_9 = arith.constant 0 : i32
    %11 = arith.cmpi ne, %10, %c0_i32_9 : i32
    scf.if %11 {
      %c0_10 = arith.constant 0 : index
      %c0_11 = arith.constant 0 : index
      %12 = vector.load %arg7[%c0_10, %c0_11] : memref<32x128xf32, #tpu.memory_space<vmem>>, vector<32x128xf32>
      %c0_12 = arith.constant 0 : index
      %c0_13 = arith.constant 0 : index
      %13 = vector.load %arg5[%c0_12, %c0_13] : memref<1x128xf32, #tpu.memory_space<vmem>>, vector<1x128xf32>
      %14 = vector.broadcast %13 : vector<1x128xf32> to vector<32x128xf32>
      %15 = arith.addf %12, %14 : vector<32x128xf32>
      %16 = arith.truncf %15 : vector<32x128xf32> to vector<32x128xbf16>
      %c0_14 = arith.constant 0 : index
      %c0_15 = arith.constant 0 : index
      %17 = vector.load %arg6[%c0_14, %c0_15] : memref<32x128xbf16, #tpu.memory_space<vmem>>, vector<32x128xbf16>
      tpu.vector_store %arg6[%c0_14, %c0_15], %16 {strides = array<i32>} : memref<32x128xbf16, #tpu.memory_space<vmem>>, vector<32x128xbf16>,
    } else {
    }
    return
  }
  func.func @transform_0(%arg0: i32, %arg1: i32, %arg2: i32) -> (i32, i32) {
    %c0_i32 = arith.constant 0 : i32
    return %arg0, %arg2 : i32, i32
  }
  func.func @transform_1(%arg0: i32, %arg1: i32, %arg2: i32) -> (i32, i32) {
    %c0_i32 = arith.constant 0 : i32
    return %arg2, %arg1 : i32, i32
  }
  func.func @transform_2(%arg0: i32, %arg1: i32, %arg2: i32) -> (i32, i32) {
    %c0_i32 = arith.constant 0 : i32
    %c0_i32_0 = arith.constant 0 : i32
    return %c0_i32, %arg1 : i32, i32
  }
  func.func @transform_3(%arg0: i32, %arg1: i32, %arg2: i32) -> (i32, i32) {
    %c0_i32 = arith.constant 0 : i32
    return %arg0, %arg1 : i32, i32
  }
}

module attributes {stable_mosaic.version = 11 : i64} {
  func.func @_res_kernel(%arg0: i32, %arg1: i32, %arg2: memref<32x384xbf16, #tpu.memory_space<vmem>>, %arg3: memref<384x128xbf16, #tpu.memory_space<vmem>>, %arg4: memref<128x128xbf16, #tpu.memory_space<vmem>>, %arg5: memref<32x128xbf16, #tpu.memory_space<vmem>>, %arg6: memref<32x128xbf16, #tpu.memory_space<vmem>>, %arg7: memref<32x128xf32, #tpu.memory_space<vmem>>) attributes {dimension_semantics = [#tpu.dimension_semantics<parallel>, #tpu.dimension_semantics<arbitrary>], iteration_bounds = array<i64: 1, 1>, scalar_prefetch = 0 : i64, scratch_operands = 1 : i64, tpu.core_type = #tpu.core_type<tc>, window_params = [{transform_indices = @transform_0, window_bounds = array<i64: 32, 384>}, {transform_indices = @transform_1, window_bounds = array<i64: 384, 128>}, {pipeline_mode = #tpu.pipeline_mode<synchronous>, transform_indices = @transform_2, window_bounds = array<i64: 128, 128>}, {transform_indices = @transform_3, window_bounds = array<i64: 32, 128>}, {transform_indices = @transform_4, window_bounds = array<i64: 32, 128>}]} {
    %c0_i32 = arith.constant 0 : i32
    %0 = arith.cmpi eq, %arg1, %c0_i32 : i32
    %1 = arith.extui %0 : i1 to i32
    %c0_i32_0 = arith.constant 0 : i32
    %2 = arith.cmpi ne, %1, %c0_i32_0 : i32
    scf.if %2 {
      %cst_11 = arith.constant 0.000000e+00 : f32
      %14 = vector.broadcast %cst_11 : f32 to vector<32x128xf32>
      %c0_12 = arith.constant 0 : index
      %c0_13 = arith.constant 0 : index
      %15 = vector.load %arg7[%c0_12, %c0_13] : memref<32x128xf32, #tpu.memory_space<vmem>>, vector<32x128xf32>
      tpu.vector_store %arg7[%c0_12, %c0_13], %14 {strides = array<i32>} : memref<32x128xf32, #tpu.memory_space<vmem>>, vector<32x128xf32>,
    } else {
    }
    %c0 = arith.constant 0 : index
    %c0_1 = arith.constant 0 : index
    %3 = vector.load %arg7[%c0, %c0_1] : memref<32x128xf32, #tpu.memory_space<vmem>>, vector<32x128xf32>
    %c0_2 = arith.constant 0 : index
    %c0_3 = arith.constant 0 : index
    %4 = vector.load %arg2[%c0_2, %c0_3] : memref<32x384xbf16, #tpu.memory_space<vmem>>, vector<32x384xbf16>
    %cst = arith.constant 0.000000e+00 : bf16
    %5 = vector.broadcast %cst : bf16 to vector<32x384xbf16>
    %6 = arith.maximumf %4, %5 : vector<32x384xbf16>
    %c0_4 = arith.constant 0 : index
    %c0_5 = arith.constant 0 : index
    %7 = vector.load %arg3[%c0_4, %c0_5] : memref<384x128xbf16, #tpu.memory_space<vmem>>, vector<384x128xbf16>
    %cst_6 = arith.constant dense<0.000000e+00> : vector<32x128xf32>
    %8 = tpu.matmul %6, %7, %cst_6 {dimension_numbers = #tpu.dot_dimension_numbers<[1], [0], [0], [1], [0, 0, 1, 1], [], []>} : vector<32x384xbf16>, vector<384x128xbf16>, vector<32x128xf32> -> vector<32x128xf32>
    %9 = arith.addf %3, %8 : vector<32x128xf32>
    %c0_7 = arith.constant 0 : index
    %c0_8 = arith.constant 0 : index
    %10 = vector.load %arg7[%c0_7, %c0_8] : memref<32x128xf32, #tpu.memory_space<vmem>>, vector<32x128xf32>
    tpu.vector_store %arg7[%c0_7, %c0_8], %9 {strides = array<i32>} : memref<32x128xf32, #tpu.memory_space<vmem>>, vector<32x128xf32>,
    %c0_i32_9 = arith.constant 0 : i32
    %11 = arith.cmpi eq, %arg1, %c0_i32_9 : i32
    %12 = arith.extui %11 : i1 to i32
    %c0_i32_10 = arith.constant 0 : i32
    %13 = arith.cmpi ne, %12, %c0_i32_10 : i32
    scf.if %13 {
      %c0_11 = arith.constant 0 : index
      %c0_12 = arith.constant 0 : index
      %14 = vector.load %arg7[%c0_11, %c0_12] : memref<32x128xf32, #tpu.memory_space<vmem>>, vector<32x128xf32>
      %cst_13 = arith.constant 0.000000e+00 : f32
      %15 = vector.broadcast %cst_13 : f32 to vector<32x128xf32>
      %16 = arith.maximumf %14, %15 : vector<32x128xf32>
      %17 = arith.truncf %16 : vector<32x128xf32> to vector<32x128xbf16>
      %c0_14 = arith.constant 0 : index
      %c0_15 = arith.constant 0 : index
      %18 = vector.load %arg4[%c0_14, %c0_15] : memref<128x128xbf16, #tpu.memory_space<vmem>>, vector<128x128xbf16>
      %cst_16 = arith.constant dense<0.000000e+00> : vector<32x128xf32>
      %19 = tpu.matmul %17, %18, %cst_16 {dimension_numbers = #tpu.dot_dimension_numbers<[1], [0], [0], [1], [0, 0, 1, 1], [], []>} : vector<32x128xbf16>, vector<128x128xbf16>, vector<32x128xf32> -> vector<32x128xf32>
      %c0_17 = arith.constant 0 : index
      %c0_18 = arith.constant 0 : index
      %20 = vector.load %arg5[%c0_17, %c0_18] : memref<32x128xbf16, #tpu.memory_space<vmem>>, vector<32x128xbf16>
      %21 = arith.extf %20 : vector<32x128xbf16> to vector<32x128xf32>
      %22 = arith.addf %21, %19 : vector<32x128xf32>
      %23 = arith.truncf %22 : vector<32x128xf32> to vector<32x128xbf16>
      %c0_19 = arith.constant 0 : index
      %c0_20 = arith.constant 0 : index
      %24 = vector.load %arg6[%c0_19, %c0_20] : memref<32x128xbf16, #tpu.memory_space<vmem>>, vector<32x128xbf16>
      tpu.vector_store %arg6[%c0_19, %c0_20], %23 {strides = array<i32>} : memref<32x128xbf16, #tpu.memory_space<vmem>>, vector<32x128xbf16>,
    } else {
    }
    return
  }
  func.func @transform_0(%arg0: i32, %arg1: i32) -> (i32, i32) {
    %c0_i32 = arith.constant 0 : i32
    return %arg0, %arg1 : i32, i32
  }
  func.func @transform_1(%arg0: i32, %arg1: i32) -> (i32, i32) {
    %c0_i32 = arith.constant 0 : i32
    %c0_i32_0 = arith.constant 0 : i32
    return %arg1, %c0_i32 : i32, i32
  }
  func.func @transform_2(%arg0: i32, %arg1: i32) -> (i32, i32) {
    %c0_i32 = arith.constant 0 : i32
    %c0_i32_0 = arith.constant 0 : i32
    %c0_i32_1 = arith.constant 0 : i32
    return %c0_i32, %c0_i32_0 : i32, i32
  }
  func.func @transform_3(%arg0: i32, %arg1: i32) -> (i32, i32) {
    %c0_i32 = arith.constant 0 : i32
    %c0_i32_0 = arith.constant 0 : i32
    return %arg0, %c0_i32 : i32, i32
  }
  func.func @transform_4(%arg0: i32, %arg1: i32) -> (i32, i32) {
    %c0_i32 = arith.constant 0 : i32
    %c0_i32_0 = arith.constant 0 : i32
    return %arg0, %c0_i32 : i32, i32
  }
}

module attributes {stable_mosaic.version = 11 : i64} {
  func.func @_vq_kernel(%arg0: i32, %arg1: memref<32x8xf32, #tpu.memory_space<vmem>>, %arg2: memref<1x16xf32, #tpu.memory_space<vmem>>, %arg3: memref<16x8xf32, #tpu.memory_space<vmem>>, %arg4: memref<32x8xbf16, #tpu.memory_space<vmem>>, %arg5: memref<32x1xi32, #tpu.memory_space<vmem>>, %arg6: memref<8x16xf32, #tpu.memory_space<vmem>>, %arg7: memref<8x128xf32, #tpu.memory_space<vmem>>) attributes {dimension_semantics = [#tpu.dimension_semantics<parallel>], iteration_bounds = array<i64: 1>, scalar_prefetch = 0 : i64, scratch_operands = 0 : i64, tpu.core_type = #tpu.core_type<tc>, window_params = [{transform_indices = @transform_0, window_bounds = array<i64: 32, 8>}, {pipeline_mode = #tpu.pipeline_mode<synchronous>, transform_indices = @transform_1, window_bounds = array<i64: 1, 16>}, {pipeline_mode = #tpu.pipeline_mode<synchronous>, transform_indices = @transform_2, window_bounds = array<i64: 16, 8>}, {transform_indices = @transform_3, window_bounds = array<i64: 32, 8>}, {transform_indices = @transform_4, window_bounds = array<i64: 32, 1>}, {transform_indices = @transform_5, window_bounds = array<i64: 8, 16>}, {transform_indices = @transform_6, window_bounds = array<i64: 8, 128>}]} {
    %c0 = arith.constant 0 : index
    %c0_0 = arith.constant 0 : index
    %0 = vector.load %arg1[%c0, %c0_0] : memref<32x8xf32, #tpu.memory_space<vmem>>, vector<32x8xf32>
    %c0_1 = arith.constant 0 : index
    %c0_2 = arith.constant 0 : index
    %1 = vector.load %arg3[%c0_1, %c0_2] : memref<16x8xf32, #tpu.memory_space<vmem>>, vector<16x8xf32>
    %2 = arith.truncf %1 : vector<16x8xf32> to vector<16x8xbf16>
    %3 = arith.truncf %0 : vector<32x8xf32> to vector<32x8xbf16>
    %cst = arith.constant dense<0.000000e+00> : vector<32x16xf32>
    %4 = tpu.matmul %3, %2, %cst {dimension_numbers = #tpu.dot_dimension_numbers<[1], [1], [0], [0], [0, 0, 1, 0], [], []>} : vector<32x8xbf16>, vector<16x8xbf16>, vector<32x16xf32> -> vector<32x16xf32>
    %c0_3 = arith.constant 0 : index
    %c0_4 = arith.constant 0 : index
    %5 = vector.load %arg2[%c0_3, %c0_4] : memref<1x16xf32, #tpu.memory_space<vmem>>, vector<1x16xf32>
    %cst_5 = arith.constant 2.000000e+00 : f32
    %6 = vector.broadcast %cst_5 : f32 to vector<32x16xf32>
    %7 = arith.mulf %6, %4 : vector<32x16xf32>
    %8 = vector.broadcast %5 : vector<1x16xf32> to vector<32x16xf32>
    %9 = arith.subf %8, %7 : vector<32x16xf32>
    %10 = tpu.iota {dimensions = array<i32: 1>} : vector<32x16xi32>
    %cst_6 = arith.constant dense<0x7F800000> : vector<32xf32>
    %11 = vector.multi_reduction <minimumf>, %9, %cst_6 [1] : vector<32x16xf32> to vector<32xf32>
    %12 = vector.shape_cast %11 : vector<32xf32> to vector<32x1xf32>
    %13 = vector.broadcast %12 : vector<32x1xf32> to vector<32x16xf32>
    %14 = arith.cmpf ole, %9, %13 : vector<32x16xf32>
    %c16_i32 = arith.constant 16 : i32
    %15 = vector.broadcast %c16_i32 : i32 to vector<32x16xi32>
    %16 = arith.select %14, %10, %15 : vector<32x16xi1>, vector<32x16xi32>
    %cst_7 = arith.constant dense<2147483647> : vector<32xi32>
    %17 = vector.multi_reduction <minsi>, %16, %cst_7 [1] : vector<32x16xi32> to vector<32xi32>
    %18 = vector.shape_cast %17 : vector<32xi32> to vector<32x1xi32>
    %c0_8 = arith.constant 0 : index
    %c0_9 = arith.constant 0 : index
    %19 = vector.load %arg5[%c0_8, %c0_9] : memref<32x1xi32, #tpu.memory_space<vmem>>, vector<32x1xi32>
    tpu.vector_store %arg5[%c0_8, %c0_9], %18 {strides = array<i32>} : memref<32x1xi32, #tpu.memory_space<vmem>>, vector<32x1xi32>,
    %20 = vector.broadcast %18 : vector<32x1xi32> to vector<32x16xi32>
    %21 = arith.cmpi eq, %10, %20 : vector<32x16xi32>
    %22 = arith.extui %21 : vector<32x16xi1> to vector<32x16xi32>
    %23 = arith.sitofp %22 : vector<32x16xi32> to vector<32x16xf32>
    %24 = arith.truncf %23 : vector<32x16xf32> to vector<32x16xbf16>
    %cst_10 = arith.constant dense<0.000000e+00> : vector<32x8xf32>
    %25 = tpu.matmul %24, %2, %cst_10 {dimension_numbers = #tpu.dot_dimension_numbers<[1], [0], [0], [1], [0, 0, 1, 1], [], []>} : vector<32x16xbf16>, vector<16x8xbf16>, vector<32x8xf32> -> vector<32x8xf32>
    %26 = arith.truncf %25 : vector<32x8xf32> to vector<32x8xbf16>
    %c0_11 = arith.constant 0 : index
    %c0_12 = arith.constant 0 : index
    %27 = vector.load %arg4[%c0_11, %c0_12] : memref<32x8xbf16, #tpu.memory_space<vmem>>, vector<32x8xbf16>
    tpu.vector_store %arg4[%c0_11, %c0_12], %26 {strides = array<i32>} : memref<32x8xbf16, #tpu.memory_space<vmem>>, vector<32x8xbf16>,
    %c32_i32 = arith.constant 32 : i32
    %28 = arith.muli %arg0, %c32_i32 : i32
    %29 = tpu.iota {dimensions = array<i32: 0>} : vector<32x1xi32>
    %30 = vector.broadcast %28 : i32 to vector<32x1xi32>
    %31 = arith.addi %30, %29 : vector<32x1xi32>
    %c32_i32_13 = arith.constant 32 : i32
    %32 = vector.broadcast %c32_i32_13 : i32 to vector<32x1xi32>
    %33 = arith.cmpi slt, %31, %32 : vector<32x1xi32>
    %34 = vector.broadcast %33 : vector<32x1xi1> to vector<32x16xi1>
    %35 = arith.andi %21, %34 : vector<32x16xi1>
    %cst_14 = arith.constant 1.000000e+00 : f32
    %cst_15 = arith.constant 0.000000e+00 : f32
    %36 = vector.broadcast %cst_14 : f32 to vector<32x16xf32>
    %37 = vector.broadcast %cst_15 : f32 to vector<32x16xf32>
    %38 = arith.select %35, %36, %37 : vector<32x16xi1>, vector<32x16xf32>
    %cst_16 = arith.constant dense<0.000000e+00> : vector<16xf32>
    %39 = vector.multi_reduction <add>, %38, %cst_16 [0] : vector<32x16xf32> to vector<16xf32>
    %40 = vector.shape_cast %39 : vector<16xf32> to vector<1x16xf32>
    %41 = tpu.iota {dimensions = array<i32: 0>} : vector<8x16xi32>
    %c0_i32 = arith.constant 0 : i32
    %42 = vector.broadcast %c0_i32 : i32 to vector<8x16xi32>
    %43 = arith.cmpi eq, %41, %42 : vector<8x16xi32>
    %cst_17 = arith.constant 0.000000e+00 : f32
    %44 = vector.shape_cast %40 : vector<1x16xf32> to vector<1x16xf32>
    %45 = vector.broadcast %44 : vector<1x16xf32> to vector<8x16xf32>
    %46 = vector.broadcast %cst_17 : f32 to vector<8x16xf32>
    %47 = arith.select %43, %45, %46 : vector<8x16xi1>, vector<8x16xf32>
    %c0_18 = arith.constant 0 : index
    %c0_19 = arith.constant 0 : index
    %48 = vector.load %arg6[%c0_18, %c0_19] : memref<8x16xf32, #tpu.memory_space<vmem>>, vector<8x16xf32>
    tpu.vector_store %arg6[%c0_18, %c0_19], %47 {strides = array<i32>} : memref<8x16xf32, #tpu.memory_space<vmem>>, vector<8x16xf32>,
    %49 = arith.subf %25, %0 : vector<32x8xf32>
    %50 = arith.extui %33 : vector<32x1xi1> to vector<32x1xi32>
    %51 = arith.sitofp %50 : vector<32x1xi32> to vector<32x1xf32>
    %52 = vector.broadcast %51 : vector<32x1xf32> to vector<32x8xf32>
    %53 = arith.mulf %49, %52 : vector<32x8xf32>
    %54 = arith.mulf %53, %53 : vector<32x8xf32>
    %55 = vector.shape_cast %54 : vector<32x8xf32> to vector<1x32x8xf32>
    %cst_20 = arith.constant dense<0.000000e+00> : vector<1xf32>
    %56 = vector.multi_reduction <add>, %55, %cst_20 [1, 2] : vector<1x32x8xf32> to vector<1xf32>
    %57 = vector.shape_cast %56 : vector<1xf32> to vector<1x1x1xf32>
    %58 = vector.extract %57[0, 0, 0] : f32 from vector<1x1x1xf32>
    %59 = tpu.iota {dimensions = array<i32: 0>} : vector<8x128xi32>
    %c0_i32_21 = arith.constant 0 : i32
    %60 = vector.broadcast %c0_i32_21 : i32 to vector<8x128xi32>
    %61 = arith.cmpi eq, %59, %60 : vector<8x128xi32>
    %62 = tpu.iota {dimensions = array<i32: 1>} : vector<8x128xi32>
    %c0_i32_22 = arith.constant 0 : i32
    %63 = vector.broadcast %c0_i32_22 : i32 to vector<8x128xi32>
    %64 = arith.cmpi eq, %62, %63 : vector<8x128xi32>
    %65 = arith.andi %61, %64 : vector<8x128xi1>
    %cst_23 = arith.constant 0.000000e+00 : f32
    %66 = vector.broadcast %58 : f32 to vector<8x128xf32>
    %67 = vector.broadcast %cst_23 : f32 to vector<8x128xf32>
    %68 = arith.select %65, %66, %67 : vector<8x128xi1>, vector<8x128xf32>
    %c0_24 = arith.constant 0 : index
    %c0_25 = arith.constant 0 : index
    %69 = vector.load %arg7[%c0_24, %c0_25] : memref<8x128xf32, #tpu.memory_space<vmem>>, vector<8x128xf32>
    tpu.vector_store %arg7[%c0_24, %c0_25], %68 {strides = array<i32>} : memref<8x128xf32, #tpu.memory_space<vmem>>, vector<8x128xf32>,
    return
  }
  func.func @transform_0(%arg0: i32) -> (i32, i32) {
    %c0_i32 = arith.constant 0 : i32
    %c0_i32_0 = arith.constant 0 : i32
    return %arg0, %c0_i32 : i32, i32
  }
  func.func @transform_1(%arg0: i32) -> (i32, i32) {
    %c0_i32 = arith.constant 0 : i32
    %c0_i32_0 = arith.constant 0 : i32
    %c0_i32_1 = arith.constant 0 : i32
    return %c0_i32, %c0_i32_0 : i32, i32
  }
  func.func @transform_2(%arg0: i32) -> (i32, i32) {
    %c0_i32 = arith.constant 0 : i32
    %c0_i32_0 = arith.constant 0 : i32
    %c0_i32_1 = arith.constant 0 : i32
    return %c0_i32, %c0_i32_0 : i32, i32
  }
  func.func @transform_3(%arg0: i32) -> (i32, i32) {
    %c0_i32 = arith.constant 0 : i32
    %c0_i32_0 = arith.constant 0 : i32
    return %arg0, %c0_i32 : i32, i32
  }
  func.func @transform_4(%arg0: i32) -> (i32, i32) {
    %c0_i32 = arith.constant 0 : i32
    %c0_i32_0 = arith.constant 0 : i32
    return %arg0, %c0_i32 : i32, i32
  }
  func.func @transform_5(%arg0: i32) -> (i32, i32) {
    %c0_i32 = arith.constant 0 : i32
    %c0_i32_0 = arith.constant 0 : i32
    return %arg0, %c0_i32 : i32, i32
  }
  func.func @transform_6(%arg0: i32) -> (i32, i32) {
    %c0_i32 = arith.constant 0 : i32
    %c0_i32_0 = arith.constant 0 : i32
    return %arg0, %c0_i32 : i32, i32
  }
}

module attributes {stable_mosaic.version = 11 : i64} {
  func.func @_mm_kernel(%arg0: i32, %arg1: i32, %arg2: i32, %arg3: memref<32x128xbf16, #tpu.memory_space<vmem>>, %arg4: memref<128x128xbf16, #tpu.memory_space<vmem>>, %arg5: memref<1x128xf32, #tpu.memory_space<vmem>>, %arg6: memref<32x128xf32, #tpu.memory_space<vmem>>, %arg7: memref<32x128xf32, #tpu.memory_space<vmem>>) attributes {dimension_semantics = [#tpu.dimension_semantics<parallel>, #tpu.dimension_semantics<parallel>, #tpu.dimension_semantics<arbitrary>], iteration_bounds = array<i64: 1, 1, 1>, scalar_prefetch = 0 : i64, scratch_operands = 1 : i64, tpu.core_type = #tpu.core_type<tc>, window_params = [{transform_indices = @transform_0, window_bounds = array<i64: 32, 128>}, {transform_indices = @transform_1, window_bounds = array<i64: 128, 128>}, {transform_indices = @transform_2, window_bounds = array<i64: 1, 128>}, {transform_indices = @transform_3, window_bounds = array<i64: 32, 128>}]} {
    %c0_i32 = arith.constant 0 : i32
    %0 = arith.cmpi eq, %arg2, %c0_i32 : i32
    %1 = arith.extui %0 : i1 to i32
    %c0_i32_0 = arith.constant 0 : i32
    %2 = arith.cmpi ne, %1, %c0_i32_0 : i32
    scf.if %2 {
      %cst_11 = arith.constant 0.000000e+00 : f32
      %14 = vector.broadcast %cst_11 : f32 to vector<32x128xf32>
      %c0_12 = arith.constant 0 : index
      %c0_13 = arith.constant 0 : index
      %15 = vector.load %arg7[%c0_12, %c0_13] : memref<32x128xf32, #tpu.memory_space<vmem>>, vector<32x128xf32>
      tpu.vector_store %arg7[%c0_12, %c0_13], %14 {strides = array<i32>} : memref<32x128xf32, #tpu.memory_space<vmem>>, vector<32x128xf32>,
    } else {
    }
    %c0 = arith.constant 0 : index
    %c0_1 = arith.constant 0 : index
    %3 = vector.load %arg3[%c0, %c0_1] : memref<32x128xbf16, #tpu.memory_space<vmem>>, vector<32x128xbf16>
    %cst = arith.constant 0.000000e+00 : bf16
    %4 = vector.broadcast %cst : bf16 to vector<32x128xbf16>
    %5 = arith.maximumf %3, %4 : vector<32x128xbf16>
    %c0_2 = arith.constant 0 : index
    %c0_3 = arith.constant 0 : index
    %6 = vector.load %arg7[%c0_2, %c0_3] : memref<32x128xf32, #tpu.memory_space<vmem>>, vector<32x128xf32>
    %c0_4 = arith.constant 0 : index
    %c0_5 = arith.constant 0 : index
    %7 = vector.load %arg4[%c0_4, %c0_5] : memref<128x128xbf16, #tpu.memory_space<vmem>>, vector<128x128xbf16>
    %cst_6 = arith.constant dense<0.000000e+00> : vector<32x128xf32>
    %8 = tpu.matmul %5, %7, %cst_6 {dimension_numbers = #tpu.dot_dimension_numbers<[1], [0], [0], [1], [0, 0, 1, 1], [], []>} : vector<32x128xbf16>, vector<128x128xbf16>, vector<32x128xf32> -> vector<32x128xf32>
    %9 = arith.addf %6, %8 : vector<32x128xf32>
    %c0_7 = arith.constant 0 : index
    %c0_8 = arith.constant 0 : index
    %10 = vector.load %arg7[%c0_7, %c0_8] : memref<32x128xf32, #tpu.memory_space<vmem>>, vector<32x128xf32>
    tpu.vector_store %arg7[%c0_7, %c0_8], %9 {strides = array<i32>} : memref<32x128xf32, #tpu.memory_space<vmem>>, vector<32x128xf32>,
    %c0_i32_9 = arith.constant 0 : i32
    %11 = arith.cmpi eq, %arg2, %c0_i32_9 : i32
    %12 = arith.extui %11 : i1 to i32
    %c0_i32_10 = arith.constant 0 : i32
    %13 = arith.cmpi ne, %12, %c0_i32_10 : i32
    scf.if %13 {
      %c0_11 = arith.constant 0 : index
      %c0_12 = arith.constant 0 : index
      %14 = vector.load %arg7[%c0_11, %c0_12] : memref<32x128xf32, #tpu.memory_space<vmem>>, vector<32x128xf32>
      %c0_13 = arith.constant 0 : index
      %c0_14 = arith.constant 0 : index
      %15 = vector.load %arg5[%c0_13, %c0_14] : memref<1x128xf32, #tpu.memory_space<vmem>>, vector<1x128xf32>
      %16 = vector.broadcast %15 : vector<1x128xf32> to vector<32x128xf32>
      %17 = arith.addf %14, %16 : vector<32x128xf32>
      %c0_15 = arith.constant 0 : index
      %c0_16 = arith.constant 0 : index
      %18 = vector.load %arg6[%c0_15, %c0_16] : memref<32x128xf32, #tpu.memory_space<vmem>>, vector<32x128xf32>
      tpu.vector_store %arg6[%c0_15, %c0_16], %17 {strides = array<i32>} : memref<32x128xf32, #tpu.memory_space<vmem>>, vector<32x128xf32>,
    } else {
    }
    return
  }
  func.func @transform_0(%arg0: i32, %arg1: i32, %arg2: i32) -> (i32, i32) {
    %c0_i32 = arith.constant 0 : i32
    return %arg0, %arg2 : i32, i32
  }
  func.func @transform_1(%arg0: i32, %arg1: i32, %arg2: i32) -> (i32, i32) {
    %c0_i32 = arith.constant 0 : i32
    return %arg2, %arg1 : i32, i32
  }
  func.func @transform_2(%arg0: i32, %arg1: i32, %arg2: i32) -> (i32, i32) {
    %c0_i32 = arith.constant 0 : i32
    %c0_i32_0 = arith.constant 0 : i32
    return %c0_i32, %arg1 : i32, i32
  }
  func.func @transform_3(%arg0: i32, %arg1: i32, %arg2: i32) -> (i32, i32) {
    %c0_i32 = arith.constant 0 : i32
    return %arg0, %arg1 : i32, i32
  }
}

module attributes {stable_mosaic.version = 11 : i64} {
  func.func @_mm_kernel(%arg0: i32, %arg1: i32, %arg2: i32, %arg3: memref<32x128xbf16, #tpu.memory_space<vmem>>, %arg4: memref<128x128xbf16, #tpu.memory_space<vmem>>, %arg5: memref<1x128xf32, #tpu.memory_space<vmem>>, %arg6: memref<32x128xbf16, #tpu.memory_space<vmem>>, %arg7: memref<32x128xf32, #tpu.memory_space<vmem>>) attributes {dimension_semantics = [#tpu.dimension_semantics<parallel>, #tpu.dimension_semantics<parallel>, #tpu.dimension_semantics<arbitrary>], iteration_bounds = array<i64: 1, 1, 1>, scalar_prefetch = 0 : i64, scratch_operands = 1 : i64, tpu.core_type = #tpu.core_type<tc>, window_params = [{transform_indices = @transform_0, window_bounds = array<i64: 32, 128>}, {transform_indices = @transform_1, window_bounds = array<i64: 128, 128>}, {transform_indices = @transform_2, window_bounds = array<i64: 1, 128>}, {transform_indices = @transform_3, window_bounds = array<i64: 32, 128>}]} {
    %c0_i32 = arith.constant 0 : i32
    %0 = arith.cmpi eq, %arg2, %c0_i32 : i32
    %1 = arith.extui %0 : i1 to i32
    %c0_i32_0 = arith.constant 0 : i32
    %2 = arith.cmpi ne, %1, %c0_i32_0 : i32
    scf.if %2 {
      %cst_10 = arith.constant 0.000000e+00 : f32
      %12 = vector.broadcast %cst_10 : f32 to vector<32x128xf32>
      %c0_11 = arith.constant 0 : index
      %c0_12 = arith.constant 0 : index
      %13 = vector.load %arg7[%c0_11, %c0_12] : memref<32x128xf32, #tpu.memory_space<vmem>>, vector<32x128xf32>
      tpu.vector_store %arg7[%c0_11, %c0_12], %12 {strides = array<i32>} : memref<32x128xf32, #tpu.memory_space<vmem>>, vector<32x128xf32>,
    } else {
    }
    %c0 = arith.constant 0 : index
    %c0_1 = arith.constant 0 : index
    %3 = vector.load %arg3[%c0, %c0_1] : memref<32x128xbf16, #tpu.memory_space<vmem>>, vector<32x128xbf16>
    %c0_2 = arith.constant 0 : index
    %c0_3 = arith.constant 0 : index
    %4 = vector.load %arg7[%c0_2, %c0_3] : memref<32x128xf32, #tpu.memory_space<vmem>>, vector<32x128xf32>
    %c0_4 = arith.constant 0 : index
    %c0_5 = arith.constant 0 : index
    %5 = vector.load %arg4[%c0_4, %c0_5] : memref<128x128xbf16, #tpu.memory_space<vmem>>, vector<128x128xbf16>
    %cst = arith.constant dense<0.000000e+00> : vector<32x128xf32>
    %6 = tpu.matmul %3, %5, %cst {dimension_numbers = #tpu.dot_dimension_numbers<[1], [0], [0], [1], [0, 0, 1, 1], [], []>} : vector<32x128xbf16>, vector<128x128xbf16>, vector<32x128xf32> -> vector<32x128xf32>
    %7 = arith.addf %4, %6 : vector<32x128xf32>
    %c0_6 = arith.constant 0 : index
    %c0_7 = arith.constant 0 : index
    %8 = vector.load %arg7[%c0_6, %c0_7] : memref<32x128xf32, #tpu.memory_space<vmem>>, vector<32x128xf32>
    tpu.vector_store %arg7[%c0_6, %c0_7], %7 {strides = array<i32>} : memref<32x128xf32, #tpu.memory_space<vmem>>, vector<32x128xf32>,
    %c0_i32_8 = arith.constant 0 : i32
    %9 = arith.cmpi eq, %arg2, %c0_i32_8 : i32
    %10 = arith.extui %9 : i1 to i32
    %c0_i32_9 = arith.constant 0 : i32
    %11 = arith.cmpi ne, %10, %c0_i32_9 : i32
    scf.if %11 {
      %c0_10 = arith.constant 0 : index
      %c0_11 = arith.constant 0 : index
      %12 = vector.load %arg7[%c0_10, %c0_11] : memref<32x128xf32, #tpu.memory_space<vmem>>, vector<32x128xf32>
      %c0_12 = arith.constant 0 : index
      %c0_13 = arith.constant 0 : index
      %13 = vector.load %arg5[%c0_12, %c0_13] : memref<1x128xf32, #tpu.memory_space<vmem>>, vector<1x128xf32>
      %14 = vector.broadcast %13 : vector<1x128xf32> to vector<32x128xf32>
      %15 = arith.addf %12, %14 : vector<32x128xf32>
      %16 = arith.truncf %15 : vector<32x128xf32> to vector<32x128xbf16>
      %c0_14 = arith.constant 0 : index
      %c0_15 = arith.constant 0 : index
      %17 = vector.load %arg6[%c0_14, %c0_15] : memref<32x128xbf16, #tpu.memory_space<vmem>>, vector<32x128xbf16>
      tpu.vector_store %arg6[%c0_14, %c0_15], %16 {strides = array<i32>} : memref<32x128xbf16, #tpu.memory_space<vmem>>, vector<32x128xbf16>,
    } else {
    }
    return
  }
  func.func @transform_0(%arg0: i32, %arg1: i32, %arg2: i32) -> (i32, i32) {
    %c0_i32 = arith.constant 0 : i32
    return %arg0, %arg2 : i32, i32
  }
  func.func @transform_1(%arg0: i32, %arg1: i32, %arg2: i32) -> (i32, i32) {
    %c0_i32 = arith.constant 0 : i32
    return %arg2, %arg1 : i32, i32
  }
  func.func @transform_2(%arg0: i32, %arg1: i32, %arg2: i32) -> (i32, i32) {
    %c0_i32 = arith.constant 0 : i32
    %c0_i32_0 = arith.constant 0 : i32
    return %c0_i32, %arg1 : i32, i32
  }
  func.func @transform_3(%arg0: i32, %arg1: i32, %arg2: i32) -> (i32, i32) {
    %c0_i32 = arith.constant 0 : i32
    return %arg0, %arg1 : i32, i32
  }
}

module attributes {stable_mosaic.version = 11 : i64} {
  func.func @_mm_kernel(%arg0: i32, %arg1: i32, %arg2: i32, %arg3: memref<32x384xbf16, #tpu.memory_space<vmem>>, %arg4: memref<384x128xbf16, #tpu.memory_space<vmem>>, %arg5: memref<1x128xf32, #tpu.memory_space<vmem>>, %arg6: memref<32x128xbf16, #tpu.memory_space<vmem>>, %arg7: memref<32x128xf32, #tpu.memory_space<vmem>>) attributes {dimension_semantics = [#tpu.dimension_semantics<parallel>, #tpu.dimension_semantics<parallel>, #tpu.dimension_semantics<arbitrary>], iteration_bounds = array<i64: 1, 1, 1>, scalar_prefetch = 0 : i64, scratch_operands = 1 : i64, tpu.core_type = #tpu.core_type<tc>, window_params = [{transform_indices = @transform_0, window_bounds = array<i64: 32, 384>}, {transform_indices = @transform_1, window_bounds = array<i64: 384, 128>}, {transform_indices = @transform_2, window_bounds = array<i64: 1, 128>}, {transform_indices = @transform_3, window_bounds = array<i64: 32, 128>}]} {
    %c0_i32 = arith.constant 0 : i32
    %0 = arith.cmpi eq, %arg2, %c0_i32 : i32
    %1 = arith.extui %0 : i1 to i32
    %c0_i32_0 = arith.constant 0 : i32
    %2 = arith.cmpi ne, %1, %c0_i32_0 : i32
    scf.if %2 {
      %cst_11 = arith.constant 0.000000e+00 : f32
      %14 = vector.broadcast %cst_11 : f32 to vector<32x128xf32>
      %c0_12 = arith.constant 0 : index
      %c0_13 = arith.constant 0 : index
      %15 = vector.load %arg7[%c0_12, %c0_13] : memref<32x128xf32, #tpu.memory_space<vmem>>, vector<32x128xf32>
      tpu.vector_store %arg7[%c0_12, %c0_13], %14 {strides = array<i32>} : memref<32x128xf32, #tpu.memory_space<vmem>>, vector<32x128xf32>,
    } else {
    }
    %c0 = arith.constant 0 : index
    %c0_1 = arith.constant 0 : index
    %3 = vector.load %arg3[%c0, %c0_1] : memref<32x384xbf16, #tpu.memory_space<vmem>>, vector<32x384xbf16>
    %cst = arith.constant 0.000000e+00 : bf16
    %4 = vector.broadcast %cst : bf16 to vector<32x384xbf16>
    %5 = arith.maximumf %3, %4 : vector<32x384xbf16>
    %c0_2 = arith.constant 0 : index
    %c0_3 = arith.constant 0 : index
    %6 = vector.load %arg7[%c0_2, %c0_3] : memref<32x128xf32, #tpu.memory_space<vmem>>, vector<32x128xf32>
    %c0_4 = arith.constant 0 : index
    %c0_5 = arith.constant 0 : index
    %7 = vector.load %arg4[%c0_4, %c0_5] : memref<384x128xbf16, #tpu.memory_space<vmem>>, vector<384x128xbf16>
    %cst_6 = arith.constant dense<0.000000e+00> : vector<32x128xf32>
    %8 = tpu.matmul %5, %7, %cst_6 {dimension_numbers = #tpu.dot_dimension_numbers<[1], [0], [0], [1], [0, 0, 1, 1], [], []>} : vector<32x384xbf16>, vector<384x128xbf16>, vector<32x128xf32> -> vector<32x128xf32>
    %9 = arith.addf %6, %8 : vector<32x128xf32>
    %c0_7 = arith.constant 0 : index
    %c0_8 = arith.constant 0 : index
    %10 = vector.load %arg7[%c0_7, %c0_8] : memref<32x128xf32, #tpu.memory_space<vmem>>, vector<32x128xf32>
    tpu.vector_store %arg7[%c0_7, %c0_8], %9 {strides = array<i32>} : memref<32x128xf32, #tpu.memory_space<vmem>>, vector<32x128xf32>,
    %c0_i32_9 = arith.constant 0 : i32
    %11 = arith.cmpi eq, %arg2, %c0_i32_9 : i32
    %12 = arith.extui %11 : i1 to i32
    %c0_i32_10 = arith.constant 0 : i32
    %13 = arith.cmpi ne, %12, %c0_i32_10 : i32
    scf.if %13 {
      %c0_11 = arith.constant 0 : index
      %c0_12 = arith.constant 0 : index
      %14 = vector.load %arg7[%c0_11, %c0_12] : memref<32x128xf32, #tpu.memory_space<vmem>>, vector<32x128xf32>
      %c0_13 = arith.constant 0 : index
      %c0_14 = arith.constant 0 : index
      %15 = vector.load %arg5[%c0_13, %c0_14] : memref<1x128xf32, #tpu.memory_space<vmem>>, vector<1x128xf32>
      %16 = vector.broadcast %15 : vector<1x128xf32> to vector<32x128xf32>
      %17 = arith.addf %14, %16 : vector<32x128xf32>
      %cst_15 = arith.constant 0.000000e+00 : f32
      %18 = vector.broadcast %cst_15 : f32 to vector<32x128xf32>
      %19 = arith.maximumf %17, %18 : vector<32x128xf32>
      %20 = arith.truncf %19 : vector<32x128xf32> to vector<32x128xbf16>
      %c0_16 = arith.constant 0 : index
      %c0_17 = arith.constant 0 : index
      %21 = vector.load %arg6[%c0_16, %c0_17] : memref<32x128xbf16, #tpu.memory_space<vmem>>, vector<32x128xbf16>
      tpu.vector_store %arg6[%c0_16, %c0_17], %20 {strides = array<i32>} : memref<32x128xbf16, #tpu.memory_space<vmem>>, vector<32x128xbf16>,
    } else {
    }
    return
  }
  func.func @transform_0(%arg0: i32, %arg1: i32, %arg2: i32) -> (i32, i32) {
    %c0_i32 = arith.constant 0 : i32
    return %arg0, %arg2 : i32, i32
  }
  func.func @transform_1(%arg0: i32, %arg1: i32, %arg2: i32) -> (i32, i32) {
    %c0_i32 = arith.constant 0 : i32
    return %arg2, %arg1 : i32, i32
  }
  func.func @transform_2(%arg0: i32, %arg1: i32, %arg2: i32) -> (i32, i32) {
    %c0_i32 = arith.constant 0 : i32
    %c0_i32_0 = arith.constant 0 : i32
    return %c0_i32, %arg1 : i32, i32
  }
  func.func @transform_3(%arg0: i32, %arg1: i32, %arg2: i32) -> (i32, i32) {
    %c0_i32 = arith.constant 0 : i32
    return %arg0, %arg1 : i32, i32
  }
}

module attributes {stable_mosaic.version = 11 : i64} {
  func.func @_mm_kernel(%arg0: i32, %arg1: i32, %arg2: i32, %arg3: memref<128x256xbf16, #tpu.memory_space<vmem>>, %arg4: memref<256x128xbf16, #tpu.memory_space<vmem>>, %arg5: memref<1x128xf32, #tpu.memory_space<vmem>>, %arg6: memref<128x128xf32, #tpu.memory_space<vmem>>, %arg7: memref<128x128xf32, #tpu.memory_space<vmem>>) attributes {dimension_semantics = [#tpu.dimension_semantics<parallel>, #tpu.dimension_semantics<parallel>, #tpu.dimension_semantics<arbitrary>], iteration_bounds = array<i64: 1, 1, 1>, scalar_prefetch = 0 : i64, scratch_operands = 1 : i64, tpu.core_type = #tpu.core_type<tc>, window_params = [{transform_indices = @transform_0, window_bounds = array<i64: 128, 256>}, {transform_indices = @transform_1, window_bounds = array<i64: 256, 128>}, {transform_indices = @transform_2, window_bounds = array<i64: 1, 128>}, {transform_indices = @transform_3, window_bounds = array<i64: 128, 128>}]} {
    %c0_i32 = arith.constant 0 : i32
    %0 = arith.cmpi eq, %arg2, %c0_i32 : i32
    %1 = arith.extui %0 : i1 to i32
    %c0_i32_0 = arith.constant 0 : i32
    %2 = arith.cmpi ne, %1, %c0_i32_0 : i32
    scf.if %2 {
      %cst_10 = arith.constant 0.000000e+00 : f32
      %12 = vector.broadcast %cst_10 : f32 to vector<128x128xf32>
      %c0_11 = arith.constant 0 : index
      %c0_12 = arith.constant 0 : index
      %13 = vector.load %arg7[%c0_11, %c0_12] : memref<128x128xf32, #tpu.memory_space<vmem>>, vector<128x128xf32>
      tpu.vector_store %arg7[%c0_11, %c0_12], %12 {strides = array<i32>} : memref<128x128xf32, #tpu.memory_space<vmem>>, vector<128x128xf32>,
    } else {
    }
    %c0 = arith.constant 0 : index
    %c0_1 = arith.constant 0 : index
    %3 = vector.load %arg3[%c0, %c0_1] : memref<128x256xbf16, #tpu.memory_space<vmem>>, vector<128x256xbf16>
    %c0_2 = arith.constant 0 : index
    %c0_3 = arith.constant 0 : index
    %4 = vector.load %arg7[%c0_2, %c0_3] : memref<128x128xf32, #tpu.memory_space<vmem>>, vector<128x128xf32>
    %c0_4 = arith.constant 0 : index
    %c0_5 = arith.constant 0 : index
    %5 = vector.load %arg4[%c0_4, %c0_5] : memref<256x128xbf16, #tpu.memory_space<vmem>>, vector<256x128xbf16>
    %cst = arith.constant dense<0.000000e+00> : vector<128x128xf32>
    %6 = tpu.matmul %3, %5, %cst {dimension_numbers = #tpu.dot_dimension_numbers<[1], [0], [0], [1], [0, 0, 1, 1], [], []>} : vector<128x256xbf16>, vector<256x128xbf16>, vector<128x128xf32> -> vector<128x128xf32>
    %7 = arith.addf %4, %6 : vector<128x128xf32>
    %c0_6 = arith.constant 0 : index
    %c0_7 = arith.constant 0 : index
    %8 = vector.load %arg7[%c0_6, %c0_7] : memref<128x128xf32, #tpu.memory_space<vmem>>, vector<128x128xf32>
    tpu.vector_store %arg7[%c0_6, %c0_7], %7 {strides = array<i32>} : memref<128x128xf32, #tpu.memory_space<vmem>>, vector<128x128xf32>,
    %c0_i32_8 = arith.constant 0 : i32
    %9 = arith.cmpi eq, %arg2, %c0_i32_8 : i32
    %10 = arith.extui %9 : i1 to i32
    %c0_i32_9 = arith.constant 0 : i32
    %11 = arith.cmpi ne, %10, %c0_i32_9 : i32
    scf.if %11 {
      %c0_10 = arith.constant 0 : index
      %c0_11 = arith.constant 0 : index
      %12 = vector.load %arg7[%c0_10, %c0_11] : memref<128x128xf32, #tpu.memory_space<vmem>>, vector<128x128xf32>
      %c0_12 = arith.constant 0 : index
      %c0_13 = arith.constant 0 : index
      %13 = vector.load %arg5[%c0_12, %c0_13] : memref<1x128xf32, #tpu.memory_space<vmem>>, vector<1x128xf32>
      %14 = vector.broadcast %13 : vector<1x128xf32> to vector<128x128xf32>
      %15 = arith.addf %12, %14 : vector<128x128xf32>
      %c0_14 = arith.constant 0 : index
      %c0_15 = arith.constant 0 : index
      %16 = vector.load %arg6[%c0_14, %c0_15] : memref<128x128xf32, #tpu.memory_space<vmem>>, vector<128x128xf32>
      tpu.vector_store %arg6[%c0_14, %c0_15], %15 {strides = array<i32>} : memref<128x128xf32, #tpu.memory_space<vmem>>, vector<128x128xf32>,
    } else {
    }
    return
  }
  func.func @transform_0(%arg0: i32, %arg1: i32, %arg2: i32) -> (i32, i32) {
    %c0_i32 = arith.constant 0 : i32
    return %arg0, %arg2 : i32, i32
  }
  func.func @transform_1(%arg0: i32, %arg1: i32, %arg2: i32) -> (i32, i32) {
    %c0_i32 = arith.constant 0 : i32
    return %arg2, %arg1 : i32, i32
  }
  func.func @transform_2(%arg0: i32, %arg1: i32, %arg2: i32) -> (i32, i32) {
    %c0_i32 = arith.constant 0 : i32
    %c0_i32_0 = arith.constant 0 : i32
    return %c0_i32, %arg1 : i32, i32
  }
  func.func @transform_3(%arg0: i32, %arg1: i32, %arg2: i32) -> (i32, i32) {
    %c0_i32 = arith.constant 0 : i32
    return %arg0, %arg1 : i32, i32
  }
}

</mosaic_0001>

<llo_original>
// kernel: vqvae_forward.12
$region0: #{vqvae_forward.12}
  #allocation0 [shape = 'u32[]', space=smem, size = 0x4, offset = 0x4, fixed_abs, tag = 'smem constant byte address 0x4 - core index']
  #allocation1 [shape = 'u32[144,128]{1,0:T(1,128)}', space=vmem, size = 0x12000, scoped, tag = 'internal scratch']
  #allocation2 [shape = 'f32[128,128]{1,0:T(8,128)}', space=vmem, size = 0x10000, scoped, tag = 'scratch operand']
  %s0 = inlined_call_operand.hbm [shape: bf16[128,128], index: 0, kind: input, shape index: {}]
  %s1 = inlined_call_operand.hbm [shape: bf16[128,128], index: 1, kind: input, shape index: {}]
  %s2 = inlined_call_operand.hbm [shape: f32[1,128], index: 2, kind: input, shape index: {}]
  %s3 = inlined_call_operand.hbm [shape: bf16[128,128], index: 3, kind: output, shape index: {}]
  %s4 = sld [smem:[#allocation0]]
  $region42: #{vqvae_forward.12} parent=0
    _
  %s6 = ssub.s32 1, %s4
  %s7 = scalar_select 0, %s6, %s4
  $region1: #{vqvae_forward.12} parent=0
    #allocation3 [shape = 'u8[32768]{0}', space=vmem, size = 0x8000, scoped, tag = 'input window, operand 0, single buffered']
    #allocation4 [shape = 's32[1]{0}', space=sflag, size = 0x4, scoped, tag = 'scoped memory for vqvae_forward.12']
    #allocation5 [shape = 's32[1]{0}', space=sflag, size = 0x4, scoped, tag = 'scoped memory for vqvae_forward.12']
    #allocation6 [shape = 'u8[32768]{0}', space=vmem, size = 0x8000, scoped, tag = 'input window, operand 1, single buffered']
    #allocation7 [shape = 's32[1]{0}', space=sflag, size = 0x4, scoped, tag = 'scoped memory for vqvae_forward.12']
    #allocation8 [shape = 'u8[512]{0}', space=vmem, size = 0x400, scoped, tag = 'input window, operand 2, single buffered']
    #allocation9 [shape = 'u8[32768]{0}', space=vmem, size = 0x8000, scoped, tag = 'output window, operand 0, single buffered']
    %8 = vsyncpa [#allocation4], 0
    %9 = vsyncpa [#allocation7], 0
    %10 = vsyncpa [#allocation5], 0
    // Predicated region
    $region2: #{vqvae_forward.12} parent=1 // pred_check
      _
    $region3: #{vqvae_forward.12} parent=1 // pred_check_branch
      %12 = sbr.rel (0) target = $region5
    $region4: #{vqvae_forward.12} parent=1 // pred_region
      %s14 = ssub.s32 1024, 1024
      %15 = vsyncadd [#allocation4], %s14
      %s16 = sshll.u32 [#allocation3], 4
      %s17 = int_to_ptr.vmem [resolvable:$true] %s16
      %22 = dma.hbm_to_vmem [thread:$0]  %s0, 1024, %s17, [#allocation4], 64, 64, 4
    $region5: #{vqvae_forward.12} parent=1 // pred_fallthru
      _
    // Predicated region
    $region6: #{vqvae_forward.12} parent=1 // pred_check
      _
    $region7: #{vqvae_forward.12} parent=1 // pred_check_branch
      %24 = sbr.rel (0) target = $region9
    $region8: #{vqvae_forward.12} parent=1 // pred_region
      %s26 = ssub.s32 1024, 1024
      %27 = vsyncadd [#allocation7], %s26
      %s28 = sshll.u32 [#allocation6], 4
      %s29 = int_to_ptr.vmem [resolvable:$true] %s28
      %34 = dma.hbm_to_vmem [thread:$0]  %s1, 1024, %s29, [#allocation7], 64, 64, 4
    $region9: #{vqvae_forward.12} parent=1 // pred_fallthru
      _
    // Predicated region
    $region10: #{vqvae_forward.12} parent=1 // pred_check
      _
    $region11: #{vqvae_forward.12} parent=1 // pred_check_branch
      %36 = sbr.rel (0) target = $region13
    $region12: #{vqvae_forward.12} parent=1 // pred_region
      %s38 = ssub.s32 16, 16
      %39 = vsyncadd [#allocation7], %s38
      %s41 = sshll.u32 [#allocation8], 4
      %s42 = int_to_ptr.vmem [resolvable:$true] %s41
      %44 = dma.hbm_to_vmem [thread:$0]  %s2, 16, %s42, [#allocation7]
    $region13: #{vqvae_forward.12} parent=1 // pred_fallthru
      _
    // Predicated region
    $region14: #{vqvae_forward.12} parent=1 // pred_check
      _
    $region15: #{vqvae_forward.12} parent=1 // pred_check_branch
      %46 = sbr.rel (0) target = $region17
    $region16: #{vqvae_forward.12} parent=1 // pred_region
      %47 = dma.done [#allocation4], 1024
    $region17: #{vqvae_forward.12} parent=1 // pred_fallthru
      _
    // Predicated region
    $region18: #{vqvae_forward.12} parent=1 // pred_check
      _
    $region19: #{vqvae_forward.12} parent=1 // pred_check_branch
      %49 = sbr.rel (0) target = $region21
    $region20: #{vqvae_forward.12} parent=1 // pred_region
      %50 = dma.done [#allocation7], 1024
    $region21: #{vqvae_forward.12} parent=1 // pred_fallthru
      _
    // Predicated region
    $region22: #{vqvae_forward.12} parent=1 // pred_check
      _
    $region23: #{vqvae_forward.12} parent=1 // pred_check_branch
      %52 = sbr.rel (0) target = $region25
    $region24: #{vqvae_forward.12} parent=1 // pred_region
      %53 = dma.done [#allocation7], 16
    $region25: #{vqvae_forward.12} parent=1 // pred_fallthru
      _
    %p55 = scmp.eq.s32.totalorder 0, 0
    // Predicated region
    $region26: #{vqvae_forward.12} parent=1 // pred_check
      %p56 = pneg %p55
    $region27: #{vqvae_forward.12} parent=1 // pred_check_branch
      %58 = sbr.rel (%p56) target = $region29
    $region28: #{vqvae_forward.12} parent=1 // pred_region
      %59 = vst [vmem:[#allocation2] sm:$0xff] 0.0
      %60 = vst [vmem:[#allocation2 + $0x8] sm:$0xff] 0.0
      %61 = vst [vmem:[#allocation2 + $0x10] sm:$0xff] 0.0
      %62 = vst [vmem:[#allocation2 + $0x18] sm:$0xff] 0.0
      %63 = vst [vmem:[#allocation2 + $0x20] sm:$0xff] 0.0
      %64 = vst [vmem:[#allocation2 + $0x28] sm:$0xff] 0.0
      %65 = vst [vmem:[#allocation2 + $0x30] sm:$0xff] 0.0
      %66 = vst [vmem:[#allocation2 + $0x38] sm:$0xff] 0.0
      %67 = vst [vmem:[#allocation2 + $0x40] sm:$0xff] 0.0
      %68 = vst [vmem:[#allocation2 + $0x48] sm:$0xff] 0.0
      %69 = vst [vmem:[#allocation2 + $0x50] sm:$0xff] 0.0
      %70 = vst [vmem:[#allocation2 + $0x58] sm:$0xff] 0.0
      %71 = vst [vmem:[#allocation2 + $0x60] sm:$0xff] 0.0
      %72 = vst [vmem:[#allocation2 + $0x68] sm:$0xff] 0.0
      %73 = vst [vmem:[#allocation2 + $0x70] sm:$0xff] 0.0
      %74 = vst [vmem:[#allocation2 + $0x78] sm:$0xff] 0.0
    $region29: #{vqvae_forward.12} parent=1 // pred_fallthru
      _
    %v75 = vld [vmem:[#allocation3] sm:$0xf]
    %v76 = vld [vmem:[#allocation3 + $0x4] sm:$0xf]
    %v77 = vld [vmem:[#allocation3 + $0x8] sm:$0xf]
    %v78 = vld [vmem:[#allocation3 + $0xc] sm:$0xf]
    %v79 = vld [vmem:[#allocation3 + $0x10] sm:$0xf]
    %v80 = vld [vmem:[#allocation3 + $0x14] sm:$0xf]
    %v81 = vld [vmem:[#allocation3 + $0x18] sm:$0xf]
    %v82 = vld [vmem:[#allocation3 + $0x1c] sm:$0xf]
    %v83 = vld [vmem:[#allocation3 + $0x20] sm:$0xf]
    %v84 = vld [vmem:[#allocation3 + $0x24] sm:$0xf]
    %v85 = vld [vmem:[#allocation3 + $0x28] sm:$0xf]
    %v86 = vld [vmem:[#allocation3 + $0x2c] sm:$0xf]
    %v87 = vld [vmem:[#allocation3 + $0x30] sm:$0xf]
    %v88 = vld [vmem:[#allocation3 + $0x34] sm:$0xf]
    %v89 = vld [vmem:[#allocation3 + $0x38] sm:$0xf]
    %v90 = vld [vmem:[#allocation3 + $0x3c] sm:$0xf]
    %v91 = vld [vmem:[#allocation2] sm:$0xff]
    %v92 = vld [vmem:[#allocation2 + $0x8] sm:$0xff]
    %v93 = vld [vmem:[#allocation2 + $0x10] sm:$0xff]
    %v94 = vld [vmem:[#allocation2 + $0x18] sm:$0xff]
    %v95 = vld [vmem:[#allocation2 + $0x20] sm:$0xff]
    %v96 = vld [vmem:[#allocation2 + $0x28] sm:$0xff]
    %v97 = vld [vmem:[#allocation2 + $0x30] sm:$0xff]
    %v98 = vld [vmem:[#allocation2 + $0x38] sm:$0xff]
    %v99 = vld [vmem:[#allocation2 + $0x40] sm:$0xff]
    %v100 = vld [vmem:[#allocation2 + $0x48] sm:$0xff]
    %v101 = vld [vmem:[#allocation2 + $0x50] sm:$0xff]
    %v102 = vld [vmem:[#allocation2 + $0x58] sm:$0xff]
    %v103 = vld [vmem:[#allocation2 + $0x60] sm:$0xff]
    %v104 = vld [vmem:[#allocation2 + $0x68] sm:$0xff]
    %v105 = vld [vmem:[#allocation2 + $0x70] sm:$0xff]
    %v106 = vld [vmem:[#allocation2 + $0x78] sm:$0xff]
    %v107 = vld [vmem:[#allocation6] sm:$0xf]
    %v108 = vld [vmem:[#allocation6 + $0x4] sm:$0xf]
    %v109 = vld [vmem:[#allocation6 + $0x8] sm:$0xf]
    %v110 = vld [vmem:[#allocation6 + $0xc] sm:$0xf]
    %v111 = vld [vmem:[#allocation6 + $0x10] sm:$0xf]
    %v112 = vld [vmem:[#allocation6 + $0x14] sm:$0xf]
    %v113 = vld [vmem:[#allocation6 + $0x18] sm:$0xf]
    %v114 = vld [vmem:[#allocation6 + $0x1c] sm:$0xf]
    %v115 = vld [vmem:[#allocation6 + $0x20] sm:$0xf]
    %v116 = vld [vmem:[#allocation6 + $0x24] sm:$0xf]
    %v117 = vld [vmem:[#allocation6 + $0x28] sm:$0xf]
    %v118 = vld [vmem:[#allocation6 + $0x2c] sm:$0xf]
    %v119 = vld [vmem:[#allocation6 + $0x30] sm:$0xf]
    %v120 = vld [vmem:[#allocation6 + $0x34] sm:$0xf]
    %v121 = vld [vmem:[#allocation6 + $0x38] sm:$0xf]
    %v122 = vld [vmem:[#allocation6 + $0x3c] sm:$0xf]
    %v139 = vunpack.c.l.b16 %v75
    %v140 = vunpack.c.l.b16 %v76
    %v141 = vunpack.c.l.b16 %v77
    %v142 = vunpack.c.l.b16 %v78
    %v143 = vunpack.c.l.b16 %v79
    %v144 = vunpack.c.l.b16 %v80
    %v145 = vunpack.c.l.b16 %v81
    %v146 = vunpack.c.l.b16 %v82
    %v147 = vunpack.c.l.b16 %v83
    %v148 = vunpack.c.l.b16 %v84
    %v149 = vunpack.c.l.b16 %v85
    %v150 = vunpack.c.l.b16 %v86
    %v151 = vunpack.c.l.b16 %v87
    %v152 = vunpack.c.l.b16 %v88
    %v153 = vunpack.c.l.b16 %v89
    %v154 = vunpack.c.l.b16 %v90
    %v155 = vpack.c.b16 %v140, %v139
    %v156 = vpack.c.b16 %v142, %v141
    %v157 = vpack.c.b16 %v144, %v143
    %v158 = vpack.c.b16 %v146, %v145
    %v159 = vpack.c.b16 %v148, %v147
    %v160 = vpack.c.b16 %v150, %v149
    %v161 = vpack.c.b16 %v152, %v151
    %v162 = vpack.c.b16 %v154, %v153
    %v187 = vunpack.c.l.b16 %v107
    %v188 = vunpack.c.l.b16 %v108
    %v189 = vunpack.c.l.b16 %v109
    %v190 = vunpack.c.l.b16 %v110
    %v191 = vunpack.c.l.b16 %v111
    %v192 = vunpack.c.l.b16 %v112
    %v193 = vunpack.c.l.b16 %v113
    %v194 = vunpack.c.l.b16 %v114
    %v195 = vunpack.c.l.b16 %v115
    %v196 = vunpack.c.l.b16 %v116
    %v197 = vunpack.c.l.b16 %v117
    %v198 = vunpack.c.l.b16 %v118
    %v199 = vunpack.c.l.b16 %v119
    %v200 = vunpack.c.l.b16 %v120
    %v201 = vunpack.c.l.b16 %v121
    %v202 = vunpack.c.l.b16 %v122
    %v203 = vpack.c.b16 %v188, %v187
    %v204 = vpack.c.b16 %v190, %v189
    %v205 = vpack.c.b16 %v192, %v191
    %v206 = vpack.c.b16 %v194, %v193
    %v207 = vpack.c.b16 %v196, %v195
    %v208 = vpack.c.b16 %v198, %v197
    %v209 = vpack.c.b16 %v200, %v199
    %v210 = vpack.c.b16 %v202, %v201
    %219 = vmatprep.subr.bf16.mxu0 0
    %220 = vmatpush1.bf16.msra.mxu0 %v203
    %221 = vmatprep.subr.bf16.mxu0 0
    %222 = vmatpush1.bf16.msra.mxu0 %v204
    %223 = vmatprep.subr.bf16.mxu0 0
    %224 = vmatpush1.bf16.msra.mxu0 %v205
    %225 = vmatprep.subr.bf16.mxu0 0
    %226 = vmatpush1.bf16.msra.mxu0 %v206
    %227 = vmatprep.subr.bf16.mxu0 0
    %228 = vmatpush1.bf16.msra.mxu0 %v207
    %229 = vmatprep.subr.bf16.mxu0 0
    %230 = vmatpush1.bf16.msra.mxu0 %v208
    %231 = vmatprep.subr.bf16.mxu0 0
    %232 = vmatpush1.bf16.msra.mxu0 %v209
    %233 = vmatprep.subr.bf16.mxu0 0
    %234 = vmatpush1.bf16.msra.mxu0 %v210
    %235 = vmatprep.subr.bf16.mxu0 0
    %236 = vmatpush1.bf16.msra.mxu0 0
    %237 = vmatprep.subr.bf16.mxu0 0
    %238 = vmatpush1.bf16.msra.mxu0 0
    %239 = vmatprep.subr.bf16.mxu0 0
    %240 = vmatpush1.bf16.msra.mxu0 0
    %241 = vmatprep.subr.bf16.mxu0 0
    %242 = vmatpush1.bf16.msra.mxu0 0
    %243 = vmatprep.subr.bf16.mxu0 0
    %244 = vmatpush1.bf16.msra.mxu0 0
    %245 = vmatprep.subr.bf16.mxu0 0
    %246 = vmatpush1.bf16.msra.mxu0 0
    %247 = vmatprep.subr.bf16.mxu0 0
    %248 = vmatpush1.bf16.msra.mxu0 0
    %249 = vmatprep.subr.bf16.mxu0 0
    %250 = vmatpush1.bf16.msra.mxu0 0
    %251 = vmatprep.mubr.bf16.mxu0 0
    %252 = vmatmul.mubr.bf16.gmra.mrb[0].mxu0 %v155
    %v253 = vpop.f32.mrb[0].mxu0
    %v254 = vadd.f32 0.0, %v253
    %v255 = vpop.f32.mrb[0].mxu0
    %v256 = vpop.f32.mrb[0].mxu0
    %v257 = vadd.f32 0.0, %v256
    %v258 = vpop.f32.mrb[0].mxu0
    %259 = vmatprep.mubr.bf16.mxu0 0
    %260 = vmatmul.mubr.bf16.gmra.mrb[0].mxu0 %v156
    %v261 = vpop.f32.mrb[0].mxu0
    %v262 = vadd.f32 0.0, %v261
    %v263 = vpop.f32.mrb[0].mxu0
    %v264 = vpop.f32.mrb[0].mxu0
    %v265 = vadd.f32 0.0, %v264
    %v266 = vpop.f32.mrb[0].mxu0
    %267 = vmatprep.mubr.bf16.mxu0 0
    %268 = vmatmul.mubr.bf16.gmra.mrb[0].mxu0 %v157
    %v269 = vpop.f32.mrb[0].mxu0
    %v270 = vadd.f32 0.0, %v269
    %v271 = vpop.f32.mrb[0].mxu0
    %v272 = vpop.f32.mrb[0].mxu0
    %v273 = vadd.f32 0.0, %v272
    %v274 = vpop.f32.mrb[0].mxu0
    %275 = vmatprep.mubr.bf16.mxu0 0
    %276 = vmatmul.mubr.bf16.gmra.mrb[0].mxu0 %v158
    %v277 = vpop.f32.mrb[0].mxu0
    %v278 = vadd.f32 0.0, %v277
    %v279 = vpop.f32.mrb[0].mxu0
    %v280 = vpop.f32.mrb[0].mxu0
    %v281 = vadd.f32 0.0, %v280
    %v282 = vpop.f32.mrb[0].mxu0
    %283 = vmatprep.mubr.bf16.mxu0 0
    %284 = vmatmul.mubr.bf16.gmra.mrb[0].mxu0 %v159
    %v285 = vpop.f32.mrb[0].mxu0
    %v286 = vadd.f32 0.0, %v285
    %v287 = vpop.f32.mrb[0].mxu0
    %v288 = vpop.f32.mrb[0].mxu0
    %v289 = vadd.f32 0.0, %v288
    %v290 = vpop.f32.mrb[0].mxu0
    %291 = vmatprep.mubr.bf16.mxu0 0
    %292 = vmatmul.mubr.bf16.gmra.mrb[0].mxu0 %v160
    %v293 = vpop.f32.mrb[0].mxu0
    %v294 = vadd.f32 0.0, %v293
    %v295 = vpop.f32.mrb[0].mxu0
    %v296 = vpop.f32.mrb[0].mxu0
    %v297 = vadd.f32 0.0, %v296
    %v298 = vpop.f32.mrb[0].mxu0
    %299 = vmatprep.mubr.bf16.mxu0 0
    %300 = vmatmul.mubr.bf16.gmra.mrb[0].mxu0 %v161
    %v301 = vpop.f32.mrb[0].mxu0
    %v302 = vadd.f32 0.0, %v301
    %v303 = vpop.f32.mrb[0].mxu0
    %v304 = vpop.f32.mrb[0].mxu0
    %v305 = vadd.f32 0.0, %v304
    %v306 = vpop.f32.mrb[0].mxu0
    %307 = vmatprep.mubr.bf16.mxu0 0
    %308 = vmatmul.mubr.bf16.gmra.mrb[0].mxu0 %v162
    %v309 = vpop.f32.mrb[0].mxu0
    %v310 = vadd.f32 0.0, %v309
    %v311 = vpop.f32.mrb[0].mxu0
    %v312 = vpop.f32.mrb[0].mxu0
    %v313 = vadd.f32 0.0, %v312
    %v314 = vpop.f32.mrb[0].mxu0
    %315 = vdwg.mxu0
    %v316 = vadd.f32 %v91, %v254
    %v317 = vadd.f32 %v92, %v257
    %v318 = vadd.f32 %v93, %v262
    %v319 = vadd.f32 %v94, %v265
    %v320 = vadd.f32 %v95, %v270
    %v321 = vadd.f32 %v96, %v273
    %v322 = vadd.f32 %v97, %v278
    %v323 = vadd.f32 %v98, %v281
    %v324 = vadd.f32 %v99, %v286
    %v325 = vadd.f32 %v100, %v289
    %v326 = vadd.f32 %v101, %v294
    %v327 = vadd.f32 %v102, %v297
    %v328 = vadd.f32 %v103, %v302
    %v329 = vadd.f32 %v104, %v305
    %v330 = vadd.f32 %v105, %v310
    %v331 = vadd.f32 %v106, %v313
    %332 = vst [vmem:[#allocation2] sm:$0xff] %v316
    %333 = vst [vmem:[#allocation2 + $0x8] sm:$0xff] %v317
    %334 = vst [vmem:[#allocation2 + $0x10] sm:$0xff] %v318
    %335 = vst [vmem:[#allocation2 + $0x18] sm:$0xff] %v319
    %336 = vst [vmem:[#allocation2 + $0x20] sm:$0xff] %v320
    %337 = vst [vmem:[#allocation2 + $0x28] sm:$0xff] %v321
    %338 = vst [vmem:[#allocation2 + $0x30] sm:$0xff] %v322
    %339 = vst [vmem:[#allocation2 + $0x38] sm:$0xff] %v323
    %340 = vst [vmem:[#allocation2 + $0x40] sm:$0xff] %v324
    %341 = vst [vmem:[#allocation2 + $0x48] sm:$0xff] %v325
    %342 = vst [vmem:[#allocation2 + $0x50] sm:$0xff] %v326
    %343 = vst [vmem:[#allocation2 + $0x58] sm:$0xff] %v327
    %344 = vst [vmem:[#allocation2 + $0x60] sm:$0xff] %v328
    %345 = vst [vmem:[#allocation2 + $0x68] sm:$0xff] %v329
    %346 = vst [vmem:[#allocation2 + $0x70] sm:$0xff] %v330
    %347 = vst [vmem:[#allocation2 + $0x78] sm:$0xff] %v331
    // Predicated region
    $region30: #{vqvae_forward.12} parent=1 // pred_check
      %p348 = pneg %p55
    $region31: #{vqvae_forward.12} parent=1 // pred_check_branch
      %350 = sbr.rel (%p348) target = $region33
    $region32: #{vqvae_forward.12} parent=1 // pred_region
      %v351 = vld [vmem:[#allocation2] sm:$0xff]
      %v352 = vld [vmem:[#allocation2 + $0x8] sm:$0xff]
      %v353 = vld [vmem:[#allocation2 + $0x10] sm:$0xff]
      %v354 = vld [vmem:[#allocation2 + $0x18] sm:$0xff]
      %v355 = vld [vmem:[#allocation2 + $0x20] sm:$0xff]
      %v356 = vld [vmem:[#allocation2 + $0x28] sm:$0xff]
      %v357 = vld [vmem:[#allocation2 + $0x30] sm:$0xff]
      %v358 = vld [vmem:[#allocation2 + $0x38] sm:$0xff]
      %v359 = vld [vmem:[#allocation2 + $0x40] sm:$0xff]
      %v360 = vld [vmem:[#allocation2 + $0x48] sm:$0xff]
      %v361 = vld [vmem:[#allocation2 + $0x50] sm:$0xff]
      %v362 = vld [vmem:[#allocation2 + $0x58] sm:$0xff]
      %v363 = vld [vmem:[#allocation2 + $0x60] sm:$0xff]
      %v364 = vld [vmem:[#allocation2 + $0x68] sm:$0xff]
      %v365 = vld [vmem:[#allocation2 + $0x70] sm:$0xff]
      %v366 = vld [vmem:[#allocation2 + $0x78] sm:$0xff]
      %v367 = vld [vmem:[#allocation8] sm:$0x1]
      %v369 = vlaneseq
      %v370 = vshrl.u32 %v369, 7
      %v371 = vsub.s32 0, %v370
      %v372 = vrot.slane %v367, %v371
      %v374 = vadd.f32 %v351, %v372
      %v375 = vadd.f32 %v352, %v372
      %v376 = vadd.f32 %v353, %v372
      %v377 = vadd.f32 %v354, %v372
      %v378 = vadd.f32 %v355, %v372
      %v379 = vadd.f32 %v356, %v372
      %v380 = vadd.f32 %v357, %v372
      %v381 = vadd.f32 %v358, %v372
      %v382 = vadd.f32 %v359, %v372
      %v383 = vadd.f32 %v360, %v372
      %v384 = vadd.f32 %v361, %v372
      %v385 = vadd.f32 %v362, %v372
      %v386 = vadd.f32 %v363, %v372
      %v387 = vadd.f32 %v364, %v372
      %v388 = vadd.f32 %v365, %v372
      %v389 = vadd.f32 %v366, %v372
      %v390 = vmax.f32 %v374, 0.0
      %v391 = vmax.f32 %v375, 0.0
      %v392 = vmax.f32 %v376, 0.0
      %v393 = vmax.f32 %v377, 0.0
      %v394 = vmax.f32 %v378, 0.0
      %v395 = vmax.f32 %v379, 0.0
      %v396 = vmax.f32 %v380, 0.0
      %v397 = vmax.f32 %v381, 0.0
      %v398 = vmax.f32 %v382, 0.0
      %v399 = vmax.f32 %v383, 0.0
      %v400 = vmax.f32 %v384, 0.0
      %v401 = vmax.f32 %v385, 0.0
      %v402 = vmax.f32 %v386, 0.0
      %v403 = vmax.f32 %v387, 0.0
      %v404 = vmax.f32 %v388, 0.0
      %v405 = vmax.f32 %v389, 0.0
      %v406 = vpack.c.bf16 %v391, %v390
      %v407 = vpack.c.bf16 %v393, %v392
      %v408 = vpack.c.bf16 %v395, %v394
      %v409 = vpack.c.bf16 %v397, %v396
      %v410 = vpack.c.bf16 %v399, %v398
      %v411 = vpack.c.bf16 %v401, %v400
      %v412 = vpack.c.bf16 %v403, %v402
      %v413 = vpack.c.bf16 %v405, %v404
      %v422 = vunpack.c.l.b16 %v406
      %v423 = vunpack.c.h.b16 %v406
      %v424 = vunpack.c.l.b16 %v407
      %v425 = vunpack.c.h.b16 %v407
      %v426 = vunpack.c.l.b16 %v408
      %v427 = vunpack.c.h.b16 %v408
      %v428 = vunpack.c.l.b16 %v409
      %v429 = vunpack.c.h.b16 %v409
      %v430 = vunpack.c.l.b16 %v410
      %v431 = vunpack.c.h.b16 %v410
      %v432 = vunpack.c.l.b16 %v411
      %v433 = vunpack.c.h.b16 %v411
      %v434 = vunpack.c.l.b16 %v412
      %v435 = vunpack.c.h.b16 %v412
      %v436 = vunpack.c.l.b16 %v413
      %v437 = vunpack.c.h.b16 %v413
      %v438 = vpack.c.b16 %v422, %v422
      %v439 = vpack.c.b16 %v423, %v423
      %v440 = vpack.c.b16 %v424, %v424
      %v441 = vpack.c.b16 %v425, %v425
      %v442 = vpack.c.b16 %v426, %v426
      %v443 = vpack.c.b16 %v427, %v427
      %v444 = vpack.c.b16 %v428, %v428
      %v445 = vpack.c.b16 %v429, %v429
      %v446 = vpack.c.b16 %v430, %v430
      %v447 = vpack.c.b16 %v431, %v431
      %v448 = vpack.c.b16 %v432, %v432
      %v449 = vpack.c.b16 %v433, %v433
      %v450 = vpack.c.b16 %v434, %v434
      %v451 = vpack.c.b16 %v435, %v435
      %v452 = vpack.c.b16 %v436, %v436
      %v453 = vpack.c.b16 %v437, %v437
      %470 = vst [vmem:[#allocation9] sm:$0xf] %v438
      %471 = vst [vmem:[#allocation9 + $0x4] sm:$0xf] %v439
      %472 = vst [vmem:[#allocation9 + $0x8] sm:$0xf] %v440
      %473 = vst [vmem:[#allocation9 + $0xc] sm:$0xf] %v441
      %474 = vst [vmem:[#allocation9 + $0x10] sm:$0xf] %v442
      %475 = vst [vmem:[#allocation9 + $0x14] sm:$0xf] %v443
      %476 = vst [vmem:[#allocation9 + $0x18] sm:$0xf] %v444
      %477 = vst [vmem:[#allocation9 + $0x1c] sm:$0xf] %v445
      %478 = vst [vmem:[#allocation9 + $0x20] sm:$0xf] %v446
      %479 = vst [vmem:[#allocation9 + $0x24] sm:$0xf] %v447
      %480 = vst [vmem:[#allocation9 + $0x28] sm:$0xf] %v448
      %481 = vst [vmem:[#allocation9 + $0x2c] sm:$0xf] %v449
      %482 = vst [vmem:[#allocation9 + $0x30] sm:$0xf] %v450
      %483 = vst [vmem:[#allocation9 + $0x34] sm:$0xf] %v451
      %484 = vst [vmem:[#allocation9 + $0x38] sm:$0xf] %v452
      %485 = vst [vmem:[#allocation9 + $0x3c] sm:$0xf] %v453
    $region33: #{vqvae_forward.12} parent=1 // pred_fallthru
      _
    // Predicated region
    $region34: #{vqvae_forward.12} parent=1 // pred_check
      _
    $region35: #{vqvae_forward.12} parent=1 // pred_check_branch
      %487 = sbr.rel (0) target = $region37
    $region36: #{vqvae_forward.12} parent=1 // pred_region
      %s489 = ssub.s32 1024, 1024
      %490 = vsyncadd [#allocation5], %s489
      %s491 = sshll.u32 [#allocation9], 4
      %s492 = int_to_ptr.vmem [resolvable:$true] %s491
      %497 = dma.vmem_to_hbm [thread:$0]  %s492, 1024, %s3, [#allocation5], 64, 64, 4
    $region37: #{vqvae_forward.12} parent=1 // pred_fallthru
      _
    // Predicated region
    $region38: #{vqvae_forward.12} parent=1 // pred_check
      _
    $region39: #{vqvae_forward.12} parent=1 // pred_check_branch
      %499 = sbr.rel (0) target = $region41
    $region40: #{vqvae_forward.12} parent=1 // pred_region
      %500 = dma.done [#allocation5], 1024
    $region41: #{vqvae_forward.12} parent=1 // pred_fallthru
      _
    %501 = vsyncpa [#allocation4], 1
    %502 = vsyncpa [#allocation7], 1
    %503 = vsyncpa [#allocation5], 1

// kernel: vqvae_forward.13
$region0: #{vqvae_forward.13}
  #allocation0 [shape = 'u32[]', space=smem, size = 0x4, offset = 0x4, fixed_abs, tag = 'smem constant byte address 0x4 - core index']
  #allocation1 [shape = 'u32[144,128]{1,0:T(1,128)}', space=vmem, size = 0x12000, scoped, tag = 'internal scratch']
  #allocation2 [shape = 'f32[32,128]{1,0:T(8,128)}', space=vmem, size = 0x4000, scoped, tag = 'scratch operand']
  %s0 = inlined_call_operand.hbm [shape: bf16[32,256], index: 0, kind: input, shape index: {}]
  %s1 = inlined_call_operand.hbm [shape: bf16[256,128], index: 1, kind: input, shape index: {}]
  %s2 = inlined_call_operand.hbm [shape: f32[1,128], index: 2, kind: input, shape index: {}]
  %s3 = inlined_call_operand.hbm [shape: bf16[32,128], index: 3, kind: output, shape index: {}]
  %s4 = sld [smem:[#allocation0]]
  $region42: #{vqvae_forward.13} parent=0
    _
  %s6 = ssub.s32 1, %s4
  %s7 = scalar_select 0, %s6, %s4
  $region1: #{vqvae_forward.13} parent=0
    #allocation3 [shape = 'u8[16384]{0}', space=vmem, size = 0x4000, scoped, tag = 'input window, operand 0, single buffered']
    #allocation4 [shape = 's32[1]{0}', space=sflag, size = 0x4, scoped, tag = 'scoped memory for vqvae_forward.13']
    #allocation5 [shape = 's32[1]{0}', space=sflag, size = 0x4, scoped, tag = 'scoped memory for vqvae_forward.13']
    #allocation6 [shape = 'u8[65536]{0}', space=vmem, size = 0x10000, scoped, tag = 'input window, operand 1, single buffered']
    #allocation7 [shape = 's32[1]{0}', space=sflag, size = 0x4, scoped, tag = 'scoped memory for vqvae_forward.13']
    #allocation8 [shape = 'u8[512]{0}', space=vmem, size = 0x400, scoped, tag = 'input window, operand 2, single buffered']
    #allocation9 [shape = 'u8[8192]{0}', space=vmem, size = 0x2000, scoped, tag = 'output window, operand 0, single buffered']
    %8 = vsyncpa [#allocation4], 0
    %9 = vsyncpa [#allocation7], 0
    %10 = vsyncpa [#allocation5], 0
    // Predicated region
    $region2: #{vqvae_forward.13} parent=1 // pred_check
      _
    $region3: #{vqvae_forward.13} parent=1 // pred_check_branch
      %12 = sbr.rel (0) target = $region5
    $region4: #{vqvae_forward.13} parent=1 // pred_region
      %s14 = ssub.s32 512, 512
      %15 = vsyncadd [#allocation4], %s14
      %s16 = sshll.u32 [#allocation3], 4
      %s17 = int_to_ptr.vmem [resolvable:$true] %s16
      %22 = dma.hbm_to_vmem [thread:$0]  %s0, 512, %s17, [#allocation4], 128, 128, 8
    $region5: #{vqvae_forward.13} parent=1 // pred_fallthru
      _
    // Predicated region
    $region6: #{vqvae_forward.13} parent=1 // pred_check
      _
    $region7: #{vqvae_forward.13} parent=1 // pred_check_branch
      %24 = sbr.rel (0) target = $region9
    $region8: #{vqvae_forward.13} parent=1 // pred_region
      %s26 = ssub.s32 2048, 2048
      %27 = vsyncadd [#allocation7], %s26
      %s28 = sshll.u32 [#allocation6], 4
      %s29 = int_to_ptr.vmem [resolvable:$true] %s28
      %34 = dma.hbm_to_vmem [thread:$0]  %s1, 2048, %s29, [#allocation7], 64, 64, 4
    $region9: #{vqvae_forward.13} parent=1 // pred_fallthru
      _
    // Predicated region
    $region10: #{vqvae_forward.13} parent=1 // pred_check
      _
    $region11: #{vqvae_forward.13} parent=1 // pred_check_branch
      %36 = sbr.rel (0) target = $region13
    $region12: #{vqvae_forward.13} parent=1 // pred_region
      %s38 = ssub.s32 16, 16
      %39 = vsyncadd [#allocation7], %s38
      %s41 = sshll.u32 [#allocation8], 4
      %s42 = int_to_ptr.vmem [resolvable:$true] %s41
      %44 = dma.hbm_to_vmem [thread:$0]  %s2, 16, %s42, [#allocation7]
    $region13: #{vqvae_forward.13} parent=1 // pred_fallthru
      _
    // Predicated region
    $region14: #{vqvae_forward.13} parent=1 // pred_check
      _
    $region15: #{vqvae_forward.13} parent=1 // pred_check_branch
      %46 = sbr.rel (0) target = $region17
    $region16: #{vqvae_forward.13} parent=1 // pred_region
      %47 = dma.done [#allocation4], 512
    $region17: #{vqvae_forward.13} parent=1 // pred_fallthru
      _
    // Predicated region
    $region18: #{vqvae_forward.13} parent=1 // pred_check
      _
    $region19: #{vqvae_forward.13} parent=1 // pred_check_branch
      %49 = sbr.rel (0) target = $region21
    $region20: #{vqvae_forward.13} parent=1 // pred_region
      %50 = dma.done [#allocation7], 2048
    $region21: #{vqvae_forward.13} parent=1 // pred_fallthru
      _
    // Predicated region
    $region22: #{vqvae_forward.13} parent=1 // pred_check
      _
    $region23: #{vqvae_forward.13} parent=1 // pred_check_branch
      %52 = sbr.rel (0) target = $region25
    $region24: #{vqvae_forward.13} parent=1 // pred_region
      %53 = dma.done [#allocation7], 16
    $region25: #{vqvae_forward.13} parent=1 // pred_fallthru
      _
    %p55 = scmp.eq.s32.totalorder 0, 0
    // Predicated region
    $region26: #{vqvae_forward.13} parent=1 // pred_check
      %p56 = pneg %p55
    $region27: #{vqvae_forward.13} parent=1 // pred_check_branch
      %58 = sbr.rel (%p56) target = $region29
    $region28: #{vqvae_forward.13} parent=1 // pred_region
      %59 = vst [vmem:[#allocation2] sm:$0xff] 0.0
      %60 = vst [vmem:[#allocation2 + $0x8] sm:$0xff] 0.0
      %61 = vst [vmem:[#allocation2 + $0x10] sm:$0xff] 0.0
      %62 = vst [vmem:[#allocation2 + $0x18] sm:$0xff] 0.0
    $region29: #{vqvae_forward.13} parent=1 // pred_fallthru
      _
    %v63 = vld [vmem:[#allocation3] sm:$0xff]
    %v64 = vld [vmem:[#allocation3 + $0x8] sm:$0xff]
    %v65 = vld [vmem:[#allocation3 + $0x10] sm:$0xff]
    %v66 = vld [vmem:[#allocation3 + $0x18] sm:$0xff]
    %v67 = vld [vmem:[#allocation2] sm:$0xff]
    %v68 = vld [vmem:[#allocation2 + $0x8] sm:$0xff]
    %v69 = vld [vmem:[#allocation2 + $0x10] sm:$0xff]
    %v70 = vld [vmem:[#allocation2 + $0x18] sm:$0xff]
    %v71 = vld [vmem:[#allocation6] sm:$0xf]
    %v72 = vld [vmem:[#allocation6 + $0x4] sm:$0xf]
    %v73 = vld [vmem:[#allocation6 + $0x8] sm:$0xf]
    %v74 = vld [vmem:[#allocation6 + $0xc] sm:$0xf]
    %v75 = vld [vmem:[#allocation6 + $0x10] sm:$0xf]
    %v76 = vld [vmem:[#allocation6 + $0x14] sm:$0xf]
    %v77 = vld [vmem:[#allocation6 + $0x18] sm:$0xf]
    %v78 = vld [vmem:[#allocation6 + $0x1c] sm:$0xf]
    %v79 = vld [vmem:[#allocation6 + $0x20] sm:$0xf]
    %v80 = vld [vmem:[#allocation6 + $0x24] sm:$0xf]
    %v81 = vld [vmem:[#allocation6 + $0x28] sm:$0xf]
    %v82 = vld [vmem:[#allocation6 + $0x2c] sm:$0xf]
    %v83 = vld [vmem:[#allocation6 + $0x30] sm:$0xf]
    %v84 = vld [vmem:[#allocation6 + $0x34] sm:$0xf]
    %v85 = vld [vmem:[#allocation6 + $0x38] sm:$0xf]
    %v86 = vld [vmem:[#allocation6 + $0x3c] sm:$0xf]
    %v87 = vld [vmem:[#allocation6 + $0x40] sm:$0xf]
    %v88 = vld [vmem:[#allocation6 + $0x44] sm:$0xf]
    %v89 = vld [vmem:[#allocation6 + $0x48] sm:$0xf]
    %v90 = vld [vmem:[#allocation6 + $0x4c] sm:$0xf]
    %v91 = vld [vmem:[#allocation6 + $0x50] sm:$0xf]
    %v92 = vld [vmem:[#allocation6 + $0x54] sm:$0xf]
    %v93 = vld [vmem:[#allocation6 + $0x58] sm:$0xf]
    %v94 = vld [vmem:[#allocation6 + $0x5c] sm:$0xf]
    %v95 = vld [vmem:[#allocation6 + $0x60] sm:$0xf]
    %v96 = vld [vmem:[#allocation6 + $0x64] sm:$0xf]
    %v97 = vld [vmem:[#allocation6 + $0x68] sm:$0xf]
    %v98 = vld [vmem:[#allocation6 + $0x6c] sm:$0xf]
    %v99 = vld [vmem:[#allocation6 + $0x70] sm:$0xf]
    %v100 = vld [vmem:[#allocation6 + $0x74] sm:$0xf]
    %v101 = vld [vmem:[#allocation6 + $0x78] sm:$0xf]
    %v102 = vld [vmem:[#allocation6 + $0x7c] sm:$0xf]
    %v107 = vunpack.c.l.b16 %v63
    %v108 = vunpack.c.h.b16 %v63
    %v109 = vunpack.c.l.b16 %v64
    %v110 = vunpack.c.h.b16 %v64
    %v111 = vunpack.c.l.b16 %v65
    %v112 = vunpack.c.h.b16 %v65
    %v113 = vunpack.c.l.b16 %v66
    %v114 = vunpack.c.h.b16 %v66
    %v115 = vpack.c.b16 %v109, %v107
    %v116 = vpack.c.b16 %v110, %v108
    %v117 = vpack.c.b16 %v113, %v111
    %v118 = vpack.c.b16 %v114, %v112
    %v155 = vunpack.c.l.b16 %v71
    %v156 = vunpack.c.l.b16 %v72
    %v157 = vunpack.c.l.b16 %v73
    %v158 = vunpack.c.l.b16 %v74
    %v159 = vunpack.c.l.b16 %v75
    %v160 = vunpack.c.l.b16 %v76
    %v161 = vunpack.c.l.b16 %v77
    %v162 = vunpack.c.l.b16 %v78
    %v163 = vunpack.c.l.b16 %v79
    %v164 = vunpack.c.l.b16 %v80
    %v165 = vunpack.c.l.b16 %v81
    %v166 = vunpack.c.l.b16 %v82
    %v167 = vunpack.c.l.b16 %v83
    %v168 = vunpack.c.l.b16 %v84
    %v169 = vunpack.c.l.b16 %v85
    %v170 = vunpack.c.l.b16 %v86
    %v171 = vunpack.c.l.b16 %v87
    %v172 = vunpack.c.l.b16 %v88
    %v173 = vunpack.c.l.b16 %v89
    %v174 = vunpack.c.l.b16 %v90
    %v175 = vunpack.c.l.b16 %v91
    %v176 = vunpack.c.l.b16 %v92
    %v177 = vunpack.c.l.b16 %v93
    %v178 = vunpack.c.l.b16 %v94
    %v179 = vunpack.c.l.b16 %v95
    %v180 = vunpack.c.l.b16 %v96
    %v181 = vunpack.c.l.b16 %v97
    %v182 = vunpack.c.l.b16 %v98
    %v183 = vunpack.c.l.b16 %v99
    %v184 = vunpack.c.l.b16 %v100
    %v185 = vunpack.c.l.b16 %v101
    %v186 = vunpack.c.l.b16 %v102
    %v187 = vpack.c.b16 %v156, %v155
    %v188 = vpack.c.b16 %v158, %v157
    %v189 = vpack.c.b16 %v160, %v159
    %v190 = vpack.c.b16 %v162, %v161
    %v191 = vpack.c.b16 %v164, %v163
    %v192 = vpack.c.b16 %v166, %v165
    %v193 = vpack.c.b16 %v168, %v167
    %v194 = vpack.c.b16 %v170, %v169
    %v195 = vpack.c.b16 %v172, %v171
    %v196 = vpack.c.b16 %v174, %v173
    %v197 = vpack.c.b16 %v176, %v175
    %v198 = vpack.c.b16 %v178, %v177
    %v199 = vpack.c.b16 %v180, %v179
    %v200 = vpack.c.b16 %v182, %v181
    %v201 = vpack.c.b16 %v184, %v183
    %v202 = vpack.c.b16 %v186, %v185
    %219 = vmatprep.subr.bf16.mxu0 0
    %220 = vmatpush1.bf16.msra.mxu0 %v187
    %221 = vmatprep.subr.bf16.mxu0 0
    %222 = vmatpush1.bf16.msra.mxu0 %v188
    %223 = vmatprep.subr.bf16.mxu0 0
    %224 = vmatpush1.bf16.msra.mxu0 %v189
    %225 = vmatprep.subr.bf16.mxu0 0
    %226 = vmatpush1.bf16.msra.mxu0 %v190
    %227 = vmatprep.subr.bf16.mxu0 0
    %228 = vmatpush1.bf16.msra.mxu0 %v191
    %229 = vmatprep.subr.bf16.mxu0 0
    %230 = vmatpush1.bf16.msra.mxu0 %v192
    %231 = vmatprep.subr.bf16.mxu0 0
    %232 = vmatpush1.bf16.msra.mxu0 %v193
    %233 = vmatprep.subr.bf16.mxu0 0
    %234 = vmatpush1.bf16.msra.mxu0 %v194
    %235 = vmatprep.subr.bf16.mxu0 0
    %236 = vmatpush1.bf16.msra.mxu0 %v195
    %237 = vmatprep.subr.bf16.mxu0 0
    %238 = vmatpush1.bf16.msra.mxu0 %v196
    %239 = vmatprep.subr.bf16.mxu0 0
    %240 = vmatpush1.bf16.msra.mxu0 %v197
    %241 = vmatprep.subr.bf16.mxu0 0
    %242 = vmatpush1.bf16.msra.mxu0 %v198
    %243 = vmatprep.subr.bf16.mxu0 0
    %244 = vmatpush1.bf16.msra.mxu0 %v199
    %245 = vmatprep.subr.bf16.mxu0 0
    %246 = vmatpush1.bf16.msra.mxu0 %v200
    %247 = vmatprep.subr.bf16.mxu0 0
    %248 = vmatpush1.bf16.msra.mxu0 %v201
    %249 = vmatprep.subr.bf16.mxu0 0
    %250 = vmatpush1.bf16.msra.mxu0 %v202
    %251 = vmatprep.mubr.bf16.mxu0 %v116
    %252 = vmatmul.mubr.bf16.gmra.mrb[0].mxu0 %v115
    %v253 = vpop.f32.mrb[0].mxu0
    %v254 = vadd.f32 0.0, %v253
    %v255 = vpop.f32.mrb[0].mxu0
    %v256 = vpop.f32.mrb[0].mxu0
    %v257 = vadd.f32 0.0, %v256
    %v258 = vpop.f32.mrb[0].mxu0
    %259 = vmatprep.mubr.bf16.mxu0 %v118
    %260 = vmatmul.mubr.bf16.gmra.mrb[0].mxu0 %v117
    %v261 = vpop.f32.mrb[0].mxu0
    %v262 = vadd.f32 0.0, %v261
    %v263 = vpop.f32.mrb[0].mxu0
    %v264 = vpop.f32.mrb[0].mxu0
    %v265 = vadd.f32 0.0, %v264
    %v266 = vpop.f32.mrb[0].mxu0
    %267 = vdwg.mxu0
    %v268 = vadd.f32 %v67, %v254
    %v269 = vadd.f32 %v68, %v257
    %v270 = vadd.f32 %v69, %v262
    %v271 = vadd.f32 %v70, %v265
    %272 = vst [vmem:[#allocation2] sm:$0xff] %v268
    %273 = vst [vmem:[#allocation2 + $0x8] sm:$0xff] %v269
    %274 = vst [vmem:[#allocation2 + $0x10] sm:$0xff] %v270
    %275 = vst [vmem:[#allocation2 + $0x18] sm:$0xff] %v271
    // Predicated region
    $region30: #{vqvae_forward.13} parent=1 // pred_check
      %p276 = pneg %p55
    $region31: #{vqvae_forward.13} parent=1 // pred_check_branch
      %278 = sbr.rel (%p276) target = $region33
    $region32: #{vqvae_forward.13} parent=1 // pred_region
      %v279 = vld [vmem:[#allocation2] sm:$0xff]
      %v280 = vld [vmem:[#allocation2 + $0x8] sm:$0xff]
      %v281 = vld [vmem:[#allocation2 + $0x10] sm:$0xff]
      %v282 = vld [vmem:[#allocation2 + $0x18] sm:$0xff]
      %v283 = vld [vmem:[#allocation8] sm:$0x1]
      %v285 = vlaneseq
      %v286 = vshrl.u32 %v285, 7
      %v287 = vsub.s32 0, %v286
      %v288 = vrot.slane %v283, %v287
      %v290 = vadd.f32 %v279, %v288
      %v291 = vadd.f32 %v280, %v288
      %v292 = vadd.f32 %v281, %v288
      %v293 = vadd.f32 %v282, %v288
      %v294 = vmax.f32 %v290, 0.0
      %v295 = vmax.f32 %v291, 0.0
      %v296 = vmax.f32 %v292, 0.0
      %v297 = vmax.f32 %v293, 0.0
      %v298 = vpack.c.bf16 %v295, %v294
      %v299 = vpack.c.bf16 %v297, %v296
      %v302 = vunpack.c.l.b16 %v298
      %v303 = vunpack.c.h.b16 %v298
      %v304 = vunpack.c.l.b16 %v299
      %v305 = vunpack.c.h.b16 %v299
      %v306 = vpack.c.b16 %v302, %v302
      %v307 = vpack.c.b16 %v303, %v303
      %v308 = vpack.c.b16 %v304, %v304
      %v309 = vpack.c.b16 %v305, %v305
      %314 = vst [vmem:[#allocation9] sm:$0xf] %v306
      %315 = vst [vmem:[#allocation9 + $0x4] sm:$0xf] %v307
      %316 = vst [vmem:[#allocation9 + $0x8] sm:$0xf] %v308
      %317 = vst [vmem:[#allocation9 + $0xc] sm:$0xf] %v309
    $region33: #{vqvae_forward.13} parent=1 // pred_fallthru
      _
    // Predicated region
    $region34: #{vqvae_forward.13} parent=1 // pred_check
      _
    $region35: #{vqvae_forward.13} parent=1 // pred_check_branch
      %319 = sbr.rel (0) target = $region37
    $region36: #{vqvae_forward.13} parent=1 // pred_region
      %s321 = ssub.s32 256, 256
      %322 = vsyncadd [#allocation5], %s321
      %s323 = sshll.u32 [#allocation9], 4
      %s324 = int_to_ptr.vmem [resolvable:$true] %s323
      %329 = dma.vmem_to_hbm [thread:$0]  %s324, 256, %s3, [#allocation5], 64, 64, 4
    $region37: #{vqvae_forward.13} parent=1 // pred_fallthru
      _
    // Predicated region
    $region38: #{vqvae_forward.13} parent=1 // pred_check
      _
    $region39: #{vqvae_forward.13} parent=1 // pred_check_branch
      %331 = sbr.rel (0) target = $region41
    $region40: #{vqvae_forward.13} parent=1 // pred_region
      %332 = dma.done [#allocation5], 256
    $region41: #{vqvae_forward.13} parent=1 // pred_fallthru
      _
    %333 = vsyncpa [#allocation4], 1
    %334 = vsyncpa [#allocation7], 1
    %335 = vsyncpa [#allocation5], 1

// kernel: vqvae_forward.14
$region0: #{vqvae_forward.14}
  #allocation0 [shape = 'u32[]', space=smem, size = 0x4, offset = 0x4, fixed_abs, tag = 'smem constant byte address 0x4 - core index']
  #allocation1 [shape = 'u32[144,128]{1,0:T(1,128)}', space=vmem, size = 0x12000, scoped, tag = 'internal scratch']
  #allocation2 [shape = 'f32[32,128]{1,0:T(8,128)}', space=vmem, size = 0x4000, scoped, tag = 'scratch operand']
  %s0 = inlined_call_operand.hbm [shape: bf16[32,384], index: 0, kind: input, shape index: {}]
  %s1 = inlined_call_operand.hbm [shape: bf16[384,128], index: 1, kind: input, shape index: {}]
  %s2 = inlined_call_operand.hbm [shape: f32[1,128], index: 2, kind: input, shape index: {}]
  %s3 = inlined_call_operand.hbm [shape: bf16[32,128], index: 3, kind: output, shape index: {}]
  %s4 = sld [smem:[#allocation0]]
  $region42: #{vqvae_forward.14} parent=0
    _
  %s6 = ssub.s32 1, %s4
  %s7 = scalar_select 0, %s6, %s4
  $region1: #{vqvae_forward.14} parent=0
    #allocation3 [shape = 'u8[24576]{0}', space=vmem, size = 0x6000, scoped, tag = 'input window, operand 0, single buffered']
    #allocation4 [shape = 's32[1]{0}', space=sflag, size = 0x4, scoped, tag = 'scoped memory for vqvae_forward.14']
    #allocation5 [shape = 's32[1]{0}', space=sflag, size = 0x4, scoped, tag = 'scoped memory for vqvae_forward.14']
    #allocation6 [shape = 'u8[98304]{0}', space=vmem, size = 0x18000, scoped, tag = 'input window, operand 1, single buffered']
    #allocation7 [shape = 's32[1]{0}', space=sflag, size = 0x4, scoped, tag = 'scoped memory for vqvae_forward.14']
    #allocation8 [shape = 'u8[512]{0}', space=vmem, size = 0x400, scoped, tag = 'input window, operand 2, single buffered']
    #allocation9 [shape = 'u8[8192]{0}', space=vmem, size = 0x2000, scoped, tag = 'output window, operand 0, single buffered']
    %8 = vsyncpa [#allocation4], 0
    %9 = vsyncpa [#allocation7], 0
    %10 = vsyncpa [#allocation5], 0
    // Predicated region
    $region2: #{vqvae_forward.14} parent=1 // pred_check
      _
    $region3: #{vqvae_forward.14} parent=1 // pred_check_branch
      %12 = sbr.rel (0) target = $region5
    $region4: #{vqvae_forward.14} parent=1 // pred_region
      %s14 = ssub.s32 768, 768
      %15 = vsyncadd [#allocation4], %s14
      %s16 = sshll.u32 [#allocation3], 4
      %s17 = int_to_ptr.vmem [resolvable:$true] %s16
      %22 = dma.hbm_to_vmem [thread:$0]  %s0, 768, %s17, [#allocation4], 192, 192, 12
    $region5: #{vqvae_forward.14} parent=1 // pred_fallthru
      _
    // Predicated region
    $region6: #{vqvae_forward.14} parent=1 // pred_check
      _
    $region7: #{vqvae_forward.14} parent=1 // pred_check_branch
      %24 = sbr.rel (0) target = $region9
    $region8: #{vqvae_forward.14} parent=1 // pred_region
      %s26 = ssub.s32 3072, 3072
      %27 = vsyncadd [#allocation7], %s26
      %s28 = sshll.u32 [#allocation6], 4
      %s29 = int_to_ptr.vmem [resolvable:$true] %s28
      %34 = dma.hbm_to_vmem [thread:$0]  %s1, 3072, %s29, [#allocation7], 64, 64, 4
    $region9: #{vqvae_forward.14} parent=1 // pred_fallthru
      _
    // Predicated region
    $region10: #{vqvae_forward.14} parent=1 // pred_check
      _
    $region11: #{vqvae_forward.14} parent=1 // pred_check_branch
      %36 = sbr.rel (0) target = $region13
    $region12: #{vqvae_forward.14} parent=1 // pred_region
      %s38 = ssub.s32 16, 16
      %39 = vsyncadd [#allocation7], %s38
      %s41 = sshll.u32 [#allocation8], 4
      %s42 = int_to_ptr.vmem [resolvable:$true] %s41
      %44 = dma.hbm_to_vmem [thread:$0]  %s2, 16, %s42, [#allocation7]
    $region13: #{vqvae_forward.14} parent=1 // pred_fallthru
      _
    // Predicated region
    $region14: #{vqvae_forward.14} parent=1 // pred_check
      _
    $region15: #{vqvae_forward.14} parent=1 // pred_check_branch
      %46 = sbr.rel (0) target = $region17
    $region16: #{vqvae_forward.14} parent=1 // pred_region
      %47 = dma.done [#allocation4], 768
    $region17: #{vqvae_forward.14} parent=1 // pred_fallthru
      _
    // Predicated region
    $region18: #{vqvae_forward.14} parent=1 // pred_check
      _
    $region19: #{vqvae_forward.14} parent=1 // pred_check_branch
      %49 = sbr.rel (0) target = $region21
    $region20: #{vqvae_forward.14} parent=1 // pred_region
      %50 = dma.done [#allocation7], 3072
    $region21: #{vqvae_forward.14} parent=1 // pred_fallthru
      _
    // Predicated region
    $region22: #{vqvae_forward.14} parent=1 // pred_check
      _
    $region23: #{vqvae_forward.14} parent=1 // pred_check_branch
      %52 = sbr.rel (0) target = $region25
    $region24: #{vqvae_forward.14} parent=1 // pred_region
      %53 = dma.done [#allocation7], 16
    $region25: #{vqvae_forward.14} parent=1 // pred_fallthru
      _
    %p55 = scmp.eq.s32.totalorder 0, 0
    // Predicated region
    $region26: #{vqvae_forward.14} parent=1 // pred_check
      %p56 = pneg %p55
    $region27: #{vqvae_forward.14} parent=1 // pred_check_branch
      %58 = sbr.rel (%p56) target = $region29
    $region28: #{vqvae_forward.14} parent=1 // pred_region
      %59 = vst [vmem:[#allocation2] sm:$0xff] 0.0
      %60 = vst [vmem:[#allocation2 + $0x8] sm:$0xff] 0.0
      %61 = vst [vmem:[#allocation2 + $0x10] sm:$0xff] 0.0
      %62 = vst [vmem:[#allocation2 + $0x18] sm:$0xff] 0.0
    $region29: #{vqvae_forward.14} parent=1 // pred_fallthru
      _
    %v63 = vld [vmem:[#allocation3] sm:$0xff]
    %v64 = vld [vmem:[#allocation3 + $0x8] sm:$0xf]
    %v65 = vld [vmem:[#allocation3 + $0xc] sm:$0xff]
    %v66 = vld [vmem:[#allocation3 + $0x14] sm:$0xf]
    %v67 = vld [vmem:[#allocation3 + $0x18] sm:$0xff]
    %v68 = vld [vmem:[#allocation3 + $0x20] sm:$0xf]
    %v69 = vld [vmem:[#allocation3 + $0x24] sm:$0xff]
    %v70 = vld [vmem:[#allocation3 + $0x2c] sm:$0xf]
    %v71 = vld [vmem:[#allocation2] sm:$0xff]
    %v72 = vld [vmem:[#allocation2 + $0x8] sm:$0xff]
    %v73 = vld [vmem:[#allocation2 + $0x10] sm:$0xff]
    %v74 = vld [vmem:[#allocation2 + $0x18] sm:$0xff]
    %v75 = vld [vmem:[#allocation6] sm:$0xf]
    %v76 = vld [vmem:[#allocation6 + $0x4] sm:$0xf]
    %v77 = vld [vmem:[#allocation6 + $0x8] sm:$0xf]
    %v78 = vld [vmem:[#allocation6 + $0xc] sm:$0xf]
    %v79 = vld [vmem:[#allocation6 + $0x10] sm:$0xf]
    %v80 = vld [vmem:[#allocation6 + $0x14] sm:$0xf]
    %v81 = vld [vmem:[#allocation6 + $0x18] sm:$0xf]
    %v82 = vld [vmem:[#allocation6 + $0x1c] sm:$0xf]
    %v83 = vld [vmem:[#allocation6 + $0x20] sm:$0xf]
    %v84 = vld [vmem:[#allocation6 + $0x24] sm:$0xf]
    %v85 = vld [vmem:[#allocation6 + $0x28] sm:$0xf]
    %v86 = vld [vmem:[#allocation6 + $0x2c] sm:$0xf]
    %v87 = vld [vmem:[#allocation6 + $0x30] sm:$0xf]
    %v88 = vld [vmem:[#allocation6 + $0x34] sm:$0xf]
    %v89 = vld [vmem:[#allocation6 + $0x38] sm:$0xf]
    %v90 = vld [vmem:[#allocation6 + $0x3c] sm:$0xf]
    %v91 = vld [vmem:[#allocation6 + $0x40] sm:$0xf]
    %v92 = vld [vmem:[#allocation6 + $0x44] sm:$0xf]
    %v93 = vld [vmem:[#allocation6 + $0x48] sm:$0xf]
    %v94 = vld [vmem:[#allocation6 + $0x4c] sm:$0xf]
    %v95 = vld [vmem:[#allocation6 + $0x50] sm:$0xf]
    %v96 = vld [vmem:[#allocation6 + $0x54] sm:$0xf]
    %v97 = vld [vmem:[#allocation6 + $0x58] sm:$0xf]
    %v98 = vld [vmem:[#allocation6 + $0x5c] sm:$0xf]
    %v99 = vld [vmem:[#allocation6 + $0x60] sm:$0xf]
    %v100 = vld [vmem:[#allocation6 + $0x64] sm:$0xf]
    %v101 = vld [vmem:[#allocation6 + $0x68] sm:$0xf]
    %v102 = vld [vmem:[#allocation6 + $0x6c] sm:$0xf]
    %v103 = vld [vmem:[#allocation6 + $0x70] sm:$0xf]
    %v104 = vld [vmem:[#allocation6 + $0x74] sm:$0xf]
    %v105 = vld [vmem:[#allocation6 + $0x78] sm:$0xf]
    %v106 = vld [vmem:[#allocation6 + $0x7c] sm:$0xf]
    %v107 = vld [vmem:[#allocation6 + $0x80] sm:$0xf]
    %v108 = vld [vmem:[#allocation6 + $0x84] sm:$0xf]
    %v109 = vld [vmem:[#allocation6 + $0x88] sm:$0xf]
    %v110 = vld [vmem:[#allocation6 + $0x8c] sm:$0xf]
    %v111 = vld [vmem:[#allocation6 + $0x90] sm:$0xf]
    %v112 = vld [vmem:[#allocation6 + $0x94] sm:$0xf]
    %v113 = vld [vmem:[#allocation6 + $0x98] sm:$0xf]
    %v114 = vld [vmem:[#allocation6 + $0x9c] sm:$0xf]
    %v115 = vld [vmem:[#allocation6 + $0xa0] sm:$0xf]
    %v116 = vld [vmem:[#allocation6 + $0xa4] sm:$0xf]
    %v117 = vld [vmem:[#allocation6 + $0xa8] sm:$0xf]
    %v118 = vld [vmem:[#allocation6 + $0xac] sm:$0xf]
    %v119 = vld [vmem:[#allocation6 + $0xb0] sm:$0xf]
    %v120 = vld [vmem:[#allocation6 + $0xb4] sm:$0xf]
    %v121 = vld [vmem:[#allocation6 + $0xb8] sm:$0xf]
    %v122 = vld [vmem:[#allocation6 + $0xbc] sm:$0xf]
    %v131 = vunpack.c.l.b16 %v63
    %v132 = vunpack.c.h.b16 %v63
    %v133 = vunpack.c.l.b16 %v64
    %v134 = vunpack.c.l.b16 %v65
    %v135 = vunpack.c.h.b16 %v65
    %v136 = vunpack.c.l.b16 %v66
    %v137 = vunpack.c.l.b16 %v67
    %v138 = vunpack.c.h.b16 %v67
    %v139 = vunpack.c.l.b16 %v68
    %v140 = vunpack.c.l.b16 %v69
    %v141 = vunpack.c.h.b16 %v69
    %v142 = vunpack.c.l.b16 %v70
    %v143 = vpack.c.b16 %v134, %v131
    %v144 = vpack.c.b16 %v135, %v132
    %v145 = vpack.c.b16 %v136, %v133
    %v146 = vpack.c.b16 %v140, %v137
    %v147 = vpack.c.b16 %v141, %v138
    %v148 = vpack.c.b16 %v142, %v139
    %v203 = vunpack.c.l.b16 %v75
    %v204 = vunpack.c.l.b16 %v76
    %v205 = vunpack.c.l.b16 %v77
    %v206 = vunpack.c.l.b16 %v78
    %v207 = vunpack.c.l.b16 %v79
    %v208 = vunpack.c.l.b16 %v80
    %v209 = vunpack.c.l.b16 %v81
    %v210 = vunpack.c.l.b16 %v82
    %v211 = vunpack.c.l.b16 %v83
    %v212 = vunpack.c.l.b16 %v84
    %v213 = vunpack.c.l.b16 %v85
    %v214 = vunpack.c.l.b16 %v86
    %v215 = vunpack.c.l.b16 %v87
    %v216 = vunpack.c.l.b16 %v88
    %v217 = vunpack.c.l.b16 %v89
    %v218 = vunpack.c.l.b16 %v90
    %v219 = vunpack.c.l.b16 %v91
    %v220 = vunpack.c.l.b16 %v92
    %v221 = vunpack.c.l.b16 %v93
    %v222 = vunpack.c.l.b16 %v94
    %v223 = vunpack.c.l.b16 %v95
    %v224 = vunpack.c.l.b16 %v96
    %v225 = vunpack.c.l.b16 %v97
    %v226 = vunpack.c.l.b16 %v98
    %v227 = vunpack.c.l.b16 %v99
    %v228 = vunpack.c.l.b16 %v100
    %v229 = vunpack.c.l.b16 %v101
    %v230 = vunpack.c.l.b16 %v102
    %v231 = vunpack.c.l.b16 %v103
    %v232 = vunpack.c.l.b16 %v104
    %v233 = vunpack.c.l.b16 %v105
    %v234 = vunpack.c.l.b16 %v106
    %v235 = vunpack.c.l.b16 %v107
    %v236 = vunpack.c.l.b16 %v108
    %v237 = vunpack.c.l.b16 %v109
    %v238 = vunpack.c.l.b16 %v110
    %v239 = vunpack.c.l.b16 %v111
    %v240 = vunpack.c.l.b16 %v112
    %v241 = vunpack.c.l.b16 %v113
    %v242 = vunpack.c.l.b16 %v114
    %v243 = vunpack.c.l.b16 %v115
    %v244 = vunpack.c.l.b16 %v116
    %v245 = vunpack.c.l.b16 %v117
    %v246 = vunpack.c.l.b16 %v118
    %v247 = vunpack.c.l.b16 %v119
    %v248 = vunpack.c.l.b16 %v120
    %v249 = vunpack.c.l.b16 %v121
    %v250 = vunpack.c.l.b16 %v122
    %v251 = vpack.c.b16 %v204, %v203
    %v252 = vpack.c.b16 %v206, %v205
    %v253 = vpack.c.b16 %v208, %v207
    %v254 = vpack.c.b16 %v210, %v209
    %v255 = vpack.c.b16 %v212, %v211
    %v256 = vpack.c.b16 %v214, %v213
    %v257 = vpack.c.b16 %v216, %v215
    %v258 = vpack.c.b16 %v218, %v217
    %v259 = vpack.c.b16 %v220, %v219
    %v260 = vpack.c.b16 %v222, %v221
    %v261 = vpack.c.b16 %v224, %v223
    %v262 = vpack.c.b16 %v226, %v225
    %v263 = vpack.c.b16 %v228, %v227
    %v264 = vpack.c.b16 %v230, %v229
    %v265 = vpack.c.b16 %v232, %v231
    %v266 = vpack.c.b16 %v234, %v233
    %v267 = vpack.c.b16 %v236, %v235
    %v268 = vpack.c.b16 %v238, %v237
    %v269 = vpack.c.b16 %v240, %v239
    %v270 = vpack.c.b16 %v242, %v241
    %v271 = vpack.c.b16 %v244, %v243
    %v272 = vpack.c.b16 %v246, %v245
    %v273 = vpack.c.b16 %v248, %v247
    %v274 = vpack.c.b16 %v250, %v249
    %299 = vmatprep.subr.bf16.mxu0 0
    %300 = vmatpush1.bf16.msra.mxu0 %v251
    %301 = vmatprep.subr.bf16.mxu0 0
    %302 = vmatpush1.bf16.msra.mxu0 %v252
    %303 = vmatprep.subr.bf16.mxu0 0
    %304 = vmatpush1.bf16.msra.mxu0 %v253
    %305 = vmatprep.subr.bf16.mxu0 0
    %306 = vmatpush1.bf16.msra.mxu0 %v254
    %307 = vmatprep.subr.bf16.mxu0 0
    %308 = vmatpush1.bf16.msra.mxu0 %v255
    %309 = vmatprep.subr.bf16.mxu0 0
    %310 = vmatpush1.bf16.msra.mxu0 %v256
    %311 = vmatprep.subr.bf16.mxu0 0
    %312 = vmatpush1.bf16.msra.mxu0 %v257
    %313 = vmatprep.subr.bf16.mxu0 0
    %314 = vmatpush1.bf16.msra.mxu0 %v258
    %315 = vmatprep.subr.bf16.mxu0 0
    %316 = vmatpush1.bf16.msra.mxu0 %v259
    %317 = vmatprep.subr.bf16.mxu0 0
    %318 = vmatpush1.bf16.msra.mxu0 %v260
    %319 = vmatprep.subr.bf16.mxu0 0
    %320 = vmatpush1.bf16.msra.mxu0 %v261
    %321 = vmatprep.subr.bf16.mxu0 0
    %322 = vmatpush1.bf16.msra.mxu0 %v262
    %323 = vmatprep.subr.bf16.mxu0 0
    %324 = vmatpush1.bf16.msra.mxu0 %v263
    %325 = vmatprep.subr.bf16.mxu0 0
    %326 = vmatpush1.bf16.msra.mxu0 %v264
    %327 = vmatprep.subr.bf16.mxu0 0
    %328 = vmatpush1.bf16.msra.mxu0 %v265
    %329 = vmatprep.subr.bf16.mxu0 0
    %330 = vmatpush1.bf16.msra.mxu0 %v266
    %331 = vmatprep.mubr.bf16.mxu0 %v144
    %332 = vmatmul.mubr.bf16.gmra.mrb[0].mxu0 %v143
    %v333 = vpop.f32.mrb[0].mxu0
    %v334 = vadd.f32 0.0, %v333
    %v335 = vpop.f32.mrb[0].mxu0
    %v336 = vpop.f32.mrb[0].mxu0
    %v337 = vadd.f32 0.0, %v336
    %v338 = vpop.f32.mrb[0].mxu0
    %339 = vmatprep.mubr.bf16.mxu0 %v147
    %340 = vmatmul.mubr.bf16.gmra.mrb[0].mxu0 %v146
    %v341 = vpop.f32.mrb[0].mxu0
    %v342 = vadd.f32 0.0, %v341
    %v343 = vpop.f32.mrb[0].mxu0
    %v344 = vpop.f32.mrb[0].mxu0
    %v345 = vadd.f32 0.0, %v344
    %v346 = vpop.f32.mrb[0].mxu0
    %347 = vdwg.mxu0
    %348 = vmatprep.subr.bf16.mxu0 0
    %349 = vmatpush1.bf16.msra.mxu0 %v267
    %350 = vmatprep.subr.bf16.mxu0 0
    %351 = vmatpush1.bf16.msra.mxu0 %v268
    %352 = vmatprep.subr.bf16.mxu0 0
    %353 = vmatpush1.bf16.msra.mxu0 %v269
    %354 = vmatprep.subr.bf16.mxu0 0
    %355 = vmatpush1.bf16.msra.mxu0 %v270
    %356 = vmatprep.subr.bf16.mxu0 0
    %357 = vmatpush1.bf16.msra.mxu0 %v271
    %358 = vmatprep.subr.bf16.mxu0 0
    %359 = vmatpush1.bf16.msra.mxu0 %v272
    %360 = vmatprep.subr.bf16.mxu0 0
    %361 = vmatpush1.bf16.msra.mxu0 %v273
    %362 = vmatprep.subr.bf16.mxu0 0
    %363 = vmatpush1.bf16.msra.mxu0 %v274
    %364 = vmatprep.subr.bf16.mxu0 0
    %365 = vmatpush1.bf16.msra.mxu0 0
    %366 = vmatprep.subr.bf16.mxu0 0
    %367 = vmatpush1.bf16.msra.mxu0 0
    %368 = vmatprep.subr.bf16.mxu0 0
    %369 = vmatpush1.bf16.msra.mxu0 0
    %370 = vmatprep.subr.bf16.mxu0 0
    %371 = vmatpush1.bf16.msra.mxu0 0
    %372 = vmatprep.subr.bf16.mxu0 0
    %373 = vmatpush1.bf16.msra.mxu0 0
    %374 = vmatprep.subr.bf16.mxu0 0
    %375 = vmatpush1.bf16.msra.mxu0 0
    %376 = vmatprep.subr.bf16.mxu0 0
    %377 = vmatpush1.bf16.msra.mxu0 0
    %378 = vmatprep.subr.bf16.mxu0 0
    %379 = vmatpush1.bf16.msra.mxu0 0
    %380 = vmatprep.mubr.bf16.mxu0 0
    %381 = vmatmul.mubr.bf16.gmra.mrb[0].mxu0 %v145
    %v382 = vpop.f32.mrb[0].mxu0
    %v383 = vadd.f32 %v334, %v382
    %v384 = vpop.f32.mrb[0].mxu0
    %v385 = vpop.f32.mrb[0].mxu0
    %v386 = vadd.f32 %v337, %v385
    %v387 = vpop.f32.mrb[0].mxu0
    %388 = vmatprep.mubr.bf16.mxu0 0
    %389 = vmatmul.mubr.bf16.gmra.mrb[0].mxu0 %v148
    %v390 = vpop.f32.mrb[0].mxu0
    %v391 = vadd.f32 %v342, %v390
    %v392 = vpop.f32.mrb[0].mxu0
    %v393 = vpop.f32.mrb[0].mxu0
    %v394 = vadd.f32 %v345, %v393
    %v395 = vpop.f32.mrb[0].mxu0
    %396 = vdwg.mxu0
    %v397 = vadd.f32 %v71, %v383
    %v398 = vadd.f32 %v72, %v386
    %v399 = vadd.f32 %v73, %v391
    %v400 = vadd.f32 %v74, %v394
    %401 = vst [vmem:[#allocation2] sm:$0xff] %v397
    %402 = vst [vmem:[#allocation2 + $0x8] sm:$0xff] %v398
    %403 = vst [vmem:[#allocation2 + $0x10] sm:$0xff] %v399
    %404 = vst [vmem:[#allocation2 + $0x18] sm:$0xff] %v400
    // Predicated region
    $region30: #{vqvae_forward.14} parent=1 // pred_check
      %p405 = pneg %p55
    $region31: #{vqvae_forward.14} parent=1 // pred_check_branch
      %407 = sbr.rel (%p405) target = $region33
    $region32: #{vqvae_forward.14} parent=1 // pred_region
      %v408 = vld [vmem:[#allocation2] sm:$0xff]
      %v409 = vld [vmem:[#allocation2 + $0x8] sm:$0xff]
      %v410 = vld [vmem:[#allocation2 + $0x10] sm:$0xff]
      %v411 = vld [vmem:[#allocation2 + $0x18] sm:$0xff]
      %v412 = vld [vmem:[#allocation8] sm:$0x1]
      %v414 = vlaneseq
      %v415 = vshrl.u32 %v414, 7
      %v416 = vsub.s32 0, %v415
      %v417 = vrot.slane %v412, %v416
      %v419 = vadd.f32 %v408, %v417
      %v420 = vadd.f32 %v409, %v417
      %v421 = vadd.f32 %v410, %v417
      %v422 = vadd.f32 %v411, %v417
      %v423 = vpack.c.bf16 %v420, %v419
      %v424 = vpack.c.bf16 %v422, %v421
      %v427 = vunpack.c.l.b16 %v423
      %v428 = vunpack.c.h.b16 %v423
      %v429 = vunpack.c.l.b16 %v424
      %v430 = vunpack.c.h.b16 %v424
      %v431 = vpack.c.b16 %v427, %v427
      %v432 = vpack.c.b16 %v428, %v428
      %v433 = vpack.c.b16 %v429, %v429
      %v434 = vpack.c.b16 %v430, %v430
      %439 = vst [vmem:[#allocation9] sm:$0xf] %v431
      %440 = vst [vmem:[#allocation9 + $0x4] sm:$0xf] %v432
      %441 = vst [vmem:[#allocation9 + $0x8] sm:$0xf] %v433
      %442 = vst [vmem:[#allocation9 + $0xc] sm:$0xf] %v434
    $region33: #{vqvae_forward.14} parent=1 // pred_fallthru
      _
    // Predicated region
    $region34: #{vqvae_forward.14} parent=1 // pred_check
      _
    $region35: #{vqvae_forward.14} parent=1 // pred_check_branch
      %444 = sbr.rel (0) target = $region37
    $region36: #{vqvae_forward.14} parent=1 // pred_region
      %s446 = ssub.s32 256, 256
      %447 = vsyncadd [#allocation5], %s446
      %s448 = sshll.u32 [#allocation9], 4
      %s449 = int_to_ptr.vmem [resolvable:$true] %s448
      %454 = dma.vmem_to_hbm [thread:$0]  %s449, 256, %s3, [#allocation5], 64, 64, 4
    $region37: #{vqvae_forward.14} parent=1 // pred_fallthru
      _
    // Predicated region
    $region38: #{vqvae_forward.14} parent=1 // pred_check
      _
    $region39: #{vqvae_forward.14} parent=1 // pred_check_branch
      %456 = sbr.rel (0) target = $region41
    $region40: #{vqvae_forward.14} parent=1 // pred_region
      %457 = dma.done [#allocation5], 256
    $region41: #{vqvae_forward.14} parent=1 // pred_fallthru
      _
    %458 = vsyncpa [#allocation4], 1
    %459 = vsyncpa [#allocation7], 1
    %460 = vsyncpa [#allocation5], 1

// kernel: vqvae_forward.17
$region0: #{vqvae_forward.17}
  #allocation0 [shape = 'u32[]', space=smem, size = 0x4, offset = 0x4, fixed_abs, tag = 'smem constant byte address 0x4 - core index']
  #allocation1 [shape = 'u32[144,128]{1,0:T(1,128)}', space=vmem, size = 0x12000, scoped, tag = 'internal scratch']
  #allocation2 [shape = 'f32[32,128]{1,0:T(8,128)}', space=vmem, size = 0x4000, scoped, tag = 'scratch operand']
  %s0 = inlined_call_operand.hbm [shape: bf16[32,128], index: 0, kind: input, shape index: {}]
  %s1 = inlined_call_operand.hbm [shape: bf16[128,128], index: 1, kind: input, shape index: {}]
  %s2 = inlined_call_operand.hbm [shape: f32[1,128], index: 2, kind: input, shape index: {}]
  %s3 = inlined_call_operand.hbm [shape: f32[32,128], index: 3, kind: output, shape index: {}]
  %s4 = sld [smem:[#allocation0]]
  $region42: #{vqvae_forward.17} parent=0
    _
  %s6 = ssub.s32 1, %s4
  %s7 = scalar_select 0, %s6, %s4
  $region1: #{vqvae_forward.17} parent=0
    #allocation3 [shape = 'u8[8192]{0}', space=vmem, size = 0x2000, scoped, tag = 'input window, operand 0, single buffered']
    #allocation4 [shape = 's32[1]{0}', space=sflag, size = 0x4, scoped, tag = 'scoped memory for vqvae_forward.17']
    #allocation5 [shape = 's32[1]{0}', space=sflag, size = 0x4, scoped, tag = 'scoped memory for vqvae_forward.17']
    #allocation6 [shape = 'u8[32768]{0}', space=vmem, size = 0x8000, scoped, tag = 'input window, operand 1, single buffered']
    #allocation7 [shape = 's32[1]{0}', space=sflag, size = 0x4, scoped, tag = 'scoped memory for vqvae_forward.17']
    #allocation8 [shape = 'u8[512]{0}', space=vmem, size = 0x400, scoped, tag = 'input window, operand 2, single buffered']
    #allocation9 [shape = 'u8[16384]{0}', space=vmem, size = 0x4000, scoped, tag = 'output window, operand 0, single buffered']
    %8 = vsyncpa [#allocation4], 0
    %9 = vsyncpa [#allocation7], 0
    %10 = vsyncpa [#allocation5], 0
    // Predicated region
    $region2: #{vqvae_forward.17} parent=1 // pred_check
      _
    $region3: #{vqvae_forward.17} parent=1 // pred_check_branch
      %12 = sbr.rel (0) target = $region5
    $region4: #{vqvae_forward.17} parent=1 // pred_region
      %s14 = ssub.s32 256, 256
      %15 = vsyncadd [#allocation4], %s14
      %s16 = sshll.u32 [#allocation3], 4
      %s17 = int_to_ptr.vmem [resolvable:$true] %s16
      %22 = dma.hbm_to_vmem [thread:$0]  %s0, 256, %s17, [#allocation4], 64, 64, 4
    $region5: #{vqvae_forward.17} parent=1 // pred_fallthru
      _
    // Predicated region
    $region6: #{vqvae_forward.17} parent=1 // pred_check
      _
    $region7: #{vqvae_forward.17} parent=1 // pred_check_branch
      %24 = sbr.rel (0) target = $region9
    $region8: #{vqvae_forward.17} parent=1 // pred_region
      %s26 = ssub.s32 1024, 1024
      %27 = vsyncadd [#allocation7], %s26
      %s28 = sshll.u32 [#allocation6], 4
      %s29 = int_to_ptr.vmem [resolvable:$true] %s28
      %34 = dma.hbm_to_vmem [thread:$0]  %s1, 1024, %s29, [#allocation7], 64, 64, 4
    $region9: #{vqvae_forward.17} parent=1 // pred_fallthru
      _
    // Predicated region
    $region10: #{vqvae_forward.17} parent=1 // pred_check
      _
    $region11: #{vqvae_forward.17} parent=1 // pred_check_branch
      %36 = sbr.rel (0) target = $region13
    $region12: #{vqvae_forward.17} parent=1 // pred_region
      %s38 = ssub.s32 16, 16
      %39 = vsyncadd [#allocation7], %s38
      %s41 = sshll.u32 [#allocation8], 4
      %s42 = int_to_ptr.vmem [resolvable:$true] %s41
      %44 = dma.hbm_to_vmem [thread:$0]  %s2, 16, %s42, [#allocation7]
    $region13: #{vqvae_forward.17} parent=1 // pred_fallthru
      _
    // Predicated region
    $region14: #{vqvae_forward.17} parent=1 // pred_check
      _
    $region15: #{vqvae_forward.17} parent=1 // pred_check_branch
      %46 = sbr.rel (0) target = $region17
    $region16: #{vqvae_forward.17} parent=1 // pred_region
      %47 = dma.done [#allocation4], 256
    $region17: #{vqvae_forward.17} parent=1 // pred_fallthru
      _
    // Predicated region
    $region18: #{vqvae_forward.17} parent=1 // pred_check
      _
    $region19: #{vqvae_forward.17} parent=1 // pred_check_branch
      %49 = sbr.rel (0) target = $region21
    $region20: #{vqvae_forward.17} parent=1 // pred_region
      %50 = dma.done [#allocation7], 1024
    $region21: #{vqvae_forward.17} parent=1 // pred_fallthru
      _
    // Predicated region
    $region22: #{vqvae_forward.17} parent=1 // pred_check
      _
    $region23: #{vqvae_forward.17} parent=1 // pred_check_branch
      %52 = sbr.rel (0) target = $region25
    $region24: #{vqvae_forward.17} parent=1 // pred_region
      %53 = dma.done [#allocation7], 16
    $region25: #{vqvae_forward.17} parent=1 // pred_fallthru
      _
    %p55 = scmp.eq.s32.totalorder 0, 0
    // Predicated region
    $region26: #{vqvae_forward.17} parent=1 // pred_check
      %p56 = pneg %p55
    $region27: #{vqvae_forward.17} parent=1 // pred_check_branch
      %58 = sbr.rel (%p56) target = $region29
    $region28: #{vqvae_forward.17} parent=1 // pred_region
      %59 = vst [vmem:[#allocation2] sm:$0xff] 0.0
      %60 = vst [vmem:[#allocation2 + $0x8] sm:$0xff] 0.0
      %61 = vst [vmem:[#allocation2 + $0x10] sm:$0xff] 0.0
      %62 = vst [vmem:[#allocation2 + $0x18] sm:$0xff] 0.0
    $region29: #{vqvae_forward.17} parent=1 // pred_fallthru
      _
    %v63 = vld [vmem:[#allocation3] sm:$0xf]
    %v64 = vld [vmem:[#allocation3 + $0x4] sm:$0xf]
    %v65 = vld [vmem:[#allocation3 + $0x8] sm:$0xf]
    %v66 = vld [vmem:[#allocation3 + $0xc] sm:$0xf]
    %v67 = vmax.bf16 %v63, 0
    %v68 = vmax.bf16 %v64, 0
    %v69 = vmax.bf16 %v65, 0
    %v70 = vmax.bf16 %v66, 0
    %v71 = vld [vmem:[#allocation2] sm:$0xff]
    %v72 = vld [vmem:[#allocation2 + $0x8] sm:$0xff]
    %v73 = vld [vmem:[#allocation2 + $0x10] sm:$0xff]
    %v74 = vld [vmem:[#allocation2 + $0x18] sm:$0xff]
    %v75 = vld [vmem:[#allocation6] sm:$0xf]
    %v76 = vld [vmem:[#allocation6 + $0x4] sm:$0xf]
    %v77 = vld [vmem:[#allocation6 + $0x8] sm:$0xf]
    %v78 = vld [vmem:[#allocation6 + $0xc] sm:$0xf]
    %v79 = vld [vmem:[#allocation6 + $0x10] sm:$0xf]
    %v80 = vld [vmem:[#allocation6 + $0x14] sm:$0xf]
    %v81 = vld [vmem:[#allocation6 + $0x18] sm:$0xf]
    %v82 = vld [vmem:[#allocation6 + $0x1c] sm:$0xf]
    %v83 = vld [vmem:[#allocation6 + $0x20] sm:$0xf]
    %v84 = vld [vmem:[#allocation6 + $0x24] sm:$0xf]
    %v85 = vld [vmem:[#allocation6 + $0x28] sm:$0xf]
    %v86 = vld [vmem:[#allocation6 + $0x2c] sm:$0xf]
    %v87 = vld [vmem:[#allocation6 + $0x30] sm:$0xf]
    %v88 = vld [vmem:[#allocation6 + $0x34] sm:$0xf]
    %v89 = vld [vmem:[#allocation6 + $0x38] sm:$0xf]
    %v90 = vld [vmem:[#allocation6 + $0x3c] sm:$0xf]
    %v95 = vunpack.c.l.b16 %v67
    %v96 = vunpack.c.l.b16 %v68
    %v97 = vunpack.c.l.b16 %v69
    %v98 = vunpack.c.l.b16 %v70
    %v99 = vpack.c.b16 %v96, %v95
    %v100 = vpack.c.b16 %v98, %v97
    %v119 = vunpack.c.l.b16 %v75
    %v120 = vunpack.c.l.b16 %v76
    %v121 = vunpack.c.l.b16 %v77
    %v122 = vunpack.c.l.b16 %v78
    %v123 = vunpack.c.l.b16 %v79
    %v124 = vunpack.c.l.b16 %v80
    %v125 = vunpack.c.l.b16 %v81
    %v126 = vunpack.c.l.b16 %v82
    %v127 = vunpack.c.l.b16 %v83
    %v128 = vunpack.c.l.b16 %v84
    %v129 = vunpack.c.l.b16 %v85
    %v130 = vunpack.c.l.b16 %v86
    %v131 = vunpack.c.l.b16 %v87
    %v132 = vunpack.c.l.b16 %v88
    %v133 = vunpack.c.l.b16 %v89
    %v134 = vunpack.c.l.b16 %v90
    %v135 = vpack.c.b16 %v120, %v119
    %v136 = vpack.c.b16 %v122, %v121
    %v137 = vpack.c.b16 %v124, %v123
    %v138 = vpack.c.b16 %v126, %v125
    %v139 = vpack.c.b16 %v128, %v127
    %v140 = vpack.c.b16 %v130, %v129
    %v141 = vpack.c.b16 %v132, %v131
    %v142 = vpack.c.b16 %v134, %v133
    %151 = vmatprep.subr.bf16.mxu0 0
    %152 = vmatpush1.bf16.msra.mxu0 %v135
    %153 = vmatprep.subr.bf16.mxu0 0
    %154 = vmatpush1.bf16.msra.mxu0 %v136
    %155 = vmatprep.subr.bf16.mxu0 0
    %156 = vmatpush1.bf16.msra.mxu0 %v137
    %157 = vmatprep.subr.bf16.mxu0 0
    %158 = vmatpush1.bf16.msra.mxu0 %v138
    %159 = vmatprep.subr.bf16.mxu0 0
    %160 = vmatpush1.bf16.msra.mxu0 %v139
    %161 = vmatprep.subr.bf16.mxu0 0
    %162 = vmatpush1.bf16.msra.mxu0 %v140
    %163 = vmatprep.subr.bf16.mxu0 0
    %164 = vmatpush1.bf16.msra.mxu0 %v141
    %165 = vmatprep.subr.bf16.mxu0 0
    %166 = vmatpush1.bf16.msra.mxu0 %v142
    %167 = vmatprep.subr.bf16.mxu0 0
    %168 = vmatpush1.bf16.msra.mxu0 0
    %169 = vmatprep.subr.bf16.mxu0 0
    %170 = vmatpush1.bf16.msra.mxu0 0
    %171 = vmatprep.subr.bf16.mxu0 0
    %172 = vmatpush1.bf16.msra.mxu0 0
    %173 = vmatprep.subr.bf16.mxu0 0
    %174 = vmatpush1.bf16.msra.mxu0 0
    %175 = vmatprep.subr.bf16.mxu0 0
    %176 = vmatpush1.bf16.msra.mxu0 0
    %177 = vmatprep.subr.bf16.mxu0 0
    %178 = vmatpush1.bf16.msra.mxu0 0
    %179 = vmatprep.subr.bf16.mxu0 0
    %180 = vmatpush1.bf16.msra.mxu0 0
    %181 = vmatprep.subr.bf16.mxu0 0
    %182 = vmatpush1.bf16.msra.mxu0 0
    %183 = vmatprep.mubr.bf16.mxu0 0
    %184 = vmatmul.mubr.bf16.gmra.mrb[0].mxu0 %v99
    %v185 = vpop.f32.mrb[0].mxu0
    %v186 = vadd.f32 0.0, %v185
    %v187 = vpop.f32.mrb[0].mxu0
    %v188 = vpop.f32.mrb[0].mxu0
    %v189 = vadd.f32 0.0, %v188
    %v190 = vpop.f32.mrb[0].mxu0
    %191 = vmatprep.mubr.bf16.mxu0 0
    %192 = vmatmul.mubr.bf16.gmra.mrb[0].mxu0 %v100
    %v193 = vpop.f32.mrb[0].mxu0
    %v194 = vadd.f32 0.0, %v193
    %v195 = vpop.f32.mrb[0].mxu0
    %v196 = vpop.f32.mrb[0].mxu0
    %v197 = vadd.f32 0.0, %v196
    %v198 = vpop.f32.mrb[0].mxu0
    %199 = vdwg.mxu0
    %v200 = vadd.f32 %v71, %v186
    %v201 = vadd.f32 %v72, %v189
    %v202 = vadd.f32 %v73, %v194
    %v203 = vadd.f32 %v74, %v197
    %204 = vst [vmem:[#allocation2] sm:$0xff] %v200
    %205 = vst [vmem:[#allocation2 + $0x8] sm:$0xff] %v201
    %206 = vst [vmem:[#allocation2 + $0x10] sm:$0xff] %v202
    %207 = vst [vmem:[#allocation2 + $0x18] sm:$0xff] %v203
    // Predicated region
    $region30: #{vqvae_forward.17} parent=1 // pred_check
      %p208 = pneg %p55
    $region31: #{vqvae_forward.17} parent=1 // pred_check_branch
      %210 = sbr.rel (%p208) target = $region33
    $region32: #{vqvae_forward.17} parent=1 // pred_region
      %v211 = vld [vmem:[#allocation2] sm:$0xff]
      %v212 = vld [vmem:[#allocation2 + $0x8] sm:$0xff]
      %v213 = vld [vmem:[#allocation2 + $0x10] sm:$0xff]
      %v214 = vld [vmem:[#allocation2 + $0x18] sm:$0xff]
      %v215 = vld [vmem:[#allocation8] sm:$0x1]
      %v217 = vlaneseq
      %v218 = vshrl.u32 %v217, 7
      %v219 = vsub.s32 0, %v218
      %v220 = vrot.slane %v215, %v219
      %v222 = vadd.f32 %v211, %v220
      %v223 = vadd.f32 %v212, %v220
      %v224 = vadd.f32 %v213, %v220
      %v225 = vadd.f32 %v214, %v220
      %226 = vst [vmem:[#allocation9] sm:$0xff] %v222
      %227 = vst [vmem:[#allocation9 + $0x8] sm:$0xff] %v223
      %228 = vst [vmem:[#allocation9 + $0x10] sm:$0xff] %v224
      %229 = vst [vmem:[#allocation9 + $0x18] sm:$0xff] %v225
    $region33: #{vqvae_forward.17} parent=1 // pred_fallthru
      _
    // Predicated region
    $region34: #{vqvae_forward.17} parent=1 // pred_check
      _
    $region35: #{vqvae_forward.17} parent=1 // pred_check_branch
      %231 = sbr.rel (0) target = $region37
    $region36: #{vqvae_forward.17} parent=1 // pred_region
      %s233 = ssub.s32 512, 512
      %234 = vsyncadd [#allocation5], %s233
      %s235 = sshll.u32 [#allocation9], 4
      %s236 = int_to_ptr.vmem [resolvable:$true] %s235
      %241 = dma.vmem_to_hbm [thread:$0]  %s236, 512, %s3, [#allocation5], 128, 128, 8
    $region37: #{vqvae_forward.17} parent=1 // pred_fallthru
      _
    // Predicated region
    $region38: #{vqvae_forward.17} parent=1 // pred_check
      _
    $region39: #{vqvae_forward.17} parent=1 // pred_check_branch
      %243 = sbr.rel (0) target = $region41
    $region40: #{vqvae_forward.17} parent=1 // pred_region
      %244 = dma.done [#allocation5], 512
    $region41: #{vqvae_forward.17} parent=1 // pred_fallthru
      _
    %245 = vsyncpa [#allocation4], 1
    %246 = vsyncpa [#allocation7], 1
    %247 = vsyncpa [#allocation5], 1

// kernel: vqvae_forward.18
$region0: #{vqvae_forward.18}
  #allocation0 [shape = 'u32[]', space=smem, size = 0x4, offset = 0x4, fixed_abs, tag = 'smem constant byte address 0x4 - core index']
  #allocation1 [shape = 'u32[144,128]{1,0:T(1,128)}', space=vmem, size = 0x12000, scoped, tag = 'internal scratch']
  %s0 = inlined_call_operand.hbm [shape: f32[32,8], index: 0, kind: input, shape index: {}]
  %s1 = inlined_call_operand.hbm [shape: f32[1,16], index: 1, kind: input, shape index: {}]
  %s2 = inlined_call_operand.hbm [shape: f32[16,8], index: 2, kind: input, shape index: {}]
  %s3 = inlined_call_operand.hbm [shape: bf16[32,8], index: 3, kind: output, shape index: {0}]
  %s4 = inlined_call_operand.hbm [shape: s32[32,1], index: 4, kind: output, shape index: {1}]
  %s5 = inlined_call_operand.hbm [shape: f32[8,16], index: 5, kind: output, shape index: {2}]
  %s6 = inlined_call_operand.hbm [shape: f32[8,128], index: 6, kind: output, shape index: {3}]
  %7 = xla_tuple %s3, %s4, %s5, %s6
  %s8 = sld [smem:[#allocation0]]
  $region58: #{vqvae_forward.18} parent=0
    _
  %s10 = ssub.s32 1, %s8
  %s11 = scalar_select 0, %s10, %s8
  $region1: #{vqvae_forward.18} parent=0
    #allocation2 [shape = 'u8[16384]{0}', space=vmem, size = 0x4000, scoped, tag = 'input window, operand 0, single buffered']
    #allocation3 [shape = 's32[1]{0}', space=sflag, size = 0x4, scoped, tag = 'scoped memory for vqvae_forward.18']
    #allocation4 [shape = 's32[1]{0}', space=sflag, size = 0x4, scoped, tag = 'scoped memory for vqvae_forward.18']
    #allocation5 [shape = 'u8[512]{0}', space=vmem, size = 0x400, scoped, tag = 'input window, operand 1, single buffered']
    #allocation6 [shape = 's32[1]{0}', space=sflag, size = 0x4, scoped, tag = 'scoped memory for vqvae_forward.18']
    #allocation7 [shape = 'u8[8192]{0}', space=vmem, size = 0x2000, scoped, tag = 'input window, operand 2, single buffered']
    #allocation8 [shape = 'u8[8192]{0}', space=vmem, size = 0x2000, scoped, tag = 'output window, operand 0, single buffered']
    #allocation9 [shape = 'u8[16384]{0}', space=vmem, size = 0x4000, scoped, tag = 'output window, operand 1, single buffered']
    #allocation10 [shape = 's32[1]{0}', space=sflag, size = 0x4, scoped, tag = 'scoped memory for vqvae_forward.18']
    #allocation11 [shape = 'u8[4096]{0}', space=vmem, size = 0x1000, scoped, tag = 'output window, operand 2, single buffered']
    #allocation12 [shape = 'u8[4096]{0}', space=vmem, size = 0x1000, scoped, tag = 'output window, operand 3, single buffered']
    #allocation13 [shape = 's32[1]{0}', space=sflag, size = 0x4, scoped, tag = 'scoped memory for vqvae_forward.18']
    %12 = vsyncpa [#allocation3], 0
    %13 = vsyncpa [#allocation6], 0
    %14 = vsyncpa [#allocation4], 0
    %15 = vsyncpa [#allocation10], 0
    %16 = vsyncpa [#allocation13], 0
    // Predicated region
    $region2: #{vqvae_forward.18} parent=1 // pred_check
      _
    $region3: #{vqvae_forward.18} parent=1 // pred_check_branch
      %18 = sbr.rel (0) target = $region5
    $region4: #{vqvae_forward.18} parent=1 // pred_region
      %s20 = ssub.s32 512, 512
      %21 = vsyncadd [#allocation3], %s20
      %s22 = sshll.u32 [#allocation2], 4
      %s23 = int_to_ptr.vmem [resolvable:$true] %s22
      %28 = dma.hbm_to_vmem [thread:$0]  %s0, 512, %s23, [#allocation3], 128, 128, 8
    $region5: #{vqvae_forward.18} parent=1 // pred_fallthru
      _
    // Predicated region
    $region6: #{vqvae_forward.18} parent=1 // pred_check
      _
    $region7: #{vqvae_forward.18} parent=1 // pred_check_branch
      %30 = sbr.rel (0) target = $region9
    $region8: #{vqvae_forward.18} parent=1 // pred_region
      %s32 = ssub.s32 16, 16
      %33 = vsyncadd [#allocation6], %s32
      %s35 = sshll.u32 [#allocation5], 4
      %s36 = int_to_ptr.vmem [resolvable:$true] %s35
      %38 = dma.hbm_to_vmem [thread:$0]  %s1, 16, %s36, [#allocation6]
    $region9: #{vqvae_forward.18} parent=1 // pred_fallthru
      _
    // Predicated region
    $region10: #{vqvae_forward.18} parent=1 // pred_check
      _
    $region11: #{vqvae_forward.18} parent=1 // pred_check_branch
      %40 = sbr.rel (0) target = $region13
    $region12: #{vqvae_forward.18} parent=1 // pred_region
      %s42 = ssub.s32 256, 256
      %43 = vsyncadd [#allocation6], %s42
      %s44 = sshll.u32 [#allocation7], 4
      %s45 = int_to_ptr.vmem [resolvable:$true] %s44
      %50 = dma.hbm_to_vmem [thread:$0]  %s2, 256, %s45, [#allocation6], 128, 128, 8
    $region13: #{vqvae_forward.18} parent=1 // pred_fallthru
      _
    // Predicated region
    $region14: #{vqvae_forward.18} parent=1 // pred_check
      _
    $region15: #{vqvae_forward.18} parent=1 // pred_check_branch
      %52 = sbr.rel (0) target = $region17
    $region16: #{vqvae_forward.18} parent=1 // pred_region
      %53 = dma.done [#allocation3], 512
    $region17: #{vqvae_forward.18} parent=1 // pred_fallthru
      _
    // Predicated region
    $region18: #{vqvae_forward.18} parent=1 // pred_check
      _
    $region19: #{vqvae_forward.18} parent=1 // pred_check_branch
      %55 = sbr.rel (0) target = $region21
    $region20: #{vqvae_forward.18} parent=1 // pred_region
      %56 = dma.done [#allocation6], 16
    $region21: #{vqvae_forward.18} parent=1 // pred_fallthru
      _
    // Predicated region
    $region22: #{vqvae_forward.18} parent=1 // pred_check
      _
    $region23: #{vqvae_forward.18} parent=1 // pred_check_branch
      %58 = sbr.rel (0) target = $region25
    $region24: #{vqvae_forward.18} parent=1 // pred_region
      %59 = dma.done [#allocation6], 256
    $region25: #{vqvae_forward.18} parent=1 // pred_fallthru
      _
    %v61 = vld [vmem:[#allocation2] sm:$0xff]
    %v62 = vld [vmem:[#allocation2 + $0x8] sm:$0xff]
    %v63 = vld [vmem:[#allocation2 + $0x10] sm:$0xff]
    %v64 = vld [vmem:[#allocation2 + $0x18] sm:$0xff]
    %v65 = vld [vmem:[#allocation7] sm:$0xff]
    %v66 = vld [vmem:[#allocation7 + $0x8] sm:$0xff]
    %v67 = vpack.c.bf16 %v66, %v65
    %v68 = vpack.c.bf16 %v62, %v61
    %v69 = vpack.c.bf16 %v64, %v63
    %vm70 = vcmask 64512
    %v72 = vsel %vm70, %v68, 0
    %v75 = vsel %vm70, %v69, 0
    %v78 = vsel %vm70, %v67, 0
    %80 = vmatprep.subr.bf16.mxu0 0
    %81 = vmatpush1.bf16.xpose.msra.mxu0 %v78
    %82 = vmatprep.subr.bf16.mxu0 0
    %83 = vmatpush1.bf16.xpose.msra.mxu0 0
    %84 = vmatprep.subr.bf16.mxu0 0
    %85 = vmatpush1.bf16.xpose.msra.mxu0 0
    %86 = vmatprep.subr.bf16.mxu0 0
    %87 = vmatpush1.bf16.xpose.msra.mxu0 0
    %88 = vmatprep.subr.bf16.mxu0 0
    %89 = vmatpush1.bf16.xpose.msra.mxu0 0
    %90 = vmatprep.subr.bf16.mxu0 0
    %91 = vmatpush1.bf16.xpose.msra.mxu0 0
    %92 = vmatprep.subr.bf16.mxu0 0
    %93 = vmatpush1.bf16.xpose.msra.mxu0 0
    %94 = vmatprep.subr.bf16.mxu0 0
    %95 = vmatpush1.bf16.xpose.msra.mxu0 0
    %96 = vmatprep.subr.bf16.mxu0 0
    %97 = vmatpush1.bf16.xpose.msra.mxu0 0
    %98 = vmatprep.subr.bf16.mxu0 0
    %99 = vmatpush1.bf16.xpose.msra.mxu0 0
    %100 = vmatprep.subr.bf16.mxu0 0
    %101 = vmatpush1.bf16.xpose.msra.mxu0 0
    %102 = vmatprep.subr.bf16.mxu0 0
    %103 = vmatpush1.bf16.xpose.msra.mxu0 0
    %104 = vmatprep.subr.bf16.mxu0 0
    %105 = vmatpush1.bf16.xpose.msra.mxu0 0
    %106 = vmatprep.subr.bf16.mxu0 0
    %107 = vmatpush1.bf16.xpose.msra.mxu0 0
    %108 = vmatprep.subr.bf16.mxu0 0
    %109 = vmatpush1.bf16.xpose.msra.mxu0 0
    %110 = vmatprep.subr.bf16.mxu0 0
    %111 = vmatpush1.bf16.xpose.msra.mxu0 0
    %112 = vmatprep.mubr.bf16.mxu0 0
    %113 = vmatmul.mubr.bf16.gmra.mrb[0].mxu0 %v72
    %v114 = vpop.f32.mrb[0].mxu0
    %v115 = vadd.f32 0.0, %v114
    %v116 = vpop.f32.mrb[0].mxu0
    %v117 = vpop.f32.mrb[0].mxu0
    %v118 = vadd.f32 0.0, %v117
    %v119 = vpop.f32.mrb[0].mxu0
    %120 = vmatprep.mubr.bf16.mxu0 0
    %121 = vmatmul.mubr.bf16.gmra.mrb[0].mxu0 %v75
    %v122 = vpop.f32.mrb[0].mxu0
    %v123 = vadd.f32 0.0, %v122
    %v124 = vpop.f32.mrb[0].mxu0
    %v125 = vpop.f32.mrb[0].mxu0
    %v126 = vadd.f32 0.0, %v125
    %v127 = vpop.f32.mrb[0].mxu0
    %128 = vdwg.mxu0
    %v129 = vld [vmem:[#allocation5] sm:$0x1]
    %v130 = vmul.f32 %v115, 2.0
    %v131 = vmul.f32 %v118, 2.0
    %v132 = vmul.f32 %v123, 2.0
    %v133 = vmul.f32 %v126, 2.0
    %v135 = vlaneseq
    %v136 = vshrl.u32 %v135, 7
    %v137 = vsub.s32 0, %v136
    %v138 = vrot.slane %v129, %v137
    %v140 = vsub.f32 %v138, %v130
    %v141 = vsub.f32 %v138, %v131
    %v142 = vsub.f32 %v138, %v132
    %v143 = vsub.f32 %v138, %v133
    %v144 = vlaneseq
    %v145 = vand.u32 %v144, 127
    %vm146 = vcmask 130048
    %v147 = vsel %vm146, %v140, inf
    %148 = vmin.xlane.f32.xlu0 %v147
    %v149 = vpop.xlane.xlu0 %148
    %v150 = vsel %vm146, %v141, inf
    %151 = vmin.xlane.f32.xlu0 %v150
    %v152 = vpop.xlane.xlu0 %151
    %v153 = vsel %vm146, %v142, inf
    %154 = vmin.xlane.f32.xlu0 %v153
    %v155 = vpop.xlane.xlu0 %154
    %v156 = vsel %vm146, %v143, inf
    %157 = vmin.xlane.f32.xlu0 %v156
    %v158 = vpop.xlane.xlu0 %157
    %vm159 = vcmp.le.f32.partialorder %v140, %v149
    %vm160 = vcmp.le.f32.partialorder %v141, %v152
    %vm161 = vcmp.le.f32.partialorder %v142, %v155
    %vm162 = vcmp.le.f32.partialorder %v143, %v158
    %v163 = vsel %vm159, %v145, 16
    %v164 = vsel %vm160, %v145, 16
    %v165 = vsel %vm161, %v145, 16
    %v166 = vsel %vm162, %v145, 16
    %v167 = vsel %vm146, %v163, 2147483647
    %v168 = vand.u32 %v167, 65535
    %v169 = vshra.s32 %v167, 16
    %v170 = vcvt.s32.f32 %v168
    %v171 = vcvt.s32.f32 %v169
    %172 = vmin.xlane.f32.xlu0 %v171
    %v173 = vpop.xlane.xlu0 %172
    %vm174 = vcmp.eq.f32.partialorder %v171, %v173
    %v175 = vsel %vm174, %v170, inf
    %176 = vmin.xlane.f32.xlu0 %v175
    %v177 = vpop.xlane.xlu0 %176
    %v178 = vcvt.f32.s32 %v177
    %v179 = vcvt.f32.s32 %v173
    %v180 = vshll.u32 %v179, 16
    %v181 = vadd.s32 %v180, %v178
    %v182 = vsel %vm146, %v164, 2147483647
    %v183 = vand.u32 %v182, 65535
    %v184 = vshra.s32 %v182, 16
    %v185 = vcvt.s32.f32 %v183
    %v186 = vcvt.s32.f32 %v184
    %187 = vmin.xlane.f32.xlu0 %v186
    %v188 = vpop.xlane.xlu0 %187
    %vm189 = vcmp.eq.f32.partialorder %v186, %v188
    %v190 = vsel %vm189, %v185, inf
    %191 = vmin.xlane.f32.xlu0 %v190
    %v192 = vpop.xlane.xlu0 %191
    %v193 = vcvt.f32.s32 %v192
    %v194 = vcvt.f32.s32 %v188
    %v195 = vshll.u32 %v194, 16
    %v196 = vadd.s32 %v195, %v193
    %v197 = vsel %vm146, %v165, 2147483647
    %v198 = vand.u32 %v197, 65535
    %v199 = vshra.s32 %v197, 16
    %v200 = vcvt.s32.f32 %v198
    %v201 = vcvt.s32.f32 %v199
    %202 = vmin.xlane.f32.xlu0 %v201
    %v203 = vpop.xlane.xlu0 %202
    %vm204 = vcmp.eq.f32.partialorder %v201, %v203
    %v205 = vsel %vm204, %v200, inf
    %206 = vmin.xlane.f32.xlu0 %v205
    %v207 = vpop.xlane.xlu0 %206
    %v208 = vcvt.f32.s32 %v207
    %v209 = vcvt.f32.s32 %v203
    %v210 = vshll.u32 %v209, 16
    %v211 = vadd.s32 %v210, %v208
    %v212 = vsel %vm146, %v166, 2147483647
    %v213 = vand.u32 %v212, 65535
    %v214 = vshra.s32 %v212, 16
    %v215 = vcvt.s32.f32 %v213
    %v216 = vcvt.s32.f32 %v214
    %217 = vmin.xlane.f32.xlu0 %v216
    %v218 = vpop.xlane.xlu0 %217
    %vm219 = vcmp.eq.f32.partialorder %v216, %v218
    %v220 = vsel %vm219, %v215, inf
    %221 = vmin.xlane.f32.xlu0 %v220
    %v222 = vpop.xlane.xlu0 %221
    %v223 = vcvt.f32.s32 %v222
    %v224 = vcvt.f32.s32 %v218
    %v225 = vshll.u32 %v224, 16
    %v226 = vadd.s32 %v225, %v223
    %vm227 = vcmask 7168
    %228 = vst.msk [vmem:[#allocation9] sm:$0xff] %vm227, %v181
    %229 = vst.msk [vmem:[#allocation9 + $0x8] sm:$0xff] %vm227, %v196
    %230 = vst.msk [vmem:[#allocation9 + $0x10] sm:$0xff] %vm227, %v211
    %231 = vst.msk [vmem:[#allocation9 + $0x18] sm:$0xff] %vm227, %v226
    %vm232 = vcmp.eq.s32.totalorder %v145, %v181
    %vm233 = vcmp.eq.s32.totalorder %v145, %v196
    %vm234 = vcmp.eq.s32.totalorder %v145, %v211
    %vm235 = vcmp.eq.s32.totalorder %v145, %v226
    %v236 = vsel %vm232, 1, 0
    %v237 = vsel %vm233, 1, 0
    %v238 = vsel %vm234, 1, 0
    %v239 = vsel %vm235, 1, 0
    %v240 = vcvt.s32.f32 %v236
    %v241 = vcvt.s32.f32 %v237
    %v242 = vcvt.s32.f32 %v238
    %v243 = vcvt.s32.f32 %v239
    %v244 = vpack.c.bf16 %v241, %v240
    %v245 = vpack.c.bf16 %v243, %v242
    %v247 = vsel %vm146, %v244, 0
    %v250 = vsel %vm146, %v245, 0
    %252 = vmatprep.subr.bf16.mxu0 0
    %253 = vmatpush1.bf16.msra.mxu0 %v67
    %254 = vmatprep.subr.bf16.mxu0 0
    %255 = vmatpush1.bf16.msra.mxu0 0
    %256 = vmatprep.subr.bf16.mxu0 0
    %257 = vmatpush1.bf16.msra.mxu0 0
    %258 = vmatprep.subr.bf16.mxu0 0
    %259 = vmatpush1.bf16.msra.mxu0 0
    %260 = vmatprep.subr.bf16.mxu0 0
    %261 = vmatpush1.bf16.msra.mxu0 0
    %262 = vmatprep.subr.bf16.mxu0 0
    %263 = vmatpush1.bf16.msra.mxu0 0
    %264 = vmatprep.subr.bf16.mxu0 0
    %265 = vmatpush1.bf16.msra.mxu0 0
    %266 = vmatprep.subr.bf16.mxu0 0
    %267 = vmatpush1.bf16.msra.mxu0 0
    %268 = vmatprep.subr.bf16.mxu0 0
    %269 = vmatpush1.bf16.msra.mxu0 0
    %270 = vmatprep.subr.bf16.mxu0 0
    %271 = vmatpush1.bf16.msra.mxu0 0
    %272 = vmatprep.subr.bf16.mxu0 0
    %273 = vmatpush1.bf16.msra.mxu0 0
    %274 = vmatprep.subr.bf16.mxu0 0
    %275 = vmatpush1.bf16.msra.mxu0 0
    %276 = vmatprep.subr.bf16.mxu0 0
    %277 = vmatpush1.bf16.msra.mxu0 0
    %278 = vmatprep.subr.bf16.mxu0 0
    %279 = vmatpush1.bf16.msra.mxu0 0
    %280 = vmatprep.subr.bf16.mxu0 0
    %281 = vmatpush1.bf16.msra.mxu0 0
    %282 = vmatprep.subr.bf16.mxu0 0
    %283 = vmatpush1.bf16.msra.mxu0 0
    %284 = vmatprep.mubr.bf16.mxu0 0
    %285 = vmatmul.mubr.bf16.gmra.mrb[0].mxu0 %v247
    %v286 = vpop.f32.mrb[0].mxu0
    %v287 = vadd.f32 0.0, %v286
    %v288 = vpop.f32.mrb[0].mxu0
    %v289 = vpop.f32.mrb[0].mxu0
    %v290 = vadd.f32 0.0, %v289
    %v291 = vpop.f32.mrb[0].mxu0
    %292 = vmatprep.mubr.bf16.mxu0 0
    %293 = vmatmul.mubr.bf16.gmra.mrb[0].mxu0 %v250
    %v294 = vpop.f32.mrb[0].mxu0
    %v295 = vadd.f32 0.0, %v294
    %v296 = vpop.f32.mrb[0].mxu0
    %v297 = vpop.f32.mrb[0].mxu0
    %v298 = vadd.f32 0.0, %v297
    %v299 = vpop.f32.mrb[0].mxu0
    %300 = vdwg.mxu0
    %v301 = vpack.c.bf16 %v290, %v287
    %v302 = vpack.c.bf16 %v298, %v295
    %v305 = vunpack.c.l.b16 %v301
    %v306 = vunpack.c.h.b16 %v301
    %v307 = vunpack.c.l.b16 %v302
    %v308 = vunpack.c.h.b16 %v302
    %v309 = vpack.c.b16 %v305, %v305
    %v310 = vpack.c.b16 %v306, %v306
    %v311 = vpack.c.b16 %v307, %v307
    %v312 = vpack.c.b16 %v308, %v308
    %vm317 = vcmask 60416
    %318 = vst.msk [vmem:[#allocation8] sm:$0xf] %vm317, %v309
    %319 = vst.msk [vmem:[#allocation8 + $0x4] sm:$0xf] %vm317, %v310
    %320 = vst.msk [vmem:[#allocation8 + $0x8] sm:$0xf] %vm317, %v311
    %321 = vst.msk [vmem:[#allocation8 + $0xc] sm:$0xf] %vm317, %v312
    %s322 = smul.u32 0, 32
    %v323 = vlaneseq
    %v324 = vshrl.u32 %v323, 7
    %v325 = vadd.s32 %v324, 8
    %v326 = vadd.s32 %v324, 16
    %v327 = vadd.s32 %v324, 24
    %v328 = vstv %s322
    %v329 = vadd.s32 %v328, %v324
    %v330 = vadd.s32 %v328, %v325
    %v331 = vadd.s32 %v328, %v326
    %v332 = vadd.s32 %v328, %v327
    %vm333 = vcmp.lt.s32.totalorder %v329, 32
    %vm334 = vcmp.lt.s32.totalorder %v330, 32
    %vm335 = vcmp.lt.s32.totalorder %v331, 32
    %vm336 = vcmp.lt.s32.totalorder %v332, 32
    %v337 = vsel %vm333, 1, 0
    %v338 = vsel %vm334, 1, 0
    %v339 = vsel %vm335, 1, 0
    %v340 = vsel %vm336, 1, 0
    %vm341 = vcmp.eq.s32.totalorder %v337, 1
    %vm342 = vcmp.eq.s32.totalorder %v338, 1
    %vm343 = vcmp.eq.s32.totalorder %v339, 1
    %vm344 = vcmp.eq.s32.totalorder %v340, 1
    %vm345 = vmand %vm232, %vm341
    %vm346 = vmand %vm233, %vm342
    %vm347 = vmand %vm234, %vm343
    %vm348 = vmand %vm235, %vm344
    %v349 = vsel %vm345, 1.0, 0.0
    %v350 = vsel %vm346, 1.0, 0.0
    %v351 = vsel %vm347, 1.0, 0.0
    %v352 = vsel %vm348, 1.0, 0.0
    %v353 = vsel %vm146, %v349, 0.0
    %v354 = vsel %vm146, %v350, 0.0
    %v355 = vadd.f32 %v353, %v354
    %v356 = vsel %vm146, %v351, 0.0
    %v357 = vadd.f32 %v355, %v356
    %v358 = vsel %vm146, %v352, 0.0
    %v359 = vadd.f32 %v357, %v358
    %v360 = vrot.slane %v359, 4
    %v361 = vadd.f32 %v359, %v360
    %v362 = vrot.slane %v361, 2
    %v363 = vadd.f32 %v361, %v362
    %v364 = vrot.slane %v363, 1
    %v365 = vadd.f32 %v363, %v364
    %vm366 = vcmp.eq.s32.totalorder %v324, 0
    %v367 = vsel %vm366, %v365, 0.0
    %368 = vst.msk [vmem:[#allocation11] sm:$0xff] %vm146, %v367
    %v369 = vsub.f32 %v287, %v61
    %v370 = vsub.f32 %v290, %v62
    %v371 = vsub.f32 %v295, %v63
    %v372 = vsub.f32 %v298, %v64
    %v373 = vcvt.s32.f32 %v337
    %v374 = vcvt.s32.f32 %v338
    %v375 = vcvt.s32.f32 %v339
    %v376 = vcvt.s32.f32 %v340
    %v377 = vmul.f32 %v369, %v373
    %v378 = vmul.f32 %v370, %v374
    %v379 = vmul.f32 %v371, %v375
    %v380 = vmul.f32 %v372, %v376
    %v381 = vmul.f32 %v377, %v377
    %v382 = vmul.f32 %v378, %v378
    %v383 = vmul.f32 %v379, %v379
    %v384 = vmul.f32 %v380, %v380
    %v385 = vsel %vm70, %v381, 0.0
    %v386 = vsel %vm70, %v382, 0.0
    %v387 = vadd.f32 %v385, %v386
    %v388 = vsel %vm70, %v383, 0.0
    %v389 = vadd.f32 %v387, %v388
    %v390 = vsel %vm70, %v384, 0.0
    %v391 = vadd.f32 %v389, %v390
    %392 = vadd.xlane.f32.xlu0 %v391
    %v393 = vpop.xlane.xlu0 %392
    %v394 = vrot.slane %v393, 4
    %v395 = vadd.f32 %v393, %v394
    %v396 = vrot.slane %v395, 2
    %v397 = vadd.f32 %v395, %v396
    %v398 = vrot.slane %v397, 1
    %v399 = vadd.f32 %v397, %v398
    %s400 = vtos %v399
    %vm401 = vcmp.eq.s32.totalorder %v145, 0
    %vm402 = vmand %vm366, %vm401
    %v403 = vstv %s400
    %v404 = vsel %vm402, %v403, 0.0
    %405 = vst [vmem:[#allocation12] sm:$0xff] %v404
    // Predicated region
    $region26: #{vqvae_forward.18} parent=1 // pred_check
      _
    $region27: #{vqvae_forward.18} parent=1 // pred_check_branch
      %407 = sbr.rel (0) target = $region29
    $region28: #{vqvae_forward.18} parent=1 // pred_region
      %s409 = ssub.s32 256, 256
      %410 = vsyncadd [#allocation4], %s409
      %s411 = sshll.u32 [#allocation8], 4
      %s412 = int_to_ptr.vmem [resolvable:$true] %s411
      %417 = dma.vmem_to_hbm [thread:$0]  %s412, 256, %s3, [#allocation4], 64, 64, 4
    $region29: #{vqvae_forward.18} parent=1 // pred_fallthru
      _
    // Predicated region
    $region30: #{vqvae_forward.18} parent=1 // pred_check
      _
    $region31: #{vqvae_forward.18} parent=1 // pred_check_branch
      %419 = sbr.rel (0) target = $region33
    $region32: #{vqvae_forward.18} parent=1 // pred_region
      %s421 = ssub.s32 512, 512
      %422 = vsyncadd [#allocation10], %s421
      %s423 = sshll.u32 [#allocation9], 4
      %s424 = int_to_ptr.vmem [resolvable:$true] %s423
      %429 = dma.vmem_to_hbm [thread:$0]  %s424, 512, %s4, [#allocation10], 128, 128, 8
    $region33: #{vqvae_forward.18} parent=1 // pred_fallthru
      _
    // Predicated region
    $region34: #{vqvae_forward.18} parent=1 // pred_check
      _
    $region35: #{vqvae_forward.18} parent=1 // pred_check_branch
      %431 = sbr.rel (0) target = $region37
    $region36: #{vqvae_forward.18} parent=1 // pred_region
      %s433 = ssub.s32 128, 128
      %434 = vsyncadd [#allocation10], %s433
      %s436 = sshll.u32 [#allocation11], 4
      %s437 = int_to_ptr.vmem [resolvable:$true] %s436
      %439 = dma.vmem_to_hbm [thread:$0]  %s437, 128, %s5, [#allocation10]
    $region37: #{vqvae_forward.18} parent=1 // pred_fallthru
      _
    // Predicated region
    $region38: #{vqvae_forward.18} parent=1 // pred_check
      _
    $region39: #{vqvae_forward.18} parent=1 // pred_check_branch
      %441 = sbr.rel (0) target = $region41
    $region40: #{vqvae_forward.18} parent=1 // pred_region
      %s443 = ssub.s32 128, 128
      %444 = vsyncadd [#allocation13], %s443
      %s446 = sshll.u32 [#allocation12], 4
      %s447 = int_to_ptr.vmem [resolvable:$true] %s446
      %449 = dma.vmem_to_hbm [thread:$0]  %s447, 128, %s6, [#allocation13]
    $region41: #{vqvae_forward.18} parent=1 // pred_fallthru
      _
    // Predicated region
    $region42: #{vqvae_forward.18} parent=1 // pred_check
      _
    $region43: #{vqvae_forward.18} parent=1 // pred_check_branch
      %451 = sbr.rel (0) target = $region45
    $region44: #{vqvae_forward.18} parent=1 // pred_region
      %452 = dma.done [#allocation4], 256
    $region45: #{vqvae_forward.18} parent=1 // pred_fallthru
      _
    // Predicated region
    $region46: #{vqvae_forward.18} parent=1 // pred_check
      _
    $region47: #{vqvae_forward.18} parent=1 // pred_check_branch
      %454 = sbr.rel (0) target = $region49
    $region48: #{vqvae_forward.18} parent=1 // pred_region
      %455 = dma.done [#allocation10], 512
    $region49: #{vqvae_forward.18} parent=1 // pred_fallthru
      _
    // Predicated region
    $region50: #{vqvae_forward.18} parent=1 // pred_check
      _
    $region51: #{vqvae_forward.18} parent=1 // pred_check_branch
      %457 = sbr.rel (0) target = $region53
    $region52: #{vqvae_forward.18} parent=1 // pred_region
      %458 = dma.done [#allocation10], 128
    $region53: #{vqvae_forward.18} parent=1 // pred_fallthru
      _
    // Predicated region
    $region54: #{vqvae_forward.18} parent=1 // pred_check
      _
    $region55: #{vqvae_forward.18} parent=1 // pred_check_branch
      %460 = sbr.rel (0) target = $region57
    $region56: #{vqvae_forward.18} parent=1 // pred_region
      %461 = dma.done [#allocation13], 128
    $region57: #{vqvae_forward.18} parent=1 // pred_fallthru
      _
    %462 = vsyncpa [#allocation3], 1
    %463 = vsyncpa [#allocation6], 1
    %464 = vsyncpa [#allocation4], 1
    %465 = vsyncpa [#allocation10], 1
    %466 = vsyncpa [#allocation13], 1

// kernel: vqvae_forward.15
$region0: #{vqvae_forward.15}
  #allocation0 [shape = 'u32[]', space=smem, size = 0x4, offset = 0x4, fixed_abs, tag = 'smem constant byte address 0x4 - core index']
  #allocation1 [shape = 'u32[144,128]{1,0:T(1,128)}', space=vmem, size = 0x12000, scoped, tag = 'internal scratch']
  #allocation2 [shape = 'f32[32,128]{1,0:T(8,128)}', space=vmem, size = 0x4000, scoped, tag = 'scratch operand']
  %s0 = inlined_call_operand.hbm [shape: bf16[32,384], index: 0, kind: input, shape index: {}]
  %s1 = inlined_call_operand.hbm [shape: bf16[384,128], index: 1, kind: input, shape index: {}]
  %s2 = inlined_call_operand.hbm [shape: bf16[128,128], index: 2, kind: input, shape index: {}]
  %s3 = inlined_call_operand.hbm [shape: bf16[32,128], index: 3, kind: input, shape index: {}]
  %s4 = inlined_call_operand.hbm [shape: bf16[32,128], index: 4, kind: output, shape index: {}]
  %s5 = sld [smem:[#allocation0]]
  $region50: #{vqvae_forward.15} parent=0
    _
  %s7 = ssub.s32 1, %s5
  %s8 = scalar_select 0, %s7, %s5
  $region1: #{vqvae_forward.15} parent=0
    #allocation3 [shape = 'u8[24576]{0}', space=vmem, size = 0x6000, scoped, tag = 'input window, operand 0, single buffered']
    #allocation4 [shape = 's32[1]{0}', space=sflag, size = 0x4, scoped, tag = 'scoped memory for vqvae_forward.15']
    #allocation5 [shape = 's32[1]{0}', space=sflag, size = 0x4, scoped, tag = 'scoped memory for vqvae_forward.15']
    #allocation6 [shape = 'u8[98304]{0}', space=vmem, size = 0x18000, scoped, tag = 'input window, operand 1, single buffered']
    #allocation7 [shape = 's32[1]{0}', space=sflag, size = 0x4, scoped, tag = 'scoped memory for vqvae_forward.15']
    #allocation8 [shape = 'u8[32768]{0}', space=vmem, size = 0x8000, scoped, tag = 'input window, operand 2, single buffered']
    #allocation9 [shape = 'u8[8192]{0}', space=vmem, size = 0x2000, scoped, tag = 'input window, operand 3, single buffered']
    #allocation10 [shape = 's32[1]{0}', space=sflag, size = 0x4, scoped, tag = 'scoped memory for vqvae_forward.15']
    #allocation11 [shape = 'u8[8192]{0}', space=vmem, size = 0x2000, scoped, tag = 'output window, operand 0, single buffered']
    %9 = vsyncpa [#allocation4], 0
    %10 = vsyncpa [#allocation7], 0
    %11 = vsyncpa [#allocation10], 0
    %12 = vsyncpa [#allocation5], 0
    // Predicated region
    $region2: #{vqvae_forward.15} parent=1 // pred_check
      _
    $region3: #{vqvae_forward.15} parent=1 // pred_check_branch
      %14 = sbr.rel (0) target = $region5
    $region4: #{vqvae_forward.15} parent=1 // pred_region
      %s16 = ssub.s32 768, 768
      %17 = vsyncadd [#allocation4], %s16
      %s18 = sshll.u32 [#allocation3], 4
      %s19 = int_to_ptr.vmem [resolvable:$true] %s18
      %24 = dma.hbm_to_vmem [thread:$0]  %s0, 768, %s19, [#allocation4], 192, 192, 12
    $region5: #{vqvae_forward.15} parent=1 // pred_fallthru
      _
    // Predicated region
    $region6: #{vqvae_forward.15} parent=1 // pred_check
      _
    $region7: #{vqvae_forward.15} parent=1 // pred_check_branch
      %26 = sbr.rel (0) target = $region9
    $region8: #{vqvae_forward.15} parent=1 // pred_region
      %s28 = ssub.s32 3072, 3072
      %29 = vsyncadd [#allocation7], %s28
      %s30 = sshll.u32 [#allocation6], 4
      %s31 = int_to_ptr.vmem [resolvable:$true] %s30
      %36 = dma.hbm_to_vmem [thread:$0]  %s1, 3072, %s31, [#allocation7], 64, 64, 4
    $region9: #{vqvae_forward.15} parent=1 // pred_fallthru
      _
    // Predicated region
    $region10: #{vqvae_forward.15} parent=1 // pred_check
      _
    $region11: #{vqvae_forward.15} parent=1 // pred_check_branch
      %38 = sbr.rel (0) target = $region13
    $region12: #{vqvae_forward.15} parent=1 // pred_region
      %s40 = ssub.s32 1024, 1024
      %41 = vsyncadd [#allocation7], %s40
      %s42 = sshll.u32 [#allocation8], 4
      %s43 = int_to_ptr.vmem [resolvable:$true] %s42
      %48 = dma.hbm_to_vmem [thread:$0]  %s2, 1024, %s43, [#allocation7], 64, 64, 4
    $region13: #{vqvae_forward.15} parent=1 // pred_fallthru
      _
    // Predicated region
    $region14: #{vqvae_forward.15} parent=1 // pred_check
      _
    $region15: #{vqvae_forward.15} parent=1 // pred_check_branch
      %50 = sbr.rel (0) target = $region17
    $region16: #{vqvae_forward.15} parent=1 // pred_region
      %s52 = ssub.s32 256, 256
      %53 = vsyncadd [#allocation10], %s52
      %s54 = sshll.u32 [#allocation9], 4
      %s55 = int_to_ptr.vmem [resolvable:$true] %s54
      %60 = dma.hbm_to_vmem [thread:$0]  %s3, 256, %s55, [#allocation10], 64, 64, 4
    $region17: #{vqvae_forward.15} parent=1 // pred_fallthru
      _
    // Predicated region
    $region18: #{vqvae_forward.15} parent=1 // pred_check
      _
    $region19: #{vqvae_forward.15} parent=1 // pred_check_branch
      %62 = sbr.rel (0) target = $region21
    $region20: #{vqvae_forward.15} parent=1 // pred_region
      %63 = dma.done [#allocation4], 768
    $region21: #{vqvae_forward.15} parent=1 // pred_fallthru
      _
    // Predicated region
    $region22: #{vqvae_forward.15} parent=1 // pred_check
      _
    $region23: #{vqvae_forward.15} parent=1 // pred_check_branch
      %65 = sbr.rel (0) target = $region25
    $region24: #{vqvae_forward.15} parent=1 // pred_region
      %66 = dma.done [#allocation7], 3072
    $region25: #{vqvae_forward.15} parent=1 // pred_fallthru
      _
    // Predicated region
    $region26: #{vqvae_forward.15} parent=1 // pred_check
      _
    $region27: #{vqvae_forward.15} parent=1 // pred_check_branch
      %68 = sbr.rel (0) target = $region29
    $region28: #{vqvae_forward.15} parent=1 // pred_region
      %69 = dma.done [#allocation7], 1024
    $region29: #{vqvae_forward.15} parent=1 // pred_fallthru
      _
    // Predicated region
    $region30: #{vqvae_forward.15} parent=1 // pred_check
      _
    $region31: #{vqvae_forward.15} parent=1 // pred_check_branch
      %71 = sbr.rel (0) target = $region33
    $region32: #{vqvae_forward.15} parent=1 // pred_region
      %72 = dma.done [#allocation10], 256
    $region33: #{vqvae_forward.15} parent=1 // pred_fallthru
      _
    %p74 = scmp.eq.s32.totalorder 0, 0
    // Predicated region
    $region34: #{vqvae_forward.15} parent=1 // pred_check
      %p75 = pneg %p74
    $region35: #{vqvae_forward.15} parent=1 // pred_check_branch
      %77 = sbr.rel (%p75) target = $region37
    $region36: #{vqvae_forward.15} parent=1 // pred_region
      %78 = vst [vmem:[#allocation2] sm:$0xff] 0.0
      %79 = vst [vmem:[#allocation2 + $0x8] sm:$0xff] 0.0
      %80 = vst [vmem:[#allocation2 + $0x10] sm:$0xff] 0.0
      %81 = vst [vmem:[#allocation2 + $0x18] sm:$0xff] 0.0
    $region37: #{vqvae_forward.15} parent=1 // pred_fallthru
      _
    %v82 = vld [vmem:[#allocation2] sm:$0xff]
    %v83 = vld [vmem:[#allocation2 + $0x8] sm:$0xff]
    %v84 = vld [vmem:[#allocation2 + $0x10] sm:$0xff]
    %v85 = vld [vmem:[#allocation2 + $0x18] sm:$0xff]
    %v86 = vld [vmem:[#allocation3] sm:$0xff]
    %v87 = vld [vmem:[#allocation3 + $0x8] sm:$0xf]
    %v88 = vld [vmem:[#allocation3 + $0xc] sm:$0xff]
    %v89 = vld [vmem:[#allocation3 + $0x14] sm:$0xf]
    %v90 = vld [vmem:[#allocation3 + $0x18] sm:$0xff]
    %v91 = vld [vmem:[#allocation3 + $0x20] sm:$0xf]
    %v92 = vld [vmem:[#allocation3 + $0x24] sm:$0xff]
    %v93 = vld [vmem:[#allocation3 + $0x2c] sm:$0xf]
    %v94 = vmax.bf16 %v86, 0
    %v95 = vmax.bf16 %v87, 0
    %v96 = vmax.bf16 %v88, 0
    %v97 = vmax.bf16 %v89, 0
    %v98 = vmax.bf16 %v90, 0
    %v99 = vmax.bf16 %v91, 0
    %v100 = vmax.bf16 %v92, 0
    %v101 = vmax.bf16 %v93, 0
    %v102 = vld [vmem:[#allocation6] sm:$0xf]
    %v103 = vld [vmem:[#allocation6 + $0x4] sm:$0xf]
    %v104 = vld [vmem:[#allocation6 + $0x8] sm:$0xf]
    %v105 = vld [vmem:[#allocation6 + $0xc] sm:$0xf]
    %v106 = vld [vmem:[#allocation6 + $0x10] sm:$0xf]
    %v107 = vld [vmem:[#allocation6 + $0x14] sm:$0xf]
    %v108 = vld [vmem:[#allocation6 + $0x18] sm:$0xf]
    %v109 = vld [vmem:[#allocation6 + $0x1c] sm:$0xf]
    %v110 = vld [vmem:[#allocation6 + $0x20] sm:$0xf]
    %v111 = vld [vmem:[#allocation6 + $0x24] sm:$0xf]
    %v112 = vld [vmem:[#allocation6 + $0x28] sm:$0xf]
    %v113 = vld [vmem:[#allocation6 + $0x2c] sm:$0xf]
    %v114 = vld [vmem:[#allocation6 + $0x30] sm:$0xf]
    %v115 = vld [vmem:[#allocation6 + $0x34] sm:$0xf]
    %v116 = vld [vmem:[#allocation6 + $0x38] sm:$0xf]
    %v117 = vld [vmem:[#allocation6 + $0x3c] sm:$0xf]
    %v118 = vld [vmem:[#allocation6 + $0x40] sm:$0xf]
    %v119 = vld [vmem:[#allocation6 + $0x44] sm:$0xf]
    %v120 = vld [vmem:[#allocation6 + $0x48] sm:$0xf]
    %v121 = vld [vmem:[#allocation6 + $0x4c] sm:$0xf]
    %v122 = vld [vmem:[#allocation6 + $0x50] sm:$0xf]
    %v123 = vld [vmem:[#allocation6 + $0x54] sm:$0xf]
    %v124 = vld [vmem:[#allocation6 + $0x58] sm:$0xf]
    %v125 = vld [vmem:[#allocation6 + $0x5c] sm:$0xf]
    %v126 = vld [vmem:[#allocation6 + $0x60] sm:$0xf]
    %v127 = vld [vmem:[#allocation6 + $0x64] sm:$0xf]
    %v128 = vld [vmem:[#allocation6 + $0x68] sm:$0xf]
    %v129 = vld [vmem:[#allocation6 + $0x6c] sm:$0xf]
    %v130 = vld [vmem:[#allocation6 + $0x70] sm:$0xf]
    %v131 = vld [vmem:[#allocation6 + $0x74] sm:$0xf]
    %v132 = vld [vmem:[#allocation6 + $0x78] sm:$0xf]
    %v133 = vld [vmem:[#allocation6 + $0x7c] sm:$0xf]
    %v134 = vld [vmem:[#allocation6 + $0x80] sm:$0xf]
    %v135 = vld [vmem:[#allocation6 + $0x84] sm:$0xf]
    %v136 = vld [vmem:[#allocation6 + $0x88] sm:$0xf]
    %v137 = vld [vmem:[#allocation6 + $0x8c] sm:$0xf]
    %v138 = vld [vmem:[#allocation6 + $0x90] sm:$0xf]
    %v139 = vld [vmem:[#allocation6 + $0x94] sm:$0xf]
    %v140 = vld [vmem:[#allocation6 + $0x98] sm:$0xf]
    %v141 = vld [vmem:[#allocation6 + $0x9c] sm:$0xf]
    %v142 = vld [vmem:[#allocation6 + $0xa0] sm:$0xf]
    %v143 = vld [vmem:[#allocation6 + $0xa4] sm:$0xf]
    %v144 = vld [vmem:[#allocation6 + $0xa8] sm:$0xf]
    %v145 = vld [vmem:[#allocation6 + $0xac] sm:$0xf]
    %v146 = vld [vmem:[#allocation6 + $0xb0] sm:$0xf]
    %v147 = vld [vmem:[#allocation6 + $0xb4] sm:$0xf]
    %v148 = vld [vmem:[#allocation6 + $0xb8] sm:$0xf]
    %v149 = vld [vmem:[#allocation6 + $0xbc] sm:$0xf]
    %v158 = vunpack.c.l.b16 %v94
    %v159 = vunpack.c.h.b16 %v94
    %v160 = vunpack.c.l.b16 %v95
    %v161 = vunpack.c.l.b16 %v96
    %v162 = vunpack.c.h.b16 %v96
    %v163 = vunpack.c.l.b16 %v97
    %v164 = vunpack.c.l.b16 %v98
    %v165 = vunpack.c.h.b16 %v98
    %v166 = vunpack.c.l.b16 %v99
    %v167 = vunpack.c.l.b16 %v100
    %v168 = vunpack.c.h.b16 %v100
    %v169 = vunpack.c.l.b16 %v101
    %v170 = vpack.c.b16 %v161, %v158
    %v171 = vpack.c.b16 %v162, %v159
    %v172 = vpack.c.b16 %v163, %v160
    %v173 = vpack.c.b16 %v167, %v164
    %v174 = vpack.c.b16 %v168, %v165
    %v175 = vpack.c.b16 %v169, %v166
    %v230 = vunpack.c.l.b16 %v102
    %v231 = vunpack.c.l.b16 %v103
    %v232 = vunpack.c.l.b16 %v104
    %v233 = vunpack.c.l.b16 %v105
    %v234 = vunpack.c.l.b16 %v106
    %v235 = vunpack.c.l.b16 %v107
    %v236 = vunpack.c.l.b16 %v108
    %v237 = vunpack.c.l.b16 %v109
    %v238 = vunpack.c.l.b16 %v110
    %v239 = vunpack.c.l.b16 %v111
    %v240 = vunpack.c.l.b16 %v112
    %v241 = vunpack.c.l.b16 %v113
    %v242 = vunpack.c.l.b16 %v114
    %v243 = vunpack.c.l.b16 %v115
    %v244 = vunpack.c.l.b16 %v116
    %v245 = vunpack.c.l.b16 %v117
    %v246 = vunpack.c.l.b16 %v118
    %v247 = vunpack.c.l.b16 %v119
    %v248 = vunpack.c.l.b16 %v120
    %v249 = vunpack.c.l.b16 %v121
    %v250 = vunpack.c.l.b16 %v122
    %v251 = vunpack.c.l.b16 %v123
    %v252 = vunpack.c.l.b16 %v124
    %v253 = vunpack.c.l.b16 %v125
    %v254 = vunpack.c.l.b16 %v126
    %v255 = vunpack.c.l.b16 %v127
    %v256 = vunpack.c.l.b16 %v128
    %v257 = vunpack.c.l.b16 %v129
    %v258 = vunpack.c.l.b16 %v130
    %v259 = vunpack.c.l.b16 %v131
    %v260 = vunpack.c.l.b16 %v132
    %v261 = vunpack.c.l.b16 %v133
    %v262 = vunpack.c.l.b16 %v134
    %v263 = vunpack.c.l.b16 %v135
    %v264 = vunpack.c.l.b16 %v136
    %v265 = vunpack.c.l.b16 %v137
    %v266 = vunpack.c.l.b16 %v138
    %v267 = vunpack.c.l.b16 %v139
    %v268 = vunpack.c.l.b16 %v140
    %v269 = vunpack.c.l.b16 %v141
    %v270 = vunpack.c.l.b16 %v142
    %v271 = vunpack.c.l.b16 %v143
    %v272 = vunpack.c.l.b16 %v144
    %v273 = vunpack.c.l.b16 %v145
    %v274 = vunpack.c.l.b16 %v146
    %v275 = vunpack.c.l.b16 %v147
    %v276 = vunpack.c.l.b16 %v148
    %v277 = vunpack.c.l.b16 %v149
    %v278 = vpack.c.b16 %v231, %v230
    %v279 = vpack.c.b16 %v233, %v232
    %v280 = vpack.c.b16 %v235, %v234
    %v281 = vpack.c.b16 %v237, %v236
    %v282 = vpack.c.b16 %v239, %v238
    %v283 = vpack.c.b16 %v241, %v240
    %v284 = vpack.c.b16 %v243, %v242
    %v285 = vpack.c.b16 %v245, %v244
    %v286 = vpack.c.b16 %v247, %v246
    %v287 = vpack.c.b16 %v249, %v248
    %v288 = vpack.c.b16 %v251, %v250
    %v289 = vpack.c.b16 %v253, %v252
    %v290 = vpack.c.b16 %v255, %v254
    %v291 = vpack.c.b16 %v257, %v256
    %v292 = vpack.c.b16 %v259, %v258
    %v293 = vpack.c.b16 %v261, %v260
    %v294 = vpack.c.b16 %v263, %v262
    %v295 = vpack.c.b16 %v265, %v264
    %v296 = vpack.c.b16 %v267, %v266
    %v297 = vpack.c.b16 %v269, %v268
    %v298 = vpack.c.b16 %v271, %v270
    %v299 = vpack.c.b16 %v273, %v272
    %v300 = vpack.c.b16 %v275, %v274
    %v301 = vpack.c.b16 %v277, %v276
    %326 = vmatprep.subr.bf16.mxu0 0
    %327 = vmatpush1.bf16.msra.mxu0 %v278
    %328 = vmatprep.subr.bf16.mxu0 0
    %329 = vmatpush1.bf16.msra.mxu0 %v279
    %330 = vmatprep.subr.bf16.mxu0 0
    %331 = vmatpush1.bf16.msra.mxu0 %v280
    %332 = vmatprep.subr.bf16.mxu0 0
    %333 = vmatpush1.bf16.msra.mxu0 %v281
    %334 = vmatprep.subr.bf16.mxu0 0
    %335 = vmatpush1.bf16.msra.mxu0 %v282
    %336 = vmatprep.subr.bf16.mxu0 0
    %337 = vmatpush1.bf16.msra.mxu0 %v283
    %338 = vmatprep.subr.bf16.mxu0 0
    %339 = vmatpush1.bf16.msra.mxu0 %v284
    %340 = vmatprep.subr.bf16.mxu0 0
    %341 = vmatpush1.bf16.msra.mxu0 %v285
    %342 = vmatprep.subr.bf16.mxu0 0
    %343 = vmatpush1.bf16.msra.mxu0 %v286
    %344 = vmatprep.subr.bf16.mxu0 0
    %345 = vmatpush1.bf16.msra.mxu0 %v287
    %346 = vmatprep.subr.bf16.mxu0 0
    %347 = vmatpush1.bf16.msra.mxu0 %v288
    %348 = vmatprep.subr.bf16.mxu0 0
    %349 = vmatpush1.bf16.msra.mxu0 %v289
    %350 = vmatprep.subr.bf16.mxu0 0
    %351 = vmatpush1.bf16.msra.mxu0 %v290
    %352 = vmatprep.subr.bf16.mxu0 0
    %353 = vmatpush1.bf16.msra.mxu0 %v291
    %354 = vmatprep.subr.bf16.mxu0 0
    %355 = vmatpush1.bf16.msra.mxu0 %v292
    %356 = vmatprep.subr.bf16.mxu0 0
    %357 = vmatpush1.bf16.msra.mxu0 %v293
    %358 = vmatprep.mubr.bf16.mxu0 %v171
    %359 = vmatmul.mubr.bf16.gmra.mrb[0].mxu0 %v170
    %v360 = vpop.f32.mrb[0].mxu0
    %v361 = vadd.f32 0.0, %v360
    %v362 = vpop.f32.mrb[0].mxu0
    %v363 = vpop.f32.mrb[0].mxu0
    %v364 = vadd.f32 0.0, %v363
    %v365 = vpop.f32.mrb[0].mxu0
    %366 = vmatprep.mubr.bf16.mxu0 %v174
    %367 = vmatmul.mubr.bf16.gmra.mrb[0].mxu0 %v173
    %v368 = vpop.f32.mrb[0].mxu0
    %v369 = vadd.f32 0.0, %v368
    %v370 = vpop.f32.mrb[0].mxu0
    %v371 = vpop.f32.mrb[0].mxu0
    %v372 = vadd.f32 0.0, %v371
    %v373 = vpop.f32.mrb[0].mxu0
    %374 = vdwg.mxu0
    %375 = vmatprep.subr.bf16.mxu0 0
    %376 = vmatpush1.bf16.msra.mxu0 %v294
    %377 = vmatprep.subr.bf16.mxu0 0
    %378 = vmatpush1.bf16.msra.mxu0 %v295
    %379 = vmatprep.subr.bf16.mxu0 0
    %380 = vmatpush1.bf16.msra.mxu0 %v296
    %381 = vmatprep.subr.bf16.mxu0 0
    %382 = vmatpush1.bf16.msra.mxu0 %v297
    %383 = vmatprep.subr.bf16.mxu0 0
    %384 = vmatpush1.bf16.msra.mxu0 %v298
    %385 = vmatprep.subr.bf16.mxu0 0
    %386 = vmatpush1.bf16.msra.mxu0 %v299
    %387 = vmatprep.subr.bf16.mxu0 0
    %388 = vmatpush1.bf16.msra.mxu0 %v300
    %389 = vmatprep.subr.bf16.mxu0 0
    %390 = vmatpush1.bf16.msra.mxu0 %v301
    %391 = vmatprep.subr.bf16.mxu0 0
    %392 = vmatpush1.bf16.msra.mxu0 0
    %393 = vmatprep.subr.bf16.mxu0 0
    %394 = vmatpush1.bf16.msra.mxu0 0
    %395 = vmatprep.subr.bf16.mxu0 0
    %396 = vmatpush1.bf16.msra.mxu0 0
    %397 = vmatprep.subr.bf16.mxu0 0
    %398 = vmatpush1.bf16.msra.mxu0 0
    %399 = vmatprep.subr.bf16.mxu0 0
    %400 = vmatpush1.bf16.msra.mxu0 0
    %401 = vmatprep.subr.bf16.mxu0 0
    %402 = vmatpush1.bf16.msra.mxu0 0
    %403 = vmatprep.subr.bf16.mxu0 0
    %404 = vmatpush1.bf16.msra.mxu0 0
    %405 = vmatprep.subr.bf16.mxu0 0
    %406 = vmatpush1.bf16.msra.mxu0 0
    %407 = vmatprep.mubr.bf16.mxu0 0
    %408 = vmatmul.mubr.bf16.gmra.mrb[0].mxu0 %v172
    %v409 = vpop.f32.mrb[0].mxu0
    %v410 = vadd.f32 %v361, %v409
    %v411 = vpop.f32.mrb[0].mxu0
    %v412 = vpop.f32.mrb[0].mxu0
    %v413 = vadd.f32 %v364, %v412
    %v414 = vpop.f32.mrb[0].mxu0
    %415 = vmatprep.mubr.bf16.mxu0 0
    %416 = vmatmul.mubr.bf16.gmra.mrb[0].mxu0 %v175
    %v417 = vpop.f32.mrb[0].mxu0
    %v418 = vadd.f32 %v369, %v417
    %v419 = vpop.f32.mrb[0].mxu0
    %v420 = vpop.f32.mrb[0].mxu0
    %v421 = vadd.f32 %v372, %v420
    %v422 = vpop.f32.mrb[0].mxu0
    %423 = vdwg.mxu0
    %v424 = vadd.f32 %v82, %v410
    %v425 = vadd.f32 %v83, %v413
    %v426 = vadd.f32 %v84, %v418
    %v427 = vadd.f32 %v85, %v421
    %428 = vst [vmem:[#allocation2] sm:$0xff] %v424
    %429 = vst [vmem:[#allocation2 + $0x8] sm:$0xff] %v425
    %430 = vst [vmem:[#allocation2 + $0x10] sm:$0xff] %v426
    %431 = vst [vmem:[#allocation2 + $0x18] sm:$0xff] %v427
    // Predicated region
    $region38: #{vqvae_forward.15} parent=1 // pred_check
      %p432 = pneg %p74
    $region39: #{vqvae_forward.15} parent=1 // pred_check_branch
      %434 = sbr.rel (%p432) target = $region41
    $region40: #{vqvae_forward.15} parent=1 // pred_region
      %v435 = vld [vmem:[#allocation2] sm:$0xff]
      %v436 = vld [vmem:[#allocation2 + $0x8] sm:$0xff]
      %v437 = vld [vmem:[#allocation2 + $0x10] sm:$0xff]
      %v438 = vld [vmem:[#allocation2 + $0x18] sm:$0xff]
      %v439 = vmax.f32 %v435, 0.0
      %v440 = vmax.f32 %v436, 0.0
      %v441 = vmax.f32 %v437, 0.0
      %v442 = vmax.f32 %v438, 0.0
      %v443 = vpack.c.bf16 %v440, %v439
      %v444 = vpack.c.bf16 %v442, %v441
      %v445 = vld [vmem:[#allocation8] sm:$0xf]
      %v446 = vld [vmem:[#allocation8 + $0x4] sm:$0xf]
      %v447 = vld [vmem:[#allocation8 + $0x8] sm:$0xf]
      %v448 = vld [vmem:[#allocation8 + $0xc] sm:$0xf]
      %v449 = vld [vmem:[#allocation8 + $0x10] sm:$0xf]
      %v450 = vld [vmem:[#allocation8 + $0x14] sm:$0xf]
      %v451 = vld [vmem:[#allocation8 + $0x18] sm:$0xf]
      %v452 = vld [vmem:[#allocation8 + $0x1c] sm:$0xf]
      %v453 = vld [vmem:[#allocation8 + $0x20] sm:$0xf]
      %v454 = vld [vmem:[#allocation8 + $0x24] sm:$0xf]
      %v455 = vld [vmem:[#allocation8 + $0x28] sm:$0xf]
      %v456 = vld [vmem:[#allocation8 + $0x2c] sm:$0xf]
      %v457 = vld [vmem:[#allocation8 + $0x30] sm:$0xf]
      %v458 = vld [vmem:[#allocation8 + $0x34] sm:$0xf]
      %v459 = vld [vmem:[#allocation8 + $0x38] sm:$0xf]
      %v460 = vld [vmem:[#allocation8 + $0x3c] sm:$0xf]
      %v477 = vunpack.c.l.b16 %v445
      %v478 = vunpack.c.l.b16 %v446
      %v479 = vunpack.c.l.b16 %v447
      %v480 = vunpack.c.l.b16 %v448
      %v481 = vunpack.c.l.b16 %v449
      %v482 = vunpack.c.l.b16 %v450
      %v483 = vunpack.c.l.b16 %v451
      %v484 = vunpack.c.l.b16 %v452
      %v485 = vunpack.c.l.b16 %v453
      %v486 = vunpack.c.l.b16 %v454
      %v487 = vunpack.c.l.b16 %v455
      %v488 = vunpack.c.l.b16 %v456
      %v489 = vunpack.c.l.b16 %v457
      %v490 = vunpack.c.l.b16 %v458
      %v491 = vunpack.c.l.b16 %v459
      %v492 = vunpack.c.l.b16 %v460
      %v493 = vpack.c.b16 %v478, %v477
      %v494 = vpack.c.b16 %v480, %v479
      %v495 = vpack.c.b16 %v482, %v481
      %v496 = vpack.c.b16 %v484, %v483
      %v497 = vpack.c.b16 %v486, %v485
      %v498 = vpack.c.b16 %v488, %v487
      %v499 = vpack.c.b16 %v490, %v489
      %v500 = vpack.c.b16 %v492, %v491
      %509 = vmatprep.subr.bf16.mxu0 0
      %510 = vmatpush1.bf16.msra.mxu0 %v493
      %511 = vmatprep.subr.bf16.mxu0 0
      %512 = vmatpush1.bf16.msra.mxu0 %v494
      %513 = vmatprep.subr.bf16.mxu0 0
      %514 = vmatpush1.bf16.msra.mxu0 %v495
      %515 = vmatprep.subr.bf16.mxu0 0
      %516 = vmatpush1.bf16.msra.mxu0 %v496
      %517 = vmatprep.subr.bf16.mxu0 0
      %518 = vmatpush1.bf16.msra.mxu0 %v497
      %519 = vmatprep.subr.bf16.mxu0 0
      %520 = vmatpush1.bf16.msra.mxu0 %v498
      %521 = vmatprep.subr.bf16.mxu0 0
      %522 = vmatpush1.bf16.msra.mxu0 %v499
      %523 = vmatprep.subr.bf16.mxu0 0
      %524 = vmatpush1.bf16.msra.mxu0 %v500
      %525 = vmatprep.subr.bf16.mxu0 0
      %526 = vmatpush1.bf16.msra.mxu0 0
      %527 = vmatprep.subr.bf16.mxu0 0
      %528 = vmatpush1.bf16.msra.mxu0 0
      %529 = vmatprep.subr.bf16.mxu0 0
      %530 = vmatpush1.bf16.msra.mxu0 0
      %531 = vmatprep.subr.bf16.mxu0 0
      %532 = vmatpush1.bf16.msra.mxu0 0
      %533 = vmatprep.subr.bf16.mxu0 0
      %534 = vmatpush1.bf16.msra.mxu0 0
      %535 = vmatprep.subr.bf16.mxu0 0
      %536 = vmatpush1.bf16.msra.mxu0 0
      %537 = vmatprep.subr.bf16.mxu0 0
      %538 = vmatpush1.bf16.msra.mxu0 0
      %539 = vmatprep.subr.bf16.mxu0 0
      %540 = vmatpush1.bf16.msra.mxu0 0
      %541 = vmatprep.mubr.bf16.mxu0 0
      %542 = vmatmul.mubr.bf16.gmra.mrb[0].mxu0 %v443
      %v543 = vpop.f32.mrb[0].mxu0
      %v544 = vadd.f32 0.0, %v543
      %v545 = vpop.f32.mrb[0].mxu0
      %v546 = vpop.f32.mrb[0].mxu0
      %v547 = vadd.f32 0.0, %v546
      %v548 = vpop.f32.mrb[0].mxu0
      %549 = vmatprep.mubr.bf16.mxu0 0
      %550 = vmatmul.mubr.bf16.gmra.mrb[0].mxu0 %v444
      %v551 = vpop.f32.mrb[0].mxu0
      %v552 = vadd.f32 0.0, %v551
      %v553 = vpop.f32.mrb[0].mxu0
      %v554 = vpop.f32.mrb[0].mxu0
      %v555 = vadd.f32 0.0, %v554
      %v556 = vpop.f32.mrb[0].mxu0
      %557 = vdwg.mxu0
      %v558 = vld [vmem:[#allocation9] sm:$0xf]
      %v559 = vld [vmem:[#allocation9 + $0x4] sm:$0xf]
      %v560 = vld [vmem:[#allocation9 + $0x8] sm:$0xf]
      %v561 = vld [vmem:[#allocation9 + $0xc] sm:$0xf]
      %v562 = vunpack.c.l.bf16 %v558
      %v563 = vunpack.c.l.bf16 %v559
      %v564 = vunpack.c.l.bf16 %v560
      %v565 = vunpack.c.l.bf16 %v561
      %v566 = vadd.f32 %v562, %v544
      %v567 = vadd.f32 %v563, %v547
      %v568 = vadd.f32 %v564, %v552
      %v569 = vadd.f32 %v565, %v555
      %v570 = vpack.c.bf16 %v567, %v566
      %v571 = vpack.c.bf16 %v569, %v568
      %v574 = vunpack.c.l.b16 %v570
      %v575 = vunpack.c.h.b16 %v570
      %v576 = vunpack.c.l.b16 %v571
      %v577 = vunpack.c.h.b16 %v571
      %v578 = vpack.c.b16 %v574, %v574
      %v579 = vpack.c.b16 %v575, %v575
      %v580 = vpack.c.b16 %v576, %v576
      %v581 = vpack.c.b16 %v577, %v577
      %586 = vst [vmem:[#allocation11] sm:$0xf] %v578
      %587 = vst [vmem:[#allocation11 + $0x4] sm:$0xf] %v579
      %588 = vst [vmem:[#allocation11 + $0x8] sm:$0xf] %v580
      %589 = vst [vmem:[#allocation11 + $0xc] sm:$0xf] %v581
    $region41: #{vqvae_forward.15} parent=1 // pred_fallthru
      _
    // Predicated region
    $region42: #{vqvae_forward.15} parent=1 // pred_check
      _
    $region43: #{vqvae_forward.15} parent=1 // pred_check_branch
      %591 = sbr.rel (0) target = $region45
    $region44: #{vqvae_forward.15} parent=1 // pred_region
      %s593 = ssub.s32 256, 256
      %594 = vsyncadd [#allocation5], %s593
      %s595 = sshll.u32 [#allocation11], 4
      %s596 = int_to_ptr.vmem [resolvable:$true] %s595
      %601 = dma.vmem_to_hbm [thread:$0]  %s596, 256, %s4, [#allocation5], 64, 64, 4
    $region45: #{vqvae_forward.15} parent=1 // pred_fallthru
      _
    // Predicated region
    $region46: #{vqvae_forward.15} parent=1 // pred_check
      _
    $region47: #{vqvae_forward.15} parent=1 // pred_check_branch
      %603 = sbr.rel (0) target = $region49
    $region48: #{vqvae_forward.15} parent=1 // pred_region
      %604 = dma.done [#allocation5], 256
    $region49: #{vqvae_forward.15} parent=1 // pred_fallthru
      _
    %605 = vsyncpa [#allocation4], 1
    %606 = vsyncpa [#allocation7], 1
    %607 = vsyncpa [#allocation10], 1
    %608 = vsyncpa [#allocation5], 1

// kernel: vqvae_forward.19
$region0: #{vqvae_forward.19}
  #allocation0 [shape = 'u32[]', space=smem, size = 0x4, offset = 0x4, fixed_abs, tag = 'smem constant byte address 0x4 - core index']
  #allocation1 [shape = 'u32[144,128]{1,0:T(1,128)}', space=vmem, size = 0x12000, scoped, tag = 'internal scratch']
  #allocation2 [shape = 'f32[32,128]{1,0:T(8,128)}', space=vmem, size = 0x4000, scoped, tag = 'scratch operand']
  %s0 = inlined_call_operand.hbm [shape: bf16[32,128], index: 0, kind: input, shape index: {}]
  %s1 = inlined_call_operand.hbm [shape: bf16[128,128], index: 1, kind: input, shape index: {}]
  %s2 = inlined_call_operand.hbm [shape: f32[1,128], index: 2, kind: input, shape index: {}]
  %s3 = inlined_call_operand.hbm [shape: bf16[32,128], index: 3, kind: output, shape index: {}]
  %s4 = sld [smem:[#allocation0]]
  $region42: #{vqvae_forward.19} parent=0
    _
  %s6 = ssub.s32 1, %s4
  %s7 = scalar_select 0, %s6, %s4
  $region1: #{vqvae_forward.19} parent=0
    #allocation3 [shape = 'u8[8192]{0}', space=vmem, size = 0x2000, scoped, tag = 'input window, operand 0, single buffered']
    #allocation4 [shape = 's32[1]{0}', space=sflag, size = 0x4, scoped, tag = 'scoped memory for vqvae_forward.19']
    #allocation5 [shape = 's32[1]{0}', space=sflag, size = 0x4, scoped, tag = 'scoped memory for vqvae_forward.19']
    #allocation6 [shape = 'u8[32768]{0}', space=vmem, size = 0x8000, scoped, tag = 'input window, operand 1, single buffered']
    #allocation7 [shape = 's32[1]{0}', space=sflag, size = 0x4, scoped, tag = 'scoped memory for vqvae_forward.19']
    #allocation8 [shape = 'u8[512]{0}', space=vmem, size = 0x400, scoped, tag = 'input window, operand 2, single buffered']
    #allocation9 [shape = 'u8[8192]{0}', space=vmem, size = 0x2000, scoped, tag = 'output window, operand 0, single buffered']
    %8 = vsyncpa [#allocation4], 0
    %9 = vsyncpa [#allocation7], 0
    %10 = vsyncpa [#allocation5], 0
    // Predicated region
    $region2: #{vqvae_forward.19} parent=1 // pred_check
      _
    $region3: #{vqvae_forward.19} parent=1 // pred_check_branch
      %12 = sbr.rel (0) target = $region5
    $region4: #{vqvae_forward.19} parent=1 // pred_region
      %s14 = ssub.s32 256, 256
      %15 = vsyncadd [#allocation4], %s14
      %s16 = sshll.u32 [#allocation3], 4
      %s17 = int_to_ptr.vmem [resolvable:$true] %s16
      %22 = dma.hbm_to_vmem [thread:$0]  %s0, 256, %s17, [#allocation4], 64, 64, 4
    $region5: #{vqvae_forward.19} parent=1 // pred_fallthru
      _
    // Predicated region
    $region6: #{vqvae_forward.19} parent=1 // pred_check
      _
    $region7: #{vqvae_forward.19} parent=1 // pred_check_branch
      %24 = sbr.rel (0) target = $region9
    $region8: #{vqvae_forward.19} parent=1 // pred_region
      %s26 = ssub.s32 1024, 1024
      %27 = vsyncadd [#allocation7], %s26
      %s28 = sshll.u32 [#allocation6], 4
      %s29 = int_to_ptr.vmem [resolvable:$true] %s28
      %34 = dma.hbm_to_vmem [thread:$0]  %s1, 1024, %s29, [#allocation7], 64, 64, 4
    $region9: #{vqvae_forward.19} parent=1 // pred_fallthru
      _
    // Predicated region
    $region10: #{vqvae_forward.19} parent=1 // pred_check
      _
    $region11: #{vqvae_forward.19} parent=1 // pred_check_branch
      %36 = sbr.rel (0) target = $region13
    $region12: #{vqvae_forward.19} parent=1 // pred_region
      %s38 = ssub.s32 16, 16
      %39 = vsyncadd [#allocation7], %s38
      %s41 = sshll.u32 [#allocation8], 4
      %s42 = int_to_ptr.vmem [resolvable:$true] %s41
      %44 = dma.hbm_to_vmem [thread:$0]  %s2, 16, %s42, [#allocation7]
    $region13: #{vqvae_forward.19} parent=1 // pred_fallthru
      _
    // Predicated region
    $region14: #{vqvae_forward.19} parent=1 // pred_check
      _
    $region15: #{vqvae_forward.19} parent=1 // pred_check_branch
      %46 = sbr.rel (0) target = $region17
    $region16: #{vqvae_forward.19} parent=1 // pred_region
      %47 = dma.done [#allocation4], 256
    $region17: #{vqvae_forward.19} parent=1 // pred_fallthru
      _
    // Predicated region
    $region18: #{vqvae_forward.19} parent=1 // pred_check
      _
    $region19: #{vqvae_forward.19} parent=1 // pred_check_branch
      %49 = sbr.rel (0) target = $region21
    $region20: #{vqvae_forward.19} parent=1 // pred_region
      %50 = dma.done [#allocation7], 1024
    $region21: #{vqvae_forward.19} parent=1 // pred_fallthru
      _
    // Predicated region
    $region22: #{vqvae_forward.19} parent=1 // pred_check
      _
    $region23: #{vqvae_forward.19} parent=1 // pred_check_branch
      %52 = sbr.rel (0) target = $region25
    $region24: #{vqvae_forward.19} parent=1 // pred_region
      %53 = dma.done [#allocation7], 16
    $region25: #{vqvae_forward.19} parent=1 // pred_fallthru
      _
    %p55 = scmp.eq.s32.totalorder 0, 0
    // Predicated region
    $region26: #{vqvae_forward.19} parent=1 // pred_check
      %p56 = pneg %p55
    $region27: #{vqvae_forward.19} parent=1 // pred_check_branch
      %58 = sbr.rel (%p56) target = $region29
    $region28: #{vqvae_forward.19} parent=1 // pred_region
      %59 = vst [vmem:[#allocation2] sm:$0xff] 0.0
      %60 = vst [vmem:[#allocation2 + $0x8] sm:$0xff] 0.0
      %61 = vst [vmem:[#allocation2 + $0x10] sm:$0xff] 0.0
      %62 = vst [vmem:[#allocation2 + $0x18] sm:$0xff] 0.0
    $region29: #{vqvae_forward.19} parent=1 // pred_fallthru
      _
    %v63 = vld [vmem:[#allocation3] sm:$0xf]
    %v64 = vld [vmem:[#allocation3 + $0x4] sm:$0xf]
    %v65 = vld [vmem:[#allocation3 + $0x8] sm:$0xf]
    %v66 = vld [vmem:[#allocation3 + $0xc] sm:$0xf]
    %v67 = vld [vmem:[#allocation2] sm:$0xff]
    %v68 = vld [vmem:[#allocation2 + $0x8] sm:$0xff]
    %v69 = vld [vmem:[#allocation2 + $0x10] sm:$0xff]
    %v70 = vld [vmem:[#allocation2 + $0x18] sm:$0xff]
    %v71 = vld [vmem:[#allocation6] sm:$0xf]
    %v72 = vld [vmem:[#allocation6 + $0x4] sm:$0xf]
    %v73 = vld [vmem:[#allocation6 + $0x8] sm:$0xf]
    %v74 = vld [vmem:[#allocation6 + $0xc] sm:$0xf]
    %v75 = vld [vmem:[#allocation6 + $0x10] sm:$0xf]
    %v76 = vld [vmem:[#allocation6 + $0x14] sm:$0xf]
    %v77 = vld [vmem:[#allocation6 + $0x18] sm:$0xf]
    %v78 = vld [vmem:[#allocation6 + $0x1c] sm:$0xf]
    %v79 = vld [vmem:[#allocation6 + $0x20] sm:$0xf]
    %v80 = vld [vmem:[#allocation6 + $0x24] sm:$0xf]
    %v81 = vld [vmem:[#allocation6 + $0x28] sm:$0xf]
    %v82 = vld [vmem:[#allocation6 + $0x2c] sm:$0xf]
    %v83 = vld [vmem:[#allocation6 + $0x30] sm:$0xf]
    %v84 = vld [vmem:[#allocation6 + $0x34] sm:$0xf]
    %v85 = vld [vmem:[#allocation6 + $0x38] sm:$0xf]
    %v86 = vld [vmem:[#allocation6 + $0x3c] sm:$0xf]
    %v91 = vunpack.c.l.b16 %v63
    %v92 = vunpack.c.l.b16 %v64
    %v93 = vunpack.c.l.b16 %v65
    %v94 = vunpack.c.l.b16 %v66
    %v95 = vpack.c.b16 %v92, %v91
    %v96 = vpack.c.b16 %v94, %v93
    %v115 = vunpack.c.l.b16 %v71
    %v116 = vunpack.c.l.b16 %v72
    %v117 = vunpack.c.l.b16 %v73
    %v118 = vunpack.c.l.b16 %v74
    %v119 = vunpack.c.l.b16 %v75
    %v120 = vunpack.c.l.b16 %v76
    %v121 = vunpack.c.l.b16 %v77
    %v122 = vunpack.c.l.b16 %v78
    %v123 = vunpack.c.l.b16 %v79
    %v124 = vunpack.c.l.b16 %v80
    %v125 = vunpack.c.l.b16 %v81
    %v126 = vunpack.c.l.b16 %v82
    %v127 = vunpack.c.l.b16 %v83
    %v128 = vunpack.c.l.b16 %v84
    %v129 = vunpack.c.l.b16 %v85
    %v130 = vunpack.c.l.b16 %v86
    %v131 = vpack.c.b16 %v116, %v115
    %v132 = vpack.c.b16 %v118, %v117
    %v133 = vpack.c.b16 %v120, %v119
    %v134 = vpack.c.b16 %v122, %v121
    %v135 = vpack.c.b16 %v124, %v123
    %v136 = vpack.c.b16 %v126, %v125
    %v137 = vpack.c.b16 %v128, %v127
    %v138 = vpack.c.b16 %v130, %v129
    %147 = vmatprep.subr.bf16.mxu0 0
    %148 = vmatpush1.bf16.msra.mxu0 %v131
    %149 = vmatprep.subr.bf16.mxu0 0
    %150 = vmatpush1.bf16.msra.mxu0 %v132
    %151 = vmatprep.subr.bf16.mxu0 0
    %152 = vmatpush1.bf16.msra.mxu0 %v133
    %153 = vmatprep.subr.bf16.mxu0 0
    %154 = vmatpush1.bf16.msra.mxu0 %v134
    %155 = vmatprep.subr.bf16.mxu0 0
    %156 = vmatpush1.bf16.msra.mxu0 %v135
    %157 = vmatprep.subr.bf16.mxu0 0
    %158 = vmatpush1.bf16.msra.mxu0 %v136
    %159 = vmatprep.subr.bf16.mxu0 0
    %160 = vmatpush1.bf16.msra.mxu0 %v137
    %161 = vmatprep.subr.bf16.mxu0 0
    %162 = vmatpush1.bf16.msra.mxu0 %v138
    %163 = vmatprep.subr.bf16.mxu0 0
    %164 = vmatpush1.bf16.msra.mxu0 0
    %165 = vmatprep.subr.bf16.mxu0 0
    %166 = vmatpush1.bf16.msra.mxu0 0
    %167 = vmatprep.subr.bf16.mxu0 0
    %168 = vmatpush1.bf16.msra.mxu0 0
    %169 = vmatprep.subr.bf16.mxu0 0
    %170 = vmatpush1.bf16.msra.mxu0 0
    %171 = vmatprep.subr.bf16.mxu0 0
    %172 = vmatpush1.bf16.msra.mxu0 0
    %173 = vmatprep.subr.bf16.mxu0 0
    %174 = vmatpush1.bf16.msra.mxu0 0
    %175 = vmatprep.subr.bf16.mxu0 0
    %176 = vmatpush1.bf16.msra.mxu0 0
    %177 = vmatprep.subr.bf16.mxu0 0
    %178 = vmatpush1.bf16.msra.mxu0 0
    %179 = vmatprep.mubr.bf16.mxu0 0
    %180 = vmatmul.mubr.bf16.gmra.mrb[0].mxu0 %v95
    %v181 = vpop.f32.mrb[0].mxu0
    %v182 = vadd.f32 0.0, %v181
    %v183 = vpop.f32.mrb[0].mxu0
    %v184 = vpop.f32.mrb[0].mxu0
    %v185 = vadd.f32 0.0, %v184
    %v186 = vpop.f32.mrb[0].mxu0
    %187 = vmatprep.mubr.bf16.mxu0 0
    %188 = vmatmul.mubr.bf16.gmra.mrb[0].mxu0 %v96
    %v189 = vpop.f32.mrb[0].mxu0
    %v190 = vadd.f32 0.0, %v189
    %v191 = vpop.f32.mrb[0].mxu0
    %v192 = vpop.f32.mrb[0].mxu0
    %v193 = vadd.f32 0.0, %v192
    %v194 = vpop.f32.mrb[0].mxu0
    %195 = vdwg.mxu0
    %v196 = vadd.f32 %v67, %v182
    %v197 = vadd.f32 %v68, %v185
    %v198 = vadd.f32 %v69, %v190
    %v199 = vadd.f32 %v70, %v193
    %200 = vst [vmem:[#allocation2] sm:$0xff] %v196
    %201 = vst [vmem:[#allocation2 + $0x8] sm:$0xff] %v197
    %202 = vst [vmem:[#allocation2 + $0x10] sm:$0xff] %v198
    %203 = vst [vmem:[#allocation2 + $0x18] sm:$0xff] %v199
    // Predicated region
    $region30: #{vqvae_forward.19} parent=1 // pred_check
      %p204 = pneg %p55
    $region31: #{vqvae_forward.19} parent=1 // pred_check_branch
      %206 = sbr.rel (%p204) target = $region33
    $region32: #{vqvae_forward.19} parent=1 // pred_region
      %v207 = vld [vmem:[#allocation2] sm:$0xff]
      %v208 = vld [vmem:[#allocation2 + $0x8] sm:$0xff]
      %v209 = vld [vmem:[#allocation2 + $0x10] sm:$0xff]
      %v210 = vld [vmem:[#allocation2 + $0x18] sm:$0xff]
      %v211 = vld [vmem:[#allocation8] sm:$0x1]
      %v213 = vlaneseq
      %v214 = vshrl.u32 %v213, 7
      %v215 = vsub.s32 0, %v214
      %v216 = vrot.slane %v211, %v215
      %v218 = vadd.f32 %v207, %v216
      %v219 = vadd.f32 %v208, %v216
      %v220 = vadd.f32 %v209, %v216
      %v221 = vadd.f32 %v210, %v216
      %v222 = vpack.c.bf16 %v219, %v218
      %v223 = vpack.c.bf16 %v221, %v220
      %v226 = vunpack.c.l.b16 %v222
      %v227 = vunpack.c.h.b16 %v222
      %v228 = vunpack.c.l.b16 %v223
      %v229 = vunpack.c.h.b16 %v223
      %v230 = vpack.c.b16 %v226, %v226
      %v231 = vpack.c.b16 %v227, %v227
      %v232 = vpack.c.b16 %v228, %v228
      %v233 = vpack.c.b16 %v229, %v229
      %238 = vst [vmem:[#allocation9] sm:$0xf] %v230
      %239 = vst [vmem:[#allocation9 + $0x4] sm:$0xf] %v231
      %240 = vst [vmem:[#allocation9 + $0x8] sm:$0xf] %v232
      %241 = vst [vmem:[#allocation9 + $0xc] sm:$0xf] %v233
    $region33: #{vqvae_forward.19} parent=1 // pred_fallthru
      _
    // Predicated region
    $region34: #{vqvae_forward.19} parent=1 // pred_check
      _
    $region35: #{vqvae_forward.19} parent=1 // pred_check_branch
      %243 = sbr.rel (0) target = $region37
    $region36: #{vqvae_forward.19} parent=1 // pred_region
      %s245 = ssub.s32 256, 256
      %246 = vsyncadd [#allocation5], %s245
      %s247 = sshll.u32 [#allocation9], 4
      %s248 = int_to_ptr.vmem [resolvable:$true] %s247
      %253 = dma.vmem_to_hbm [thread:$0]  %s248, 256, %s3, [#allocation5], 64, 64, 4
    $region37: #{vqvae_forward.19} parent=1 // pred_fallthru
      _
    // Predicated region
    $region38: #{vqvae_forward.19} parent=1 // pred_check
      _
    $region39: #{vqvae_forward.19} parent=1 // pred_check_branch
      %255 = sbr.rel (0) target = $region41
    $region40: #{vqvae_forward.19} parent=1 // pred_region
      %256 = dma.done [#allocation5], 256
    $region41: #{vqvae_forward.19} parent=1 // pred_fallthru
      _
    %257 = vsyncpa [#allocation4], 1
    %258 = vsyncpa [#allocation7], 1
    %259 = vsyncpa [#allocation5], 1

// kernel: tile.13
$region0: #{tile.13}
  #allocation0 [shape = 's32[1]{0}', space=sflag, size = 0x4, scoped, tag = 'scoped memory for tile.13']
  %s0 = inlined_call_operand.vmem [shape: f32[16], index: 0, kind: input, shape index: {}]
  %s1 = inlined_call_operand.vmem [shape: f32[4,16], index: 1, kind: output, shape index: {}]
  // Predicated region
  $region2: #{tile.13} parent=0 // pred_check
    _
  $region3: #{tile.13} parent=0 // pred_check_branch
    %3 = sbr.rel (0) target = $region5
  $region4: #{tile.13} parent=0 // pred_region
    _
  $region5: #{tile.13} parent=0 // pred_fallthru
    _
  %v4 = vld [vmem:[%s0] ss:$0 sm:$0xff]
  %5 = vst [vmem:[%s1] sm:$0xf] %v4

// kernel: tile.14
$region0: #{tile.14}
  %s0 = inlined_call_operand.vmem [shape: f32[4,16], index: 0, kind: input, shape index: {}]
  %s1 = inlined_call_operand.vmem [shape: f32[1,64], index: 1, kind: output, shape index: {}]
  $region1: #{tile.14} parent=0
    #allocation0 [shape = 'u8[4096]{0}', space=vmem, size = 0x1000, scoped, tag = 'scoped mem for output reshape']
    #allocation1 [shape = 'u8[4096]{0}', space=vmem, size = 0x1000, scoped, tag = 'scoped mem for input reshape']
    %s3 = sshllo.u32 0, 4
    %v4 = vld [vmem:[%s0] sm:%s3]
    %5 = vst [vmem:[#allocation1] sm:%s3] %v4
    %v6 = vld [vmem:[#allocation1] sm:$0x1]
    %vm7 = vcmask 130048
    %8 = vst.msk [vmem:[#allocation0] sm:$0x1] %vm7, %v6
    %s9 = scalar_lea.vmem [#allocation1], 3
    %v10 = vld [vmem:[%s9] sm:$0x1]
    %11 = vrot.lane.b32.xlu0 %v10, 48
    %v12 = vpop.permute.xlu0 %11
    %vm13 = vcmask 523648
    %14 = vst.msk [vmem:[#allocation0] sm:$0x1] %vm13, %v12
    %s15 = scalar_lea.vmem [#allocation1], 2
    %v16 = vld [vmem:[%s15] sm:$0x1]
    %17 = vrot.lane.b32.xlu0 %v16, 32
    %v18 = vpop.permute.xlu0 %17
    %vm19 = vcmask 392448
    %20 = vst.msk [vmem:[#allocation0] sm:$0x1] %vm19, %v18
    %s21 = scalar_lea.vmem [#allocation1], 1
    %v22 = vld [vmem:[%s21] sm:$0x1]
    %23 = vrot.lane.b32.xlu0 %v22, 16
    %v24 = vpop.permute.xlu0 %23
    %vm25 = vcmask 261248
    %26 = vst.msk [vmem:[#allocation0] sm:$0x1] %vm25, %v24
    %s28 = sshllo.u32 0, 1
    %v30 = vld [vmem:[#allocation0] sm:%s28]
    %s31 = sshllo.u32 0, 1
    %32 = vst [vmem:[%s1] sm:%s31] %v30

// kernel: vqvae_forward.22
$region0: #{vqvae_forward.22}
  #allocation0 [shape = 'u32[]', space=smem, size = 0x4, offset = 0x4, fixed_abs, tag = 'smem constant byte address 0x4 - core index']
  #allocation1 [shape = 'u32[144,128]{1,0:T(1,128)}', space=vmem, size = 0x12000, scoped, tag = 'internal scratch']
  #allocation2 [shape = 'f32[32,128]{1,0:T(8,128)}', space=vmem, size = 0x4000, scoped, tag = 'scratch operand']
  %s0 = inlined_call_operand.hbm [shape: bf16[32,384], index: 0, kind: input, shape index: {}]
  %s1 = inlined_call_operand.hbm [shape: bf16[384,128], index: 1, kind: input, shape index: {}]
  %s2 = inlined_call_operand.hbm [shape: f32[1,128], index: 2, kind: input, shape index: {}]
  %s3 = inlined_call_operand.hbm [shape: bf16[32,128], index: 3, kind: output, shape index: {}]
  %s4 = sld [smem:[#allocation0]]
  $region42: #{vqvae_forward.22} parent=0
    _
  %s6 = ssub.s32 1, %s4
  %s7 = scalar_select 0, %s6, %s4
  $region1: #{vqvae_forward.22} parent=0
    #allocation3 [shape = 'u8[24576]{0}', space=vmem, size = 0x6000, scoped, tag = 'input window, operand 0, single buffered']
    #allocation4 [shape = 's32[1]{0}', space=sflag, size = 0x4, scoped, tag = 'scoped memory for vqvae_forward.22']
    #allocation5 [shape = 's32[1]{0}', space=sflag, size = 0x4, scoped, tag = 'scoped memory for vqvae_forward.22']
    #allocation6 [shape = 'u8[98304]{0}', space=vmem, size = 0x18000, scoped, tag = 'input window, operand 1, single buffered']
    #allocation7 [shape = 's32[1]{0}', space=sflag, size = 0x4, scoped, tag = 'scoped memory for vqvae_forward.22']
    #allocation8 [shape = 'u8[512]{0}', space=vmem, size = 0x400, scoped, tag = 'input window, operand 2, single buffered']
    #allocation9 [shape = 'u8[8192]{0}', space=vmem, size = 0x2000, scoped, tag = 'output window, operand 0, single buffered']
    %8 = vsyncpa [#allocation4], 0
    %9 = vsyncpa [#allocation7], 0
    %10 = vsyncpa [#allocation5], 0
    // Predicated region
    $region2: #{vqvae_forward.22} parent=1 // pred_check
      _
    $region3: #{vqvae_forward.22} parent=1 // pred_check_branch
      %12 = sbr.rel (0) target = $region5
    $region4: #{vqvae_forward.22} parent=1 // pred_region
      %s14 = ssub.s32 768, 768
      %15 = vsyncadd [#allocation4], %s14
      %s16 = sshll.u32 [#allocation3], 4
      %s17 = int_to_ptr.vmem [resolvable:$true] %s16
      %22 = dma.hbm_to_vmem [thread:$0]  %s0, 768, %s17, [#allocation4], 192, 192, 12
    $region5: #{vqvae_forward.22} parent=1 // pred_fallthru
      _
    // Predicated region
    $region6: #{vqvae_forward.22} parent=1 // pred_check
      _
    $region7: #{vqvae_forward.22} parent=1 // pred_check_branch
      %24 = sbr.rel (0) target = $region9
    $region8: #{vqvae_forward.22} parent=1 // pred_region
      %s26 = ssub.s32 3072, 3072
      %27 = vsyncadd [#allocation7], %s26
      %s28 = sshll.u32 [#allocation6], 4
      %s29 = int_to_ptr.vmem [resolvable:$true] %s28
      %34 = dma.hbm_to_vmem [thread:$0]  %s1, 3072, %s29, [#allocation7], 64, 64, 4
    $region9: #{vqvae_forward.22} parent=1 // pred_fallthru
      _
    // Predicated region
    $region10: #{vqvae_forward.22} parent=1 // pred_check
      _
    $region11: #{vqvae_forward.22} parent=1 // pred_check_branch
      %36 = sbr.rel (0) target = $region13
    $region12: #{vqvae_forward.22} parent=1 // pred_region
      %s38 = ssub.s32 16, 16
      %39 = vsyncadd [#allocation7], %s38
      %s41 = sshll.u32 [#allocation8], 4
      %s42 = int_to_ptr.vmem [resolvable:$true] %s41
      %44 = dma.hbm_to_vmem [thread:$0]  %s2, 16, %s42, [#allocation7]
    $region13: #{vqvae_forward.22} parent=1 // pred_fallthru
      _
    // Predicated region
    $region14: #{vqvae_forward.22} parent=1 // pred_check
      _
    $region15: #{vqvae_forward.22} parent=1 // pred_check_branch
      %46 = sbr.rel (0) target = $region17
    $region16: #{vqvae_forward.22} parent=1 // pred_region
      %47 = dma.done [#allocation4], 768
    $region17: #{vqvae_forward.22} parent=1 // pred_fallthru
      _
    // Predicated region
    $region18: #{vqvae_forward.22} parent=1 // pred_check
      _
    $region19: #{vqvae_forward.22} parent=1 // pred_check_branch
      %49 = sbr.rel (0) target = $region21
    $region20: #{vqvae_forward.22} parent=1 // pred_region
      %50 = dma.done [#allocation7], 3072
    $region21: #{vqvae_forward.22} parent=1 // pred_fallthru
      _
    // Predicated region
    $region22: #{vqvae_forward.22} parent=1 // pred_check
      _
    $region23: #{vqvae_forward.22} parent=1 // pred_check_branch
      %52 = sbr.rel (0) target = $region25
    $region24: #{vqvae_forward.22} parent=1 // pred_region
      %53 = dma.done [#allocation7], 16
    $region25: #{vqvae_forward.22} parent=1 // pred_fallthru
      _
    %p55 = scmp.eq.s32.totalorder 0, 0
    // Predicated region
    $region26: #{vqvae_forward.22} parent=1 // pred_check
      %p56 = pneg %p55
    $region27: #{vqvae_forward.22} parent=1 // pred_check_branch
      %58 = sbr.rel (%p56) target = $region29
    $region28: #{vqvae_forward.22} parent=1 // pred_region
      %59 = vst [vmem:[#allocation2] sm:$0xff] 0.0
      %60 = vst [vmem:[#allocation2 + $0x8] sm:$0xff] 0.0
      %61 = vst [vmem:[#allocation2 + $0x10] sm:$0xff] 0.0
      %62 = vst [vmem:[#allocation2 + $0x18] sm:$0xff] 0.0
    $region29: #{vqvae_forward.22} parent=1 // pred_fallthru
      _
    %v63 = vld [vmem:[#allocation3] sm:$0xff]
    %v64 = vld [vmem:[#allocation3 + $0x8] sm:$0xf]
    %v65 = vld [vmem:[#allocation3 + $0xc] sm:$0xff]
    %v66 = vld [vmem:[#allocation3 + $0x14] sm:$0xf]
    %v67 = vld [vmem:[#allocation3 + $0x18] sm:$0xff]
    %v68 = vld [vmem:[#allocation3 + $0x20] sm:$0xf]
    %v69 = vld [vmem:[#allocation3 + $0x24] sm:$0xff]
    %v70 = vld [vmem:[#allocation3 + $0x2c] sm:$0xf]
    %v71 = vmax.bf16 %v63, 0
    %v72 = vmax.bf16 %v64, 0
    %v73 = vmax.bf16 %v65, 0
    %v74 = vmax.bf16 %v66, 0
    %v75 = vmax.bf16 %v67, 0
    %v76 = vmax.bf16 %v68, 0
    %v77 = vmax.bf16 %v69, 0
    %v78 = vmax.bf16 %v70, 0
    %v79 = vld [vmem:[#allocation2] sm:$0xff]
    %v80 = vld [vmem:[#allocation2 + $0x8] sm:$0xff]
    %v81 = vld [vmem:[#allocation2 + $0x10] sm:$0xff]
    %v82 = vld [vmem:[#allocation2 + $0x18] sm:$0xff]
    %v83 = vld [vmem:[#allocation6] sm:$0xf]
    %v84 = vld [vmem:[#allocation6 + $0x4] sm:$0xf]
    %v85 = vld [vmem:[#allocation6 + $0x8] sm:$0xf]
    %v86 = vld [vmem:[#allocation6 + $0xc] sm:$0xf]
    %v87 = vld [vmem:[#allocation6 + $0x10] sm:$0xf]
    %v88 = vld [vmem:[#allocation6 + $0x14] sm:$0xf]
    %v89 = vld [vmem:[#allocation6 + $0x18] sm:$0xf]
    %v90 = vld [vmem:[#allocation6 + $0x1c] sm:$0xf]
    %v91 = vld [vmem:[#allocation6 + $0x20] sm:$0xf]
    %v92 = vld [vmem:[#allocation6 + $0x24] sm:$0xf]
    %v93 = vld [vmem:[#allocation6 + $0x28] sm:$0xf]
    %v94 = vld [vmem:[#allocation6 + $0x2c] sm:$0xf]
    %v95 = vld [vmem:[#allocation6 + $0x30] sm:$0xf]
    %v96 = vld [vmem:[#allocation6 + $0x34] sm:$0xf]
    %v97 = vld [vmem:[#allocation6 + $0x38] sm:$0xf]
    %v98 = vld [vmem:[#allocation6 + $0x3c] sm:$0xf]
    %v99 = vld [vmem:[#allocation6 + $0x40] sm:$0xf]
    %v100 = vld [vmem:[#allocation6 + $0x44] sm:$0xf]
    %v101 = vld [vmem:[#allocation6 + $0x48] sm:$0xf]
    %v102 = vld [vmem:[#allocation6 + $0x4c] sm:$0xf]
    %v103 = vld [vmem:[#allocation6 + $0x50] sm:$0xf]
    %v104 = vld [vmem:[#allocation6 + $0x54] sm:$0xf]
    %v105 = vld [vmem:[#allocation6 + $0x58] sm:$0xf]
    %v106 = vld [vmem:[#allocation6 + $0x5c] sm:$0xf]
    %v107 = vld [vmem:[#allocation6 + $0x60] sm:$0xf]
    %v108 = vld [vmem:[#allocation6 + $0x64] sm:$0xf]
    %v109 = vld [vmem:[#allocation6 + $0x68] sm:$0xf]
    %v110 = vld [vmem:[#allocation6 + $0x6c] sm:$0xf]
    %v111 = vld [vmem:[#allocation6 + $0x70] sm:$0xf]
    %v112 = vld [vmem:[#allocation6 + $0x74] sm:$0xf]
    %v113 = vld [vmem:[#allocation6 + $0x78] sm:$0xf]
    %v114 = vld [vmem:[#allocation6 + $0x7c] sm:$0xf]
    %v115 = vld [vmem:[#allocation6 + $0x80] sm:$0xf]
    %v116 = vld [vmem:[#allocation6 + $0x84] sm:$0xf]
    %v117 = vld [vmem:[#allocation6 + $0x88] sm:$0xf]
    %v118 = vld [vmem:[#allocation6 + $0x8c] sm:$0xf]
    %v119 = vld [vmem:[#allocation6 + $0x90] sm:$0xf]
    %v120 = vld [vmem:[#allocation6 + $0x94] sm:$0xf]
    %v121 = vld [vmem:[#allocation6 + $0x98] sm:$0xf]
    %v122 = vld [vmem:[#allocation6 + $0x9c] sm:$0xf]
    %v123 = vld [vmem:[#allocation6 + $0xa0] sm:$0xf]
    %v124 = vld [vmem:[#allocation6 + $0xa4] sm:$0xf]
    %v125 = vld [vmem:[#allocation6 + $0xa8] sm:$0xf]
    %v126 = vld [vmem:[#allocation6 + $0xac] sm:$0xf]
    %v127 = vld [vmem:[#allocation6 + $0xb0] sm:$0xf]
    %v128 = vld [vmem:[#allocation6 + $0xb4] sm:$0xf]
    %v129 = vld [vmem:[#allocation6 + $0xb8] sm:$0xf]
    %v130 = vld [vmem:[#allocation6 + $0xbc] sm:$0xf]
    %v139 = vunpack.c.l.b16 %v71
    %v140 = vunpack.c.h.b16 %v71
    %v141 = vunpack.c.l.b16 %v72
    %v142 = vunpack.c.l.b16 %v73
    %v143 = vunpack.c.h.b16 %v73
    %v144 = vunpack.c.l.b16 %v74
    %v145 = vunpack.c.l.b16 %v75
    %v146 = vunpack.c.h.b16 %v75
    %v147 = vunpack.c.l.b16 %v76
    %v148 = vunpack.c.l.b16 %v77
    %v149 = vunpack.c.h.b16 %v77
    %v150 = vunpack.c.l.b16 %v78
    %v151 = vpack.c.b16 %v142, %v139
    %v152 = vpack.c.b16 %v143, %v140
    %v153 = vpack.c.b16 %v144, %v141
    %v154 = vpack.c.b16 %v148, %v145
    %v155 = vpack.c.b16 %v149, %v146
    %v156 = vpack.c.b16 %v150, %v147
    %v211 = vunpack.c.l.b16 %v83
    %v212 = vunpack.c.l.b16 %v84
    %v213 = vunpack.c.l.b16 %v85
    %v214 = vunpack.c.l.b16 %v86
    %v215 = vunpack.c.l.b16 %v87
    %v216 = vunpack.c.l.b16 %v88
    %v217 = vunpack.c.l.b16 %v89
    %v218 = vunpack.c.l.b16 %v90
    %v219 = vunpack.c.l.b16 %v91
    %v220 = vunpack.c.l.b16 %v92
    %v221 = vunpack.c.l.b16 %v93
    %v222 = vunpack.c.l.b16 %v94
    %v223 = vunpack.c.l.b16 %v95
    %v224 = vunpack.c.l.b16 %v96
    %v225 = vunpack.c.l.b16 %v97
    %v226 = vunpack.c.l.b16 %v98
    %v227 = vunpack.c.l.b16 %v99
    %v228 = vunpack.c.l.b16 %v100
    %v229 = vunpack.c.l.b16 %v101
    %v230 = vunpack.c.l.b16 %v102
    %v231 = vunpack.c.l.b16 %v103
    %v232 = vunpack.c.l.b16 %v104
    %v233 = vunpack.c.l.b16 %v105
    %v234 = vunpack.c.l.b16 %v106
    %v235 = vunpack.c.l.b16 %v107
    %v236 = vunpack.c.l.b16 %v108
    %v237 = vunpack.c.l.b16 %v109
    %v238 = vunpack.c.l.b16 %v110
    %v239 = vunpack.c.l.b16 %v111
    %v240 = vunpack.c.l.b16 %v112
    %v241 = vunpack.c.l.b16 %v113
    %v242 = vunpack.c.l.b16 %v114
    %v243 = vunpack.c.l.b16 %v115
    %v244 = vunpack.c.l.b16 %v116
    %v245 = vunpack.c.l.b16 %v117
    %v246 = vunpack.c.l.b16 %v118
    %v247 = vunpack.c.l.b16 %v119
    %v248 = vunpack.c.l.b16 %v120
    %v249 = vunpack.c.l.b16 %v121
    %v250 = vunpack.c.l.b16 %v122
    %v251 = vunpack.c.l.b16 %v123
    %v252 = vunpack.c.l.b16 %v124
    %v253 = vunpack.c.l.b16 %v125
    %v254 = vunpack.c.l.b16 %v126
    %v255 = vunpack.c.l.b16 %v127
    %v256 = vunpack.c.l.b16 %v128
    %v257 = vunpack.c.l.b16 %v129
    %v258 = vunpack.c.l.b16 %v130
    %v259 = vpack.c.b16 %v212, %v211
    %v260 = vpack.c.b16 %v214, %v213
    %v261 = vpack.c.b16 %v216, %v215
    %v262 = vpack.c.b16 %v218, %v217
    %v263 = vpack.c.b16 %v220, %v219
    %v264 = vpack.c.b16 %v222, %v221
    %v265 = vpack.c.b16 %v224, %v223
    %v266 = vpack.c.b16 %v226, %v225
    %v267 = vpack.c.b16 %v228, %v227
    %v268 = vpack.c.b16 %v230, %v229
    %v269 = vpack.c.b16 %v232, %v231
    %v270 = vpack.c.b16 %v234, %v233
    %v271 = vpack.c.b16 %v236, %v235
    %v272 = vpack.c.b16 %v238, %v237
    %v273 = vpack.c.b16 %v240, %v239
    %v274 = vpack.c.b16 %v242, %v241
    %v275 = vpack.c.b16 %v244, %v243
    %v276 = vpack.c.b16 %v246, %v245
    %v277 = vpack.c.b16 %v248, %v247
    %v278 = vpack.c.b16 %v250, %v249
    %v279 = vpack.c.b16 %v252, %v251
    %v280 = vpack.c.b16 %v254, %v253
    %v281 = vpack.c.b16 %v256, %v255
    %v282 = vpack.c.b16 %v258, %v257
    %307 = vmatprep.subr.bf16.mxu0 0
    %308 = vmatpush1.bf16.msra.mxu0 %v259
    %309 = vmatprep.subr.bf16.mxu0 0
    %310 = vmatpush1.bf16.msra.mxu0 %v260
    %311 = vmatprep.subr.bf16.mxu0 0
    %312 = vmatpush1.bf16.msra.mxu0 %v261
    %313 = vmatprep.subr.bf16.mxu0 0
    %314 = vmatpush1.bf16.msra.mxu0 %v262
    %315 = vmatprep.subr.bf16.mxu0 0
    %316 = vmatpush1.bf16.msra.mxu0 %v263
    %317 = vmatprep.subr.bf16.mxu0 0
    %318 = vmatpush1.bf16.msra.mxu0 %v264
    %319 = vmatprep.subr.bf16.mxu0 0
    %320 = vmatpush1.bf16.msra.mxu0 %v265
    %321 = vmatprep.subr.bf16.mxu0 0
    %322 = vmatpush1.bf16.msra.mxu0 %v266
    %323 = vmatprep.subr.bf16.mxu0 0
    %324 = vmatpush1.bf16.msra.mxu0 %v267
    %325 = vmatprep.subr.bf16.mxu0 0
    %326 = vmatpush1.bf16.msra.mxu0 %v268
    %327 = vmatprep.subr.bf16.mxu0 0
    %328 = vmatpush1.bf16.msra.mxu0 %v269
    %329 = vmatprep.subr.bf16.mxu0 0
    %330 = vmatpush1.bf16.msra.mxu0 %v270
    %331 = vmatprep.subr.bf16.mxu0 0
    %332 = vmatpush1.bf16.msra.mxu0 %v271
    %333 = vmatprep.subr.bf16.mxu0 0
    %334 = vmatpush1.bf16.msra.mxu0 %v272
    %335 = vmatprep.subr.bf16.mxu0 0
    %336 = vmatpush1.bf16.msra.mxu0 %v273
    %337 = vmatprep.subr.bf16.mxu0 0
    %338 = vmatpush1.bf16.msra.mxu0 %v274
    %339 = vmatprep.mubr.bf16.mxu0 %v152
    %340 = vmatmul.mubr.bf16.gmra.mrb[0].mxu0 %v151
    %v341 = vpop.f32.mrb[0].mxu0
    %v342 = vadd.f32 0.0, %v341
    %v343 = vpop.f32.mrb[0].mxu0
    %v344 = vpop.f32.mrb[0].mxu0
    %v345 = vadd.f32 0.0, %v344
    %v346 = vpop.f32.mrb[0].mxu0
    %347 = vmatprep.mubr.bf16.mxu0 %v155
    %348 = vmatmul.mubr.bf16.gmra.mrb[0].mxu0 %v154
    %v349 = vpop.f32.mrb[0].mxu0
    %v350 = vadd.f32 0.0, %v349
    %v351 = vpop.f32.mrb[0].mxu0
    %v352 = vpop.f32.mrb[0].mxu0
    %v353 = vadd.f32 0.0, %v352
    %v354 = vpop.f32.mrb[0].mxu0
    %355 = vdwg.mxu0
    %356 = vmatprep.subr.bf16.mxu0 0
    %357 = vmatpush1.bf16.msra.mxu0 %v275
    %358 = vmatprep.subr.bf16.mxu0 0
    %359 = vmatpush1.bf16.msra.mxu0 %v276
    %360 = vmatprep.subr.bf16.mxu0 0
    %361 = vmatpush1.bf16.msra.mxu0 %v277
    %362 = vmatprep.subr.bf16.mxu0 0
    %363 = vmatpush1.bf16.msra.mxu0 %v278
    %364 = vmatprep.subr.bf16.mxu0 0
    %365 = vmatpush1.bf16.msra.mxu0 %v279
    %366 = vmatprep.subr.bf16.mxu0 0
    %367 = vmatpush1.bf16.msra.mxu0 %v280
    %368 = vmatprep.subr.bf16.mxu0 0
    %369 = vmatpush1.bf16.msra.mxu0 %v281
    %370 = vmatprep.subr.bf16.mxu0 0
    %371 = vmatpush1.bf16.msra.mxu0 %v282
    %372 = vmatprep.subr.bf16.mxu0 0
    %373 = vmatpush1.bf16.msra.mxu0 0
    %374 = vmatprep.subr.bf16.mxu0 0
    %375 = vmatpush1.bf16.msra.mxu0 0
    %376 = vmatprep.subr.bf16.mxu0 0
    %377 = vmatpush1.bf16.msra.mxu0 0
    %378 = vmatprep.subr.bf16.mxu0 0
    %379 = vmatpush1.bf16.msra.mxu0 0
    %380 = vmatprep.subr.bf16.mxu0 0
    %381 = vmatpush1.bf16.msra.mxu0 0
    %382 = vmatprep.subr.bf16.mxu0 0
    %383 = vmatpush1.bf16.msra.mxu0 0
    %384 = vmatprep.subr.bf16.mxu0 0
    %385 = vmatpush1.bf16.msra.mxu0 0
    %386 = vmatprep.subr.bf16.mxu0 0
    %387 = vmatpush1.bf16.msra.mxu0 0
    %388 = vmatprep.mubr.bf16.mxu0 0
    %389 = vmatmul.mubr.bf16.gmra.mrb[0].mxu0 %v153
    %v390 = vpop.f32.mrb[0].mxu0
    %v391 = vadd.f32 %v342, %v390
    %v392 = vpop.f32.mrb[0].mxu0
    %v393 = vpop.f32.mrb[0].mxu0
    %v394 = vadd.f32 %v345, %v393
    %v395 = vpop.f32.mrb[0].mxu0
    %396 = vmatprep.mubr.bf16.mxu0 0
    %397 = vmatmul.mubr.bf16.gmra.mrb[0].mxu0 %v156
    %v398 = vpop.f32.mrb[0].mxu0
    %v399 = vadd.f32 %v350, %v398
    %v400 = vpop.f32.mrb[0].mxu0
    %v401 = vpop.f32.mrb[0].mxu0
    %v402 = vadd.f32 %v353, %v401
    %v403 = vpop.f32.mrb[0].mxu0
    %404 = vdwg.mxu0
    %v405 = vadd.f32 %v79, %v391
    %v406 = vadd.f32 %v80, %v394
    %v407 = vadd.f32 %v81, %v399
    %v408 = vadd.f32 %v82, %v402
    %409 = vst [vmem:[#allocation2] sm:$0xff] %v405
    %410 = vst [vmem:[#allocation2 + $0x8] sm:$0xff] %v406
    %411 = vst [vmem:[#allocation2 + $0x10] sm:$0xff] %v407
    %412 = vst [vmem:[#allocation2 + $0x18] sm:$0xff] %v408
    // Predicated region
    $region30: #{vqvae_forward.22} parent=1 // pred_check
      %p413 = pneg %p55
    $region31: #{vqvae_forward.22} parent=1 // pred_check_branch
      %415 = sbr.rel (%p413) target = $region33
    $region32: #{vqvae_forward.22} parent=1 // pred_region
      %v416 = vld [vmem:[#allocation2] sm:$0xff]
      %v417 = vld [vmem:[#allocation2 + $0x8] sm:$0xff]
      %v418 = vld [vmem:[#allocation2 + $0x10] sm:$0xff]
      %v419 = vld [vmem:[#allocation2 + $0x18] sm:$0xff]
      %v420 = vld [vmem:[#allocation8] sm:$0x1]
      %v422 = vlaneseq
      %v423 = vshrl.u32 %v422, 7
      %v424 = vsub.s32 0, %v423
      %v425 = vrot.slane %v420, %v424
      %v427 = vadd.f32 %v416, %v425
      %v428 = vadd.f32 %v417, %v425
      %v429 = vadd.f32 %v418, %v425
      %v430 = vadd.f32 %v419, %v425
      %v431 = vmax.f32 %v427, 0.0
      %v432 = vmax.f32 %v428, 0.0
      %v433 = vmax.f32 %v429, 0.0
      %v434 = vmax.f32 %v430, 0.0
      %v435 = vpack.c.bf16 %v432, %v431
      %v436 = vpack.c.bf16 %v434, %v433
      %v439 = vunpack.c.l.b16 %v435
      %v440 = vunpack.c.h.b16 %v435
      %v441 = vunpack.c.l.b16 %v436
      %v442 = vunpack.c.h.b16 %v436
      %v443 = vpack.c.b16 %v439, %v439
      %v444 = vpack.c.b16 %v440, %v440
      %v445 = vpack.c.b16 %v441, %v441
      %v446 = vpack.c.b16 %v442, %v442
      %451 = vst [vmem:[#allocation9] sm:$0xf] %v443
      %452 = vst [vmem:[#allocation9 + $0x4] sm:$0xf] %v444
      %453 = vst [vmem:[#allocation9 + $0x8] sm:$0xf] %v445
      %454 = vst [vmem:[#allocation9 + $0xc] sm:$0xf] %v446
    $region33: #{vqvae_forward.22} parent=1 // pred_fallthru
      _
    // Predicated region
    $region34: #{vqvae_forward.22} parent=1 // pred_check
      _
    $region35: #{vqvae_forward.22} parent=1 // pred_check_branch
      %456 = sbr.rel (0) target = $region37
    $region36: #{vqvae_forward.22} parent=1 // pred_region
      %s458 = ssub.s32 256, 256
      %459 = vsyncadd [#allocation5], %s458
      %s460 = sshll.u32 [#allocation9], 4
      %s461 = int_to_ptr.vmem [resolvable:$true] %s460
      %466 = dma.vmem_to_hbm [thread:$0]  %s461, 256, %s3, [#allocation5], 64, 64, 4
    $region37: #{vqvae_forward.22} parent=1 // pred_fallthru
      _
    // Predicated region
    $region38: #{vqvae_forward.22} parent=1 // pred_check
      _
    $region39: #{vqvae_forward.22} parent=1 // pred_check_branch
      %468 = sbr.rel (0) target = $region41
    $region40: #{vqvae_forward.22} parent=1 // pred_region
      %469 = dma.done [#allocation5], 256
    $region41: #{vqvae_forward.22} parent=1 // pred_fallthru
      _
    %470 = vsyncpa [#allocation4], 1
    %471 = vsyncpa [#allocation7], 1
    %472 = vsyncpa [#allocation5], 1

// kernel: tile.18
$region0: #{tile.18}
  #allocation0 [shape = 's32[1]{0}', space=sflag, size = 0x4, scoped, tag = 'scoped memory for tile.18']
  %s0 = inlined_call_operand.vmem [shape: f32[3], index: 0, kind: input, shape index: {}]
  %s1 = inlined_call_operand.vmem [shape: f32[4,3], index: 1, kind: output, shape index: {}]
  // Predicated region
  $region2: #{tile.18} parent=0 // pred_check
    _
  $region3: #{tile.18} parent=0 // pred_check_branch
    %3 = sbr.rel (0) target = $region5
  $region4: #{tile.18} parent=0 // pred_region
    _
  $region5: #{tile.18} parent=0 // pred_fallthru
    _
  %v4 = vld [vmem:[%s0] ss:$0 sm:$0xff]
  %5 = vst [vmem:[%s1] sm:$0xf] %v4

// kernel: tile.19
$region0: #{tile.19}
  %s0 = inlined_call_operand.vmem [shape: f32[4,3], index: 0, kind: input, shape index: {}]
  %s1 = inlined_call_operand.vmem [shape: f32[1,12], index: 1, kind: output, shape index: {}]
  $region1: #{tile.19} parent=0
    #allocation0 [shape = 'u8[4096]{0}', space=vmem, size = 0x1000, scoped, tag = 'scoped mem for output reshape']
    #allocation1 [shape = 'u8[4096]{0}', space=vmem, size = 0x1000, scoped, tag = 'scoped mem for input reshape']
    %s3 = sshllo.u32 0, 4
    %v4 = vld [vmem:[%s0] sm:%s3]
    %5 = vst [vmem:[#allocation1] sm:%s3] %v4
    %v6 = vld [vmem:[#allocation1] sm:$0x1]
    %vm7 = vcmask 23552
    %8 = vst.msk [vmem:[#allocation0] sm:$0x1] %vm7, %v6
    %s9 = scalar_lea.vmem [#allocation1], 3
    %v10 = vld [vmem:[%s9] sm:$0x1]
    %11 = vrot.lane.b32.xlu0 %v10, 9
    %v12 = vpop.permute.xlu0 %11
    %vm13 = vcmask 97352
    %14 = vst.msk [vmem:[#allocation0] sm:$0x1] %vm13, %v12
    %s15 = scalar_lea.vmem [#allocation1], 2
    %v16 = vld [vmem:[%s15] sm:$0x1]
    %17 = vrot.lane.b32.xlu0 %v16, 6
    %v18 = vpop.permute.xlu0 %17
    %vm19 = vcmask 72752
    %20 = vst.msk [vmem:[#allocation0] sm:$0x1] %vm19, %v18
    %s21 = scalar_lea.vmem [#allocation1], 1
    %v22 = vld [vmem:[%s21] sm:$0x1]
    %23 = vrot.lane.b32.xlu0 %v22, 3
    %v24 = vpop.permute.xlu0 %23
    %vm25 = vcmask 48152
    %26 = vst.msk [vmem:[#allocation0] sm:$0x1] %vm25, %v24
    %s28 = sshllo.u32 0, 1
    %v30 = vld [vmem:[#allocation0] sm:%s28]
    %s31 = sshllo.u32 0, 1
    %32 = vst [vmem:[%s1] sm:%s31] %v30

// kernel: vqvae_forward.23
$region0: #{vqvae_forward.23}
  #allocation0 [shape = 'u32[]', space=smem, size = 0x4, offset = 0x4, fixed_abs, tag = 'smem constant byte address 0x4 - core index']
  #allocation1 [shape = 'u32[144,128]{1,0:T(1,128)}', space=vmem, size = 0x12000, scoped, tag = 'internal scratch']
  #allocation2 [shape = 'f32[128,128]{1,0:T(8,128)}', space=vmem, size = 0x10000, scoped, tag = 'scratch operand']
  %s0 = inlined_call_operand.hbm [shape: bf16[128,256], index: 0, kind: input, shape index: {}]
  %s1 = inlined_call_operand.hbm [shape: bf16[256,128], index: 1, kind: input, shape index: {}]
  %s2 = inlined_call_operand.hbm [shape: f32[1,128], index: 2, kind: input, shape index: {}]
  %s3 = inlined_call_operand.hbm [shape: f32[128,128], index: 3, kind: output, shape index: {}]
  %s4 = sld [smem:[#allocation0]]
  $region42: #{vqvae_forward.23} parent=0
    _
  %s6 = ssub.s32 1, %s4
  %s7 = scalar_select 0, %s6, %s4
  $region1: #{vqvae_forward.23} parent=0
    #allocation3 [shape = 'u8[65536]{0}', space=vmem, size = 0x10000, scoped, tag = 'input window, operand 0, single buffered']
    #allocation4 [shape = 's32[1]{0}', space=sflag, size = 0x4, scoped, tag = 'scoped memory for vqvae_forward.23']
    #allocation5 [shape = 's32[1]{0}', space=sflag, size = 0x4, scoped, tag = 'scoped memory for vqvae_forward.23']
    #allocation6 [shape = 'u8[65536]{0}', space=vmem, size = 0x10000, scoped, tag = 'input window, operand 1, single buffered']
    #allocation7 [shape = 's32[1]{0}', space=sflag, size = 0x4, scoped, tag = 'scoped memory for vqvae_forward.23']
    #allocation8 [shape = 'u8[512]{0}', space=vmem, size = 0x400, scoped, tag = 'input window, operand 2, single buffered']
    #allocation9 [shape = 'u8[65536]{0}', space=vmem, size = 0x10000, scoped, tag = 'output window, operand 0, single buffered']
    %8 = vsyncpa [#allocation4], 0
    %9 = vsyncpa [#allocation7], 0
    %10 = vsyncpa [#allocation5], 0
    // Predicated region
    $region2: #{vqvae_forward.23} parent=1 // pred_check
      _
    $region3: #{vqvae_forward.23} parent=1 // pred_check_branch
      %12 = sbr.rel (0) target = $region5
    $region4: #{vqvae_forward.23} parent=1 // pred_region
      %s14 = ssub.s32 2048, 2048
      %15 = vsyncadd [#allocation4], %s14
      %s16 = sshll.u32 [#allocation3], 4
      %s17 = int_to_ptr.vmem [resolvable:$true] %s16
      %22 = dma.hbm_to_vmem [thread:$0]  %s0, 2048, %s17, [#allocation4], 128, 128, 8
    $region5: #{vqvae_forward.23} parent=1 // pred_fallthru
      _
    // Predicated region
    $region6: #{vqvae_forward.23} parent=1 // pred_check
      _
    $region7: #{vqvae_forward.23} parent=1 // pred_check_branch
      %24 = sbr.rel (0) target = $region9
    $region8: #{vqvae_forward.23} parent=1 // pred_region
      %s26 = ssub.s32 2048, 2048
      %27 = vsyncadd [#allocation7], %s26
      %s28 = sshll.u32 [#allocation6], 4
      %s29 = int_to_ptr.vmem [resolvable:$true] %s28
      %34 = dma.hbm_to_vmem [thread:$0]  %s1, 2048, %s29, [#allocation7], 64, 64, 4
    $region9: #{vqvae_forward.23} parent=1 // pred_fallthru
      _
    // Predicated region
    $region10: #{vqvae_forward.23} parent=1 // pred_check
      _
    $region11: #{vqvae_forward.23} parent=1 // pred_check_branch
      %36 = sbr.rel (0) target = $region13
    $region12: #{vqvae_forward.23} parent=1 // pred_region
      %s38 = ssub.s32 16, 16
      %39 = vsyncadd [#allocation7], %s38
      %s41 = sshll.u32 [#allocation8], 4
      %s42 = int_to_ptr.vmem [resolvable:$true] %s41
      %44 = dma.hbm_to_vmem [thread:$0]  %s2, 16, %s42, [#allocation7]
    $region13: #{vqvae_forward.23} parent=1 // pred_fallthru
      _
    // Predicated region
    $region14: #{vqvae_forward.23} parent=1 // pred_check
      _
    $region15: #{vqvae_forward.23} parent=1 // pred_check_branch
      %46 = sbr.rel (0) target = $region17
    $region16: #{vqvae_forward.23} parent=1 // pred_region
      %47 = dma.done [#allocation4], 2048
    $region17: #{vqvae_forward.23} parent=1 // pred_fallthru
      _
    // Predicated region
    $region18: #{vqvae_forward.23} parent=1 // pred_check
      _
    $region19: #{vqvae_forward.23} parent=1 // pred_check_branch
      %49 = sbr.rel (0) target = $region21
    $region20: #{vqvae_forward.23} parent=1 // pred_region
      %50 = dma.done [#allocation7], 2048
    $region21: #{vqvae_forward.23} parent=1 // pred_fallthru
      _
    // Predicated region
    $region22: #{vqvae_forward.23} parent=1 // pred_check
      _
    $region23: #{vqvae_forward.23} parent=1 // pred_check_branch
      %52 = sbr.rel (0) target = $region25
    $region24: #{vqvae_forward.23} parent=1 // pred_region
      %53 = dma.done [#allocation7], 16
    $region25: #{vqvae_forward.23} parent=1 // pred_fallthru
      _
    %p55 = scmp.eq.s32.totalorder 0, 0
    // Predicated region
    $region26: #{vqvae_forward.23} parent=1 // pred_check
      %p56 = pneg %p55
    $region27: #{vqvae_forward.23} parent=1 // pred_check_branch
      %58 = sbr.rel (%p56) target = $region29
    $region28: #{vqvae_forward.23} parent=1 // pred_region
      %59 = vst [vmem:[#allocation2] sm:$0xff] 0.0
      %60 = vst [vmem:[#allocation2 + $0x8] sm:$0xff] 0.0
      %61 = vst [vmem:[#allocation2 + $0x10] sm:$0xff] 0.0
      %62 = vst [vmem:[#allocation2 + $0x18] sm:$0xff] 0.0
      %63 = vst [vmem:[#allocation2 + $0x20] sm:$0xff] 0.0
      %64 = vst [vmem:[#allocation2 + $0x28] sm:$0xff] 0.0
      %65 = vst [vmem:[#allocation2 + $0x30] sm:$0xff] 0.0
      %66 = vst [vmem:[#allocation2 + $0x38] sm:$0xff] 0.0
      %67 = vst [vmem:[#allocation2 + $0x40] sm:$0xff] 0.0
      %68 = vst [vmem:[#allocation2 + $0x48] sm:$0xff] 0.0
      %69 = vst [vmem:[#allocation2 + $0x50] sm:$0xff] 0.0
      %70 = vst [vmem:[#allocation2 + $0x58] sm:$0xff] 0.0
      %71 = vst [vmem:[#allocation2 + $0x60] sm:$0xff] 0.0
      %72 = vst [vmem:[#allocation2 + $0x68] sm:$0xff] 0.0
      %73 = vst [vmem:[#allocation2 + $0x70] sm:$0xff] 0.0
      %74 = vst [vmem:[#allocation2 + $0x78] sm:$0xff] 0.0
    $region29: #{vqvae_forward.23} parent=1 // pred_fallthru
      _
    %v75 = vld [vmem:[#allocation3] sm:$0xff]
    %v76 = vld [vmem:[#allocation3 + $0x8] sm:$0xff]
    %v77 = vld [vmem:[#allocation3 + $0x10] sm:$0xff]
    %v78 = vld [vmem:[#allocation3 + $0x18] sm:$0xff]
    %v79 = vld [vmem:[#allocation3 + $0x20] sm:$0xff]
    %v80 = vld [vmem:[#allocation3 + $0x28] sm:$0xff]
    %v81 = vld [vmem:[#allocation3 + $0x30] sm:$0xff]
    %v82 = vld [vmem:[#allocation3 + $0x38] sm:$0xff]
    %v83 = vld [vmem:[#allocation3 + $0x40] sm:$0xff]
    %v84 = vld [vmem:[#allocation3 + $0x48] sm:$0xff]
    %v85 = vld [vmem:[#allocation3 + $0x50] sm:$0xff]
    %v86 = vld [vmem:[#allocation3 + $0x58] sm:$0xff]
    %v87 = vld [vmem:[#allocation3 + $0x60] sm:$0xff]
    %v88 = vld [vmem:[#allocation3 + $0x68] sm:$0xff]
    %v89 = vld [vmem:[#allocation3 + $0x70] sm:$0xff]
    %v90 = vld [vmem:[#allocation3 + $0x78] sm:$0xff]
    %v91 = vld [vmem:[#allocation2] sm:$0xff]
    %v92 = vld [vmem:[#allocation2 + $0x8] sm:$0xff]
    %v93 = vld [vmem:[#allocation2 + $0x10] sm:$0xff]
    %v94 = vld [vmem:[#allocation2 + $0x18] sm:$0xff]
    %v95 = vld [vmem:[#allocation2 + $0x20] sm:$0xff]
    %v96 = vld [vmem:[#allocation2 + $0x28] sm:$0xff]
    %v97 = vld [vmem:[#allocation2 + $0x30] sm:$0xff]
    %v98 = vld [vmem:[#allocation2 + $0x38] sm:$0xff]
    %v99 = vld [vmem:[#allocation2 + $0x40] sm:$0xff]
    %v100 = vld [vmem:[#allocation2 + $0x48] sm:$0xff]
    %v101 = vld [vmem:[#allocation2 + $0x50] sm:$0xff]
    %v102 = vld [vmem:[#allocation2 + $0x58] sm:$0xff]
    %v103 = vld [vmem:[#allocation2 + $0x60] sm:$0xff]
    %v104 = vld [vmem:[#allocation2 + $0x68] sm:$0xff]
    %v105 = vld [vmem:[#allocation2 + $0x70] sm:$0xff]
    %v106 = vld [vmem:[#allocation2 + $0x78] sm:$0xff]
    %v107 = vld [vmem:[#allocation6] sm:$0xf]
    %v108 = vld [vmem:[#allocation6 + $0x4] sm:$0xf]
    %v109 = vld [vmem:[#allocation6 + $0x8] sm:$0xf]
    %v110 = vld [vmem:[#allocation6 + $0xc] sm:$0xf]
    %v111 = vld [vmem:[#allocation6 + $0x10] sm:$0xf]
    %v112 = vld [vmem:[#allocation6 + $0x14] sm:$0xf]
    %v113 = vld [vmem:[#allocation6 + $0x18] sm:$0xf]
    %v114 = vld [vmem:[#allocation6 + $0x1c] sm:$0xf]
    %v115 = vld [vmem:[#allocation6 + $0x20] sm:$0xf]
    %v116 = vld [vmem:[#allocation6 + $0x24] sm:$0xf]
    %v117 = vld [vmem:[#allocation6 + $0x28] sm:$0xf]
    %v118 = vld [vmem:[#allocation6 + $0x2c] sm:$0xf]
    %v119 = vld [vmem:[#allocation6 + $0x30] sm:$0xf]
    %v120 = vld [vmem:[#allocation6 + $0x34] sm:$0xf]
    %v121 = vld [vmem:[#allocation6 + $0x38] sm:$0xf]
    %v122 = vld [vmem:[#allocation6 + $0x3c] sm:$0xf]
    %v123 = vld [vmem:[#allocation6 + $0x40] sm:$0xf]
    %v124 = vld [vmem:[#allocation6 + $0x44] sm:$0xf]
    %v125 = vld [vmem:[#allocation6 + $0x48] sm:$0xf]
    %v126 = vld [vmem:[#allocation6 + $0x4c] sm:$0xf]
    %v127 = vld [vmem:[#allocation6 + $0x50] sm:$0xf]
    %v128 = vld [vmem:[#allocation6 + $0x54] sm:$0xf]
    %v129 = vld [vmem:[#allocation6 + $0x58] sm:$0xf]
    %v130 = vld [vmem:[#allocation6 + $0x5c] sm:$0xf]
    %v131 = vld [vmem:[#allocation6 + $0x60] sm:$0xf]
    %v132 = vld [vmem:[#allocation6 + $0x64] sm:$0xf]
    %v133 = vld [vmem:[#allocation6 + $0x68] sm:$0xf]
    %v134 = vld [vmem:[#allocation6 + $0x6c] sm:$0xf]
    %v135 = vld [vmem:[#allocation6 + $0x70] sm:$0xf]
    %v136 = vld [vmem:[#allocation6 + $0x74] sm:$0xf]
    %v137 = vld [vmem:[#allocation6 + $0x78] sm:$0xf]
    %v138 = vld [vmem:[#allocation6 + $0x7c] sm:$0xf]
    %v155 = vunpack.c.l.b16 %v75
    %v156 = vunpack.c.h.b16 %v75
    %v157 = vunpack.c.l.b16 %v76
    %v158 = vunpack.c.h.b16 %v76
    %v159 = vunpack.c.l.b16 %v77
    %v160 = vunpack.c.h.b16 %v77
    %v161 = vunpack.c.l.b16 %v78
    %v162 = vunpack.c.h.b16 %v78
    %v163 = vunpack.c.l.b16 %v79
    %v164 = vunpack.c.h.b16 %v79
    %v165 = vunpack.c.l.b16 %v80
    %v166 = vunpack.c.h.b16 %v80
    %v167 = vunpack.c.l.b16 %v81
    %v168 = vunpack.c.h.b16 %v81
    %v169 = vunpack.c.l.b16 %v82
    %v170 = vunpack.c.h.b16 %v82
    %v171 = vunpack.c.l.b16 %v83
    %v172 = vunpack.c.h.b16 %v83
    %v173 = vunpack.c.l.b16 %v84
    %v174 = vunpack.c.h.b16 %v84
    %v175 = vunpack.c.l.b16 %v85
    %v176 = vunpack.c.h.b16 %v85
    %v177 = vunpack.c.l.b16 %v86
    %v178 = vunpack.c.h.b16 %v86
    %v179 = vunpack.c.l.b16 %v87
    %v180 = vunpack.c.h.b16 %v87
    %v181 = vunpack.c.l.b16 %v88
    %v182 = vunpack.c.h.b16 %v88
    %v183 = vunpack.c.l.b16 %v89
    %v184 = vunpack.c.h.b16 %v89
    %v185 = vunpack.c.l.b16 %v90
    %v186 = vunpack.c.h.b16 %v90
    %v187 = vpack.c.b16 %v157, %v155
    %v188 = vpack.c.b16 %v158, %v156
    %v189 = vpack.c.b16 %v161, %v159
    %v190 = vpack.c.b16 %v162, %v160
    %v191 = vpack.c.b16 %v165, %v163
    %v192 = vpack.c.b16 %v166, %v164
    %v193 = vpack.c.b16 %v169, %v167
    %v194 = vpack.c.b16 %v170, %v168
    %v195 = vpack.c.b16 %v173, %v171
    %v196 = vpack.c.b16 %v174, %v172
    %v197 = vpack.c.b16 %v177, %v175
    %v198 = vpack.c.b16 %v178, %v176
    %v199 = vpack.c.b16 %v181, %v179
    %v200 = vpack.c.b16 %v182, %v180
    %v201 = vpack.c.b16 %v185, %v183
    %v202 = vpack.c.b16 %v186, %v184
    %v251 = vunpack.c.l.b16 %v107
    %v252 = vunpack.c.l.b16 %v108
    %v253 = vunpack.c.l.b16 %v109
    %v254 = vunpack.c.l.b16 %v110
    %v255 = vunpack.c.l.b16 %v111
    %v256 = vunpack.c.l.b16 %v112
    %v257 = vunpack.c.l.b16 %v113
    %v258 = vunpack.c.l.b16 %v114
    %v259 = vunpack.c.l.b16 %v115
    %v260 = vunpack.c.l.b16 %v116
    %v261 = vunpack.c.l.b16 %v117
    %v262 = vunpack.c.l.b16 %v118
    %v263 = vunpack.c.l.b16 %v119
    %v264 = vunpack.c.l.b16 %v120
    %v265 = vunpack.c.l.b16 %v121
    %v266 = vunpack.c.l.b16 %v122
    %v267 = vunpack.c.l.b16 %v123
    %v268 = vunpack.c.l.b16 %v124
    %v269 = vunpack.c.l.b16 %v125
    %v270 = vunpack.c.l.b16 %v126
    %v271 = vunpack.c.l.b16 %v127
    %v272 = vunpack.c.l.b16 %v128
    %v273 = vunpack.c.l.b16 %v129
    %v274 = vunpack.c.l.b16 %v130
    %v275 = vunpack.c.l.b16 %v131
    %v276 = vunpack.c.l.b16 %v132
    %v277 = vunpack.c.l.b16 %v133
    %v278 = vunpack.c.l.b16 %v134
    %v279 = vunpack.c.l.b16 %v135
    %v280 = vunpack.c.l.b16 %v136
    %v281 = vunpack.c.l.b16 %v137
    %v282 = vunpack.c.l.b16 %v138
    %v283 = vpack.c.b16 %v252, %v251
    %v284 = vpack.c.b16 %v254, %v253
    %v285 = vpack.c.b16 %v256, %v255
    %v286 = vpack.c.b16 %v258, %v257
    %v287 = vpack.c.b16 %v260, %v259
    %v288 = vpack.c.b16 %v262, %v261
    %v289 = vpack.c.b16 %v264, %v263
    %v290 = vpack.c.b16 %v266, %v265
    %v291 = vpack.c.b16 %v268, %v267
    %v292 = vpack.c.b16 %v270, %v269
    %v293 = vpack.c.b16 %v272, %v271
    %v294 = vpack.c.b16 %v274, %v273
    %v295 = vpack.c.b16 %v276, %v275
    %v296 = vpack.c.b16 %v278, %v277
    %v297 = vpack.c.b16 %v280, %v279
    %v298 = vpack.c.b16 %v282, %v281
    %315 = vmatprep.subr.bf16.mxu0 0
    %316 = vmatpush1.bf16.msra.mxu0 %v283
    %317 = vmatprep.subr.bf16.mxu0 0
    %318 = vmatpush1.bf16.msra.mxu0 %v284
    %319 = vmatprep.subr.bf16.mxu0 0
    %320 = vmatpush1.bf16.msra.mxu0 %v285
    %321 = vmatprep.subr.bf16.mxu0 0
    %322 = vmatpush1.bf16.msra.mxu0 %v286
    %323 = vmatprep.subr.bf16.mxu0 0
    %324 = vmatpush1.bf16.msra.mxu0 %v287
    %325 = vmatprep.subr.bf16.mxu0 0
    %326 = vmatpush1.bf16.msra.mxu0 %v288
    %327 = vmatprep.subr.bf16.mxu0 0
    %328 = vmatpush1.bf16.msra.mxu0 %v289
    %329 = vmatprep.subr.bf16.mxu0 0
    %330 = vmatpush1.bf16.msra.mxu0 %v290
    %331 = vmatprep.subr.bf16.mxu0 0
    %332 = vmatpush1.bf16.msra.mxu0 %v291
    %333 = vmatprep.subr.bf16.mxu0 0
    %334 = vmatpush1.bf16.msra.mxu0 %v292
    %335 = vmatprep.subr.bf16.mxu0 0
    %336 = vmatpush1.bf16.msra.mxu0 %v293
    %337 = vmatprep.subr.bf16.mxu0 0
    %338 = vmatpush1.bf16.msra.mxu0 %v294
    %339 = vmatprep.subr.bf16.mxu0 0
    %340 = vmatpush1.bf16.msra.mxu0 %v295
    %341 = vmatprep.subr.bf16.mxu0 0
    %342 = vmatpush1.bf16.msra.mxu0 %v296
    %343 = vmatprep.subr.bf16.mxu0 0
    %344 = vmatpush1.bf16.msra.mxu0 %v297
    %345 = vmatprep.subr.bf16.mxu0 0
    %346 = vmatpush1.bf16.msra.mxu0 %v298
    %347 = vmatprep.mubr.bf16.mxu0 %v188
    %348 = vmatmul.mubr.bf16.gmra.mrb[0].mxu0 %v187
    %v349 = vpop.f32.mrb[0].mxu0
    %v350 = vadd.f32 0.0, %v349
    %v351 = vpop.f32.mrb[0].mxu0
    %v352 = vpop.f32.mrb[0].mxu0
    %v353 = vadd.f32 0.0, %v352
    %v354 = vpop.f32.mrb[0].mxu0
    %355 = vmatprep.mubr.bf16.mxu0 %v190
    %356 = vmatmul.mubr.bf16.gmra.mrb[0].mxu0 %v189
    %v357 = vpop.f32.mrb[0].mxu0
    %v358 = vadd.f32 0.0, %v357
    %v359 = vpop.f32.mrb[0].mxu0
    %v360 = vpop.f32.mrb[0].mxu0
    %v361 = vadd.f32 0.0, %v360
    %v362 = vpop.f32.mrb[0].mxu0
    %363 = vmatprep.mubr.bf16.mxu0 %v192
    %364 = vmatmul.mubr.bf16.gmra.mrb[0].mxu0 %v191
    %v365 = vpop.f32.mrb[0].mxu0
    %v366 = vadd.f32 0.0, %v365
    %v367 = vpop.f32.mrb[0].mxu0
    %v368 = vpop.f32.mrb[0].mxu0
    %v369 = vadd.f32 0.0, %v368
    %v370 = vpop.f32.mrb[0].mxu0
    %371 = vmatprep.mubr.bf16.mxu0 %v194
    %372 = vmatmul.mubr.bf16.gmra.mrb[0].mxu0 %v193
    %v373 = vpop.f32.mrb[0].mxu0
    %v374 = vadd.f32 0.0, %v373
    %v375 = vpop.f32.mrb[0].mxu0
    %v376 = vpop.f32.mrb[0].mxu0
    %v377 = vadd.f32 0.0, %v376
    %v378 = vpop.f32.mrb[0].mxu0
    %379 = vmatprep.mubr.bf16.mxu0 %v196
    %380 = vmatmul.mubr.bf16.gmra.mrb[0].mxu0 %v195
    %v381 = vpop.f32.mrb[0].mxu0
    %v382 = vadd.f32 0.0, %v381
    %v383 = vpop.f32.mrb[0].mxu0
    %v384 = vpop.f32.mrb[0].mxu0
    %v385 = vadd.f32 0.0, %v384
    %v386 = vpop.f32.mrb[0].mxu0
    %387 = vmatprep.mubr.bf16.mxu0 %v198
    %388 = vmatmul.mubr.bf16.gmra.mrb[0].mxu0 %v197
    %v389 = vpop.f32.mrb[0].mxu0
    %v390 = vadd.f32 0.0, %v389
    %v391 = vpop.f32.mrb[0].mxu0
    %v392 = vpop.f32.mrb[0].mxu0
    %v393 = vadd.f32 0.0, %v392
    %v394 = vpop.f32.mrb[0].mxu0
    %395 = vmatprep.mubr.bf16.mxu0 %v200
    %396 = vmatmul.mubr.bf16.gmra.mrb[0].mxu0 %v199
    %v397 = vpop.f32.mrb[0].mxu0
    %v398 = vadd.f32 0.0, %v397
    %v399 = vpop.f32.mrb[0].mxu0
    %v400 = vpop.f32.mrb[0].mxu0
    %v401 = vadd.f32 0.0, %v400
    %v402 = vpop.f32.mrb[0].mxu0
    %403 = vmatprep.mubr.bf16.mxu0 %v202
    %404 = vmatmul.mubr.bf16.gmra.mrb[0].mxu0 %v201
    %v405 = vpop.f32.mrb[0].mxu0
    %v406 = vadd.f32 0.0, %v405
    %v407 = vpop.f32.mrb[0].mxu0
    %v408 = vpop.f32.mrb[0].mxu0
    %v409 = vadd.f32 0.0, %v408
    %v410 = vpop.f32.mrb[0].mxu0
    %411 = vdwg.mxu0
    %v412 = vadd.f32 %v91, %v350
    %v413 = vadd.f32 %v92, %v353
    %v414 = vadd.f32 %v93, %v358
    %v415 = vadd.f32 %v94, %v361
    %v416 = vadd.f32 %v95, %v366
    %v417 = vadd.f32 %v96, %v369
    %v418 = vadd.f32 %v97, %v374
    %v419 = vadd.f32 %v98, %v377
    %v420 = vadd.f32 %v99, %v382
    %v421 = vadd.f32 %v100, %v385
    %v422 = vadd.f32 %v101, %v390
    %v423 = vadd.f32 %v102, %v393
    %v424 = vadd.f32 %v103, %v398
    %v425 = vadd.f32 %v104, %v401
    %v426 = vadd.f32 %v105, %v406
    %v427 = vadd.f32 %v106, %v409
    %428 = vst [vmem:[#allocation2] sm:$0xff] %v412
    %429 = vst [vmem:[#allocation2 + $0x8] sm:$0xff] %v413
    %430 = vst [vmem:[#allocation2 + $0x10] sm:$0xff] %v414
    %431 = vst [vmem:[#allocation2 + $0x18] sm:$0xff] %v415
    %432 = vst [vmem:[#allocation2 + $0x20] sm:$0xff] %v416
    %433 = vst [vmem:[#allocation2 + $0x28] sm:$0xff] %v417
    %434 = vst [vmem:[#allocation2 + $0x30] sm:$0xff] %v418
    %435 = vst [vmem:[#allocation2 + $0x38] sm:$0xff] %v419
    %436 = vst [vmem:[#allocation2 + $0x40] sm:$0xff] %v420
    %437 = vst [vmem:[#allocation2 + $0x48] sm:$0xff] %v421
    %438 = vst [vmem:[#allocation2 + $0x50] sm:$0xff] %v422
    %439 = vst [vmem:[#allocation2 + $0x58] sm:$0xff] %v423
    %440 = vst [vmem:[#allocation2 + $0x60] sm:$0xff] %v424
    %441 = vst [vmem:[#allocation2 + $0x68] sm:$0xff] %v425
    %442 = vst [vmem:[#allocation2 + $0x70] sm:$0xff] %v426
    %443 = vst [vmem:[#allocation2 + $0x78] sm:$0xff] %v427
    // Predicated region
    $region30: #{vqvae_forward.23} parent=1 // pred_check
      %p444 = pneg %p55
    $region31: #{vqvae_forward.23} parent=1 // pred_check_branch
      %446 = sbr.rel (%p444) target = $region33
    $region32: #{vqvae_forward.23} parent=1 // pred_region
      %v447 = vld [vmem:[#allocation2] sm:$0xff]
      %v448 = vld [vmem:[#allocation2 + $0x8] sm:$0xff]
      %v449 = vld [vmem:[#allocation2 + $0x10] sm:$0xff]
      %v450 = vld [vmem:[#allocation2 + $0x18] sm:$0xff]
      %v451 = vld [vmem:[#allocation2 + $0x20] sm:$0xff]
      %v452 = vld [vmem:[#allocation2 + $0x28] sm:$0xff]
      %v453 = vld [vmem:[#allocation2 + $0x30] sm:$0xff]
      %v454 = vld [vmem:[#allocation2 + $0x38] sm:$0xff]
      %v455 = vld [vmem:[#allocation2 + $0x40] sm:$0xff]
      %v456 = vld [vmem:[#allocation2 + $0x48] sm:$0xff]
      %v457 = vld [vmem:[#allocation2 + $0x50] sm:$0xff]
      %v458 = vld [vmem:[#allocation2 + $0x58] sm:$0xff]
      %v459 = vld [vmem:[#allocation2 + $0x60] sm:$0xff]
      %v460 = vld [vmem:[#allocation2 + $0x68] sm:$0xff]
      %v461 = vld [vmem:[#allocation2 + $0x70] sm:$0xff]
      %v462 = vld [vmem:[#allocation2 + $0x78] sm:$0xff]
      %v463 = vld [vmem:[#allocation8] sm:$0x1]
      %v465 = vlaneseq
      %v466 = vshrl.u32 %v465, 7
      %v467 = vsub.s32 0, %v466
      %v468 = vrot.slane %v463, %v467
      %v470 = vadd.f32 %v447, %v468
      %v471 = vadd.f32 %v448, %v468
      %v472 = vadd.f32 %v449, %v468
      %v473 = vadd.f32 %v450, %v468
      %v474 = vadd.f32 %v451, %v468
      %v475 = vadd.f32 %v452, %v468
      %v476 = vadd.f32 %v453, %v468
      %v477 = vadd.f32 %v454, %v468
      %v478 = vadd.f32 %v455, %v468
      %v479 = vadd.f32 %v456, %v468
      %v480 = vadd.f32 %v457, %v468
      %v481 = vadd.f32 %v458, %v468
      %v482 = vadd.f32 %v459, %v468
      %v483 = vadd.f32 %v460, %v468
      %v484 = vadd.f32 %v461, %v468
      %v485 = vadd.f32 %v462, %v468
      %486 = vst [vmem:[#allocation9] sm:$0xff] %v470
      %487 = vst [vmem:[#allocation9 + $0x8] sm:$0xff] %v471
      %488 = vst [vmem:[#allocation9 + $0x10] sm:$0xff] %v472
      %489 = vst [vmem:[#allocation9 + $0x18] sm:$0xff] %v473
      %490 = vst [vmem:[#allocation9 + $0x20] sm:$0xff] %v474
      %491 = vst [vmem:[#allocation9 + $0x28] sm:$0xff] %v475
      %492 = vst [vmem:[#allocation9 + $0x30] sm:$0xff] %v476
      %493 = vst [vmem:[#allocation9 + $0x38] sm:$0xff] %v477
      %494 = vst [vmem:[#allocation9 + $0x40] sm:$0xff] %v478
      %495 = vst [vmem:[#allocation9 + $0x48] sm:$0xff] %v479
      %496 = vst [vmem:[#allocation9 + $0x50] sm:$0xff] %v480
      %497 = vst [vmem:[#allocation9 + $0x58] sm:$0xff] %v481
      %498 = vst [vmem:[#allocation9 + $0x60] sm:$0xff] %v482
      %499 = vst [vmem:[#allocation9 + $0x68] sm:$0xff] %v483
      %500 = vst [vmem:[#allocation9 + $0x70] sm:$0xff] %v484
      %501 = vst [vmem:[#allocation9 + $0x78] sm:$0xff] %v485
    $region33: #{vqvae_forward.23} parent=1 // pred_fallthru
      _
    // Predicated region
    $region34: #{vqvae_forward.23} parent=1 // pred_check
      _
    $region35: #{vqvae_forward.23} parent=1 // pred_check_branch
      %503 = sbr.rel (0) target = $region37
    $region36: #{vqvae_forward.23} parent=1 // pred_region
      %s505 = ssub.s32 2048, 2048
      %506 = vsyncadd [#allocation5], %s505
      %s507 = sshll.u32 [#allocation9], 4
      %s508 = int_to_ptr.vmem [resolvable:$true] %s507
      %513 = dma.vmem_to_hbm [thread:$0]  %s508, 2048, %s3, [#allocation5], 128, 128, 8
    $region37: #{vqvae_forward.23} parent=1 // pred_fallthru
      _
    // Predicated region
    $region38: #{vqvae_forward.23} parent=1 // pred_check
      _
    $region39: #{vqvae_forward.23} parent=1 // pred_check_branch
      %515 = sbr.rel (0) target = $region41
    $region40: #{vqvae_forward.23} parent=1 // pred_region
      %516 = dma.done [#allocation5], 2048
    $region41: #{vqvae_forward.23} parent=1 // pred_fallthru
      _
    %517 = vsyncpa [#allocation4], 1
    %518 = vsyncpa [#allocation7], 1
    %519 = vsyncpa [#allocation5], 1

</llo_original>
